<compile_context>
chip_gen: v6e
topology: v6e:2x2x1
jax: 0.10.0
libtpu: 0.0.40
codegen_flags: <defaults>
</compile_context>

<pallas_src>
import functools

import jax
import jax.numpy as jnp
from jax.experimental import pallas as pl
from jax.experimental.pallas import tpu as pltpu

EPS = 1e-5  # nn.LayerNorm default eps


def _layernorm(x, gamma, beta):
    mu = jnp.mean(x, axis=-1, keepdims=True)
    var = jnp.mean((x - mu) ** 2, axis=-1, keepdims=True)  # biased, like PyTorch
    return (x - mu) * jax.lax.rsqrt(var + EPS) * gamma + beta


# ----------------------------- fused whole-model kernel -----------------------------
def _model_kernel(x_ref, pool_ref, wqkv_ref, wu_ref, bu_ref,
                  g1_ref, be1_ref, w1_ref, bf1_ref, w2_ref, bf2_ref,
                  g2_ref, be2_ref, wc_ref, bc_ref, o_ref,
                  *, depth, heads, k, b, t):
    bt = b * t
    hk = heads * k
    bf16 = jnp.bfloat16

    x = x_ref[...].astype(jnp.float32)                                   # (B*T, K)

    # TODO(synk): at production K/depth, turn this static unroll into an 'arbitrary' grid
    # axis (per-layer weight BlockSpecs, activation carried in VMEM scratch) so all stacked
    # weights are not VMEM-resident at once (needed on v7x's 64 MiB VMEM) and layer d+1
    # weights prefetch behind layer d compute.
    for d in range(depth):                                               # static unroll over layers
        xb = x.astype(bf16)
        # fused q|k|v projection: one (B*T, K) @ (K, 3*H*K) matmul; q scale pre-folded
        proj = jnp.dot(xb, wqkv_ref[d], preferred_element_type=jnp.float32)  # (B*T, 3*H*K)

        head_outs = []
        for hi in range(heads):                                          # static unroll over heads
            lo = hi * k
            qh = proj[:, lo:lo + k].reshape(b, t, k).astype(bf16)                    # (B, T, k)
            kh = proj[:, hk + lo:hk + lo + k].reshape(b, t, k).astype(bf16)
            vh = proj[:, 2 * hk + lo:2 * hk + lo + k].reshape(b, t, k).astype(bf16)
            # scores: contraction on last dim, no materialized transpose
            s = jnp.einsum('btd,bsd->bts', qh, kh,
                           preferred_element_type=jnp.float32)           # (B, T, T)
            s = s - jnp.max(s, axis=-1, keepdims=True)
            p = jnp.exp(s)
            p = p * pl.reciprocal(jnp.sum(p, axis=-1, keepdims=True), approx=True)
            oh = jnp.einsum('bts,bsd->btd', p.astype(bf16), vh,
                            preferred_element_type=jnp.float32)          # (B, T, k)
            head_outs.append(oh.reshape(bt, k))
        # head outputs stay in vregs; no VMEM slab round-trip
        ctx = jnp.concatenate(head_outs, axis=-1).astype(bf16)           # (B*T, H*K)

        # single unify matmul with full 128-wide contraction
        attended = jnp.dot(ctx, wu_ref[d],
                           preferred_element_type=jnp.float32) + bu_ref[d]   # (B*T, K)

        x1 = _layernorm(attended + x, g1_ref[d], be1_ref[d])             # norm1(attn + x)
        hdn = jnp.maximum(
            jnp.dot(x1.astype(bf16), w1_ref[d],
                    preferred_element_type=jnp.float32) + bf1_ref[d], 0.0)
        ff = jnp.dot(hdn.astype(bf16), w2_ref[d],
                     preferred_element_type=jnp.float32) + bf2_ref[d]
        x = _layernorm(ff + x1, g2_ref[d], be2_ref[d])                   # norm2(ff + x1)

    # classifier head: mean over seq via tiny pooling matmul (no (bt,k)->(b,t,k) reshape),
    # then linear + log_softmax
    pooled = jnp.dot(pool_ref[...], x, preferred_element_type=jnp.float32)   # (B, K), f32
    logits = jnp.dot(pooled.astype(bf16), wc_ref[...],
                     preferred_element_type=jnp.float32) + bc_ref[...]       # (B, C)
    m = jnp.max(logits, axis=-1, keepdims=True)
    lse = m + jnp.log(jnp.sum(jnp.exp(logits - m), axis=-1, keepdims=True))
    o_ref[...] = (logits - lse).astype(o_ref.dtype)


def fused_transformer(h0_2d, pool, stacked, wc, bc, heads, k, b, t):
    D = stacked["wqkv"].shape[0]
    C = wc.shape[1]
    ops = [stacked["wqkv"], stacked["wu"], stacked["bu"],
           stacked["g1"], stacked["be1"], stacked["w1"], stacked["bf1"],
           stacked["w2"], stacked["bf2"], stacked["g2"], stacked["be2"], wc, bc]
    in_specs = [pl.BlockSpec(h0_2d.shape, lambda i: (0, 0)),
                pl.BlockSpec(pool.shape, lambda i: (0, 0))]
    in_specs += [pl.BlockSpec(w.shape, lambda i, n=w.ndim: (0,) * n) for w in ops]
    # TODO(synk): on v7x (2 TCs) add a leading 'parallel' grid axis over batch tiles once
    # B*T per core is big enough to amortize the ~0.35us per-step overhead; at B*T=16 a
    # serial grid is pure overhead on v5e/v6e, so a single fused step is kept.
    return pl.pallas_call(
        functools.partial(_model_kernel, depth=D, heads=heads, k=k, b=b, t=t),
        out_shape=jax.ShapeDtypeStruct((b, C), jnp.float32),
        grid=(1,),
        in_specs=in_specs,
        out_specs=pl.BlockSpec((b, C), lambda i: (0, 0)),
        compiler_params=pltpu.CompilerParams(
            dimension_semantics=("arbitrary",),
            vmem_limit_bytes=32 * 1024 * 1024),   # v5e scoped-VMEM default is only 16 MiB
    )(h0_2d, pool, *ops)


# ----------------------------- parameters & forward -----------------------------
def init_params(key, k, heads, depth, seq_length, num_tokens, num_classes):
    def lin(rng, fan_in, fan_out, bias=True):
        kw, kb = jax.random.split(rng)
        bound = 1.0 / float(fan_in) ** 0.5
        w = jax.random.uniform(kw, (fan_in, fan_out), jnp.float32, -bound, bound)
        b = (jax.random.uniform(kb, (1, fan_out), jnp.float32, -bound, bound)
             if bias else None)
        return w, b

    keys = jax.random.split(key, 3 + depth)
    params = {
        "token_emb": jax.random.normal(keys[0], (num_tokens, k), jnp.float32),
        "pos_emb": jax.random.normal(keys[1], (seq_length, k), jnp.float32),
    }
    blocks = []
    for d in range(depth):
        kd = jax.random.split(keys[3 + d], 6)
        wq, _ = lin(kd[0], k, heads * k, bias=False)
        wk, _ = lin(kd[1], k, heads * k, bias=False)
        wv, _ = lin(kd[2], k, heads * k, bias=False)
        wu, bu = lin(kd[3], heads * k, k)
        w1, bf1 = lin(kd[4], k, 4 * k)
        w2, bf2 = lin(kd[5], 4 * k, k)
        blocks.append(dict(
            wq=wq, wk=wk, wv=wv, wu=wu, bu=bu,
            g1=jnp.ones((1, k), jnp.float32), be1=jnp.zeros((1, k), jnp.float32),
            w1=w1, bf1=bf1, w2=w2, bf2=bf2,
            g2=jnp.ones((1, k), jnp.float32), be2=jnp.zeros((1, k), jnp.float32)))
    params["blocks"] = blocks
    params["toprobs"] = lin(keys[2], k, num_classes)
    return params


def _prep_weights(params, k):
    """Stack per-layer weights on a depth axis, fuse Wq|Wk|Wv, fold in the q/k scale,
    cast matmul weights to bf16."""
    blocks = params["blocks"]
    scale = 1.0 / float(k) ** 0.5          # (k**-0.25 on q) * (k**-0.25 on k) folded into Wq

    def stack(name):
        return jnp.stack([blk[name] for blk in blocks])

    wqkv = jnp.stack([
        jnp.concatenate([blk["wq"] * scale, blk["wk"], blk["wv"]], axis=1)
        for blk in blocks]).astype(jnp.bfloat16)                         # (D, K, 3*H*K)

    stacked = {
        "wqkv": wqkv,
        "wu": stack("wu").astype(jnp.bfloat16),
        "bu": stack("bu"),
        "g1": stack("g1"), "be1": stack("be1"),
        "w1": stack("w1").astype(jnp.bfloat16), "bf1": stack("bf1"),
        "w2": stack("w2").astype(jnp.bfloat16), "bf2": stack("bf2"),
        "g2": stack("g2"), "be2": stack("be2"),
    }
    wc, bc = params["toprobs"]
    return stacked, wc.astype(jnp.bfloat16), bc


def transformer_forward(x_tokens, params, heads, k):
    # embedding gathers + position add are glue (kept in plain JAX)
    tokens = jnp.take(params["token_emb"], x_tokens, axis=0)             # (B, T, K)
    b, t, _ = tokens.shape
    h0 = tokens + params["pos_emb"][:t][None, :, :]
    h0_2d = h0.reshape(b * t, k)                                         # host-side reshape
    # (B, B*T) mean-pool matrix: block-diagonal rows of 1/T
    pool = jnp.kron(jnp.eye(b, dtype=jnp.float32),
                    jnp.full((1, t), 1.0 / t, dtype=jnp.float32))
    stacked, wc, bc = _prep_weights(params, k)
    return fused_transformer(h0_2d, pool, stacked, wc, bc, heads, k, b, t)  # (B, C) log-probs


if __name__ == "__main__":
    K, HEADS, DEPTH, SEQ, NTOK, NCLS, B = 32, 4, 2, 8, 64, 4, 2
    key = jax.random.PRNGKey(0)
    pkey, xkey = jax.random.split(key)
    params = init_params(pkey, K, HEADS, DEPTH, SEQ, NTOK, NCLS)
    x = jax.random.randint(xkey, (B, SEQ), 0, NTOK, dtype=jnp.int32)

    out = jax.jit(lambda xx: transformer_forward(xx, params, HEADS, K))(x)
    out = jax.block_until_ready(out)
    assert out.shape == (B, NCLS)
    assert bool(jnp.all(jnp.isfinite(out)))
    print("KERNEL_OK")
</pallas_src>

<mosaic_0001>
module attributes {stable_mosaic.version = 11 : i64} {
  func.func @_model_kernel(%arg0: i32, %arg1: memref<16x32xf32, #tpu.memory_space<vmem>>, %arg2: memref<2x16xf32, #tpu.memory_space<vmem>>, %arg3: memref<2x32x384xbf16, #tpu.memory_space<vmem>>, %arg4: memref<2x128x32xbf16, #tpu.memory_space<vmem>>, %arg5: memref<2x1x32xf32, #tpu.memory_space<vmem>>, %arg6: memref<2x1x32xf32, #tpu.memory_space<vmem>>, %arg7: memref<2x1x32xf32, #tpu.memory_space<vmem>>, %arg8: memref<2x32x128xbf16, #tpu.memory_space<vmem>>, %arg9: memref<2x1x128xf32, #tpu.memory_space<vmem>>, %arg10: memref<2x128x32xbf16, #tpu.memory_space<vmem>>, %arg11: memref<2x1x32xf32, #tpu.memory_space<vmem>>, %arg12: memref<2x1x32xf32, #tpu.memory_space<vmem>>, %arg13: memref<2x1x32xf32, #tpu.memory_space<vmem>>, %arg14: memref<32x4xbf16, #tpu.memory_space<vmem>>, %arg15: memref<1x4xf32, #tpu.memory_space<vmem>>, %arg16: memref<2x4xf32, #tpu.memory_space<vmem>>) attributes {dimension_semantics = [#tpu.dimension_semantics<arbitrary>], iteration_bounds = array<i64: 1>, scalar_prefetch = 0 : i64, scratch_operands = 0 : i64, tpu.core_type = #tpu.core_type<tc>, window_params = [{pipeline_mode = #tpu.pipeline_mode<synchronous>, transform_indices = @transform_0, window_bounds = array<i64: 16, 32>}, {pipeline_mode = #tpu.pipeline_mode<synchronous>, transform_indices = @transform_1, window_bounds = array<i64: 2, 16>}, {pipeline_mode = #tpu.pipeline_mode<synchronous>, transform_indices = @transform_2, window_bounds = array<i64: 2, 32, 384>}, {pipeline_mode = #tpu.pipeline_mode<synchronous>, transform_indices = @transform_3, window_bounds = array<i64: 2, 128, 32>}, {pipeline_mode = #tpu.pipeline_mode<synchronous>, transform_indices = @transform_4, window_bounds = array<i64: 2, 1, 32>}, {pipeline_mode = #tpu.pipeline_mode<synchronous>, transform_indices = @transform_5, window_bounds = array<i64: 2, 1, 32>}, {pipeline_mode = #tpu.pipeline_mode<synchronous>, transform_indices = @transform_6, window_bounds = array<i64: 2, 1, 32>}, {pipeline_mode = #tpu.pipeline_mode<synchronous>, transform_indices = @transform_7, window_bounds = array<i64: 2, 32, 128>}, {pipeline_mode = #tpu.pipeline_mode<synchronous>, transform_indices = @transform_8, window_bounds = array<i64: 2, 1, 128>}, {pipeline_mode = #tpu.pipeline_mode<synchronous>, transform_indices = @transform_9, window_bounds = array<i64: 2, 128, 32>}, {pipeline_mode = #tpu.pipeline_mode<synchronous>, transform_indices = @transform_10, window_bounds = array<i64: 2, 1, 32>}, {pipeline_mode = #tpu.pipeline_mode<synchronous>, transform_indices = @transform_11, window_bounds = array<i64: 2, 1, 32>}, {pipeline_mode = #tpu.pipeline_mode<synchronous>, transform_indices = @transform_12, window_bounds = array<i64: 2, 1, 32>}, {pipeline_mode = #tpu.pipeline_mode<synchronous>, transform_indices = @transform_13, window_bounds = array<i64: 32, 4>}, {pipeline_mode = #tpu.pipeline_mode<synchronous>, transform_indices = @transform_14, window_bounds = array<i64: 1, 4>}, {pipeline_mode = #tpu.pipeline_mode<synchronous>, transform_indices = @transform_15, window_bounds = array<i64: 2, 4>}]} {
    %c0 = arith.constant 0 : index
    %c0_0 = arith.constant 0 : index
    %0 = vector.load %arg1[%c0, %c0_0] : memref<16x32xf32, #tpu.memory_space<vmem>>, vector<16x32xf32>
    %1 = arith.truncf %0 : vector<16x32xf32> to vector<16x32xbf16>
    %c0_1 = arith.constant 0 : index
    %c0_2 = arith.constant 0 : index
    %c0_3 = arith.constant 0 : index
    %2 = vector.load %arg3[%c0_1, %c0_2, %c0_3] : memref<2x32x384xbf16, #tpu.memory_space<vmem>>, vector<1x32x384xbf16>
    %3 = vector.shape_cast %2 : vector<1x32x384xbf16> to vector<32x384xbf16>
    %cst = arith.constant dense<0.000000e+00> : vector<16x384xf32>
    %4 = tpu.matmul %1, %3, %cst {dimension_numbers = #tpu.dot_dimension_numbers<[1], [0], [0], [1], [0, 0, 1, 1], [], []>} : vector<16x32xbf16>, vector<32x384xbf16>, vector<16x384xf32> -> vector<16x384xf32>
    %5 = vector.extract_strided_slice %4 {offsets = [0, 0], sizes = [16, 32], strides = [1, 1]} : vector<16x384xf32> to vector<16x32xf32>
    %6 = vector.shape_cast %5 : vector<16x32xf32> to vector<2x8x32xf32>
    %7 = arith.truncf %6 : vector<2x8x32xf32> to vector<2x8x32xbf16>
    %8 = vector.extract_strided_slice %4 {offsets = [0, 128], sizes = [16, 32], strides = [1, 1]} : vector<16x384xf32> to vector<16x32xf32>
    %9 = vector.shape_cast %8 : vector<16x32xf32> to vector<2x8x32xf32>
    %10 = arith.truncf %9 : vector<2x8x32xf32> to vector<2x8x32xbf16>
    %11 = vector.extract_strided_slice %4 {offsets = [0, 256], sizes = [16, 32], strides = [1, 1]} : vector<16x384xf32> to vector<16x32xf32>
    %12 = vector.shape_cast %11 : vector<16x32xf32> to vector<2x8x32xf32>
    %13 = arith.truncf %12 : vector<2x8x32xf32> to vector<2x8x32xbf16>
    "tpu.trace_start"() <{level = 10 : i32, message = "btd,bsd->bts"}> : () -> ()
    %cst_4 = arith.constant dense<0.000000e+00> : vector<2x8x8xf32>
    %14 = tpu.matmul %7, %10, %cst_4 {dimension_numbers = #tpu.dot_dimension_numbers<[2], [2], [1], [1], [0, 0, 0, 1, 1, 1], [0], [0]>} : vector<2x8x32xbf16>, vector<2x8x32xbf16>, vector<2x8x8xf32> -> vector<2x8x8xf32>
    "tpu.trace_stop"() : () -> ()
    %cst_5 = arith.constant dense<0xFF800000> : vector<2x8xf32>
    %15 = vector.multi_reduction <maximumf>, %14, %cst_5 [2] : vector<2x8x8xf32> to vector<2x8xf32>
    %16 = vector.shape_cast %15 : vector<2x8xf32> to vector<2x8x1xf32>
    %17 = vector.broadcast %16 : vector<2x8x1xf32> to vector<2x8x8xf32>
    %18 = arith.subf %14, %17 : vector<2x8x8xf32>
    %19 = math.exp %18 : vector<2x8x8xf32>
    %cst_6 = arith.constant dense<0.000000e+00> : vector<2x8xf32>
    %20 = vector.multi_reduction <add>, %19, %cst_6 [2] : vector<2x8x8xf32> to vector<2x8xf32>
    %21 = vector.shape_cast %20 : vector<2x8xf32> to vector<2x8x1xf32>
    %22 = tpu.reciprocal %21 {approx = true} : vector<2x8x1xf32> -> vector<2x8x1xf32>
    %23 = vector.broadcast %22 : vector<2x8x1xf32> to vector<2x8x8xf32>
    %24 = arith.mulf %19, %23 : vector<2x8x8xf32>
    %25 = arith.truncf %24 : vector<2x8x8xf32> to vector<2x8x8xbf16>
    "tpu.trace_start"() <{level = 10 : i32, message = "bts,bsd->btd"}> : () -> ()
    %cst_7 = arith.constant dense<0.000000e+00> : vector<2x8x32xf32>
    %26 = tpu.matmul %25, %13, %cst_7 {dimension_numbers = #tpu.dot_dimension_numbers<[2], [1], [1], [2], [0, 0, 0, 1, 1, 2], [0], [0]>} : vector<2x8x8xbf16>, vector<2x8x32xbf16>, vector<2x8x32xf32> -> vector<2x8x32xf32>
    "tpu.trace_stop"() : () -> ()
    %27 = vector.shape_cast %26 : vector<2x8x32xf32> to vector<16x32xf32>
    %28 = vector.extract_strided_slice %4 {offsets = [0, 32], sizes = [16, 32], strides = [1, 1]} : vector<16x384xf32> to vector<16x32xf32>
    %29 = vector.shape_cast %28 : vector<16x32xf32> to vector<2x8x32xf32>
    %30 = arith.truncf %29 : vector<2x8x32xf32> to vector<2x8x32xbf16>
    %31 = vector.extract_strided_slice %4 {offsets = [0, 160], sizes = [16, 32], strides = [1, 1]} : vector<16x384xf32> to vector<16x32xf32>
    %32 = vector.shape_cast %31 : vector<16x32xf32> to vector<2x8x32xf32>
    %33 = arith.truncf %32 : vector<2x8x32xf32> to vector<2x8x32xbf16>
    %34 = vector.extract_strided_slice %4 {offsets = [0, 288], sizes = [16, 32], strides = [1, 1]} : vector<16x384xf32> to vector<16x32xf32>
    %35 = vector.shape_cast %34 : vector<16x32xf32> to vector<2x8x32xf32>
    %36 = arith.truncf %35 : vector<2x8x32xf32> to vector<2x8x32xbf16>
    "tpu.trace_start"() <{level = 10 : i32, message = "btd,bsd->bts"}> : () -> ()
    %cst_8 = arith.constant dense<0.000000e+00> : vector<2x8x8xf32>
    %37 = tpu.matmul %30, %33, %cst_8 {dimension_numbers = #tpu.dot_dimension_numbers<[2], [2], [1], [1], [0, 0, 0, 1, 1, 1], [0], [0]>} : vector<2x8x32xbf16>, vector<2x8x32xbf16>, vector<2x8x8xf32> -> vector<2x8x8xf32>
    "tpu.trace_stop"() : () -> ()
    %cst_9 = arith.constant dense<0xFF800000> : vector<2x8xf32>
    %38 = vector.multi_reduction <maximumf>, %37, %cst_9 [2] : vector<2x8x8xf32> to vector<2x8xf32>
    %39 = vector.shape_cast %38 : vector<2x8xf32> to vector<2x8x1xf32>
    %40 = vector.broadcast %39 : vector<2x8x1xf32> to vector<2x8x8xf32>
    %41 = arith.subf %37, %40 : vector<2x8x8xf32>
    %42 = math.exp %41 : vector<2x8x8xf32>
    %cst_10 = arith.constant dense<0.000000e+00> : vector<2x8xf32>
    %43 = vector.multi_reduction <add>, %42, %cst_10 [2] : vector<2x8x8xf32> to vector<2x8xf32>
    %44 = vector.shape_cast %43 : vector<2x8xf32> to vector<2x8x1xf32>
    %45 = tpu.reciprocal %44 {approx = true} : vector<2x8x1xf32> -> vector<2x8x1xf32>
    %46 = vector.broadcast %45 : vector<2x8x1xf32> to vector<2x8x8xf32>
    %47 = arith.mulf %42, %46 : vector<2x8x8xf32>
    %48 = arith.truncf %47 : vector<2x8x8xf32> to vector<2x8x8xbf16>
    "tpu.trace_start"() <{level = 10 : i32, message = "bts,bsd->btd"}> : () -> ()
    %cst_11 = arith.constant dense<0.000000e+00> : vector<2x8x32xf32>
    %49 = tpu.matmul %48, %36, %cst_11 {dimension_numbers = #tpu.dot_dimension_numbers<[2], [1], [1], [2], [0, 0, 0, 1, 1, 2], [0], [0]>} : vector<2x8x8xbf16>, vector<2x8x32xbf16>, vector<2x8x32xf32> -> vector<2x8x32xf32>
    "tpu.trace_stop"() : () -> ()
    %50 = vector.shape_cast %49 : vector<2x8x32xf32> to vector<16x32xf32>
    %51 = vector.extract_strided_slice %4 {offsets = [0, 64], sizes = [16, 32], strides = [1, 1]} : vector<16x384xf32> to vector<16x32xf32>
    %52 = vector.shape_cast %51 : vector<16x32xf32> to vector<2x8x32xf32>
    %53 = arith.truncf %52 : vector<2x8x32xf32> to vector<2x8x32xbf16>
    %54 = vector.extract_strided_slice %4 {offsets = [0, 192], sizes = [16, 32], strides = [1, 1]} : vector<16x384xf32> to vector<16x32xf32>
    %55 = vector.shape_cast %54 : vector<16x32xf32> to vector<2x8x32xf32>
    %56 = arith.truncf %55 : vector<2x8x32xf32> to vector<2x8x32xbf16>
    %57 = vector.extract_strided_slice %4 {offsets = [0, 320], sizes = [16, 32], strides = [1, 1]} : vector<16x384xf32> to vector<16x32xf32>
    %58 = vector.shape_cast %57 : vector<16x32xf32> to vector<2x8x32xf32>
    %59 = arith.truncf %58 : vector<2x8x32xf32> to vector<2x8x32xbf16>
    "tpu.trace_start"() <{level = 10 : i32, message = "btd,bsd->bts"}> : () -> ()
    %cst_12 = arith.constant dense<0.000000e+00> : vector<2x8x8xf32>
    %60 = tpu.matmul %53, %56, %cst_12 {dimension_numbers = #tpu.dot_dimension_numbers<[2], [2], [1], [1], [0, 0, 0, 1, 1, 1], [0], [0]>} : vector<2x8x32xbf16>, vector<2x8x32xbf16>, vector<2x8x8xf32> -> vector<2x8x8xf32>
    "tpu.trace_stop"() : () -> ()
    %cst_13 = arith.constant dense<0xFF800000> : vector<2x8xf32>
    %61 = vector.multi_reduction <maximumf>, %60, %cst_13 [2] : vector<2x8x8xf32> to vector<2x8xf32>
    %62 = vector.shape_cast %61 : vector<2x8xf32> to vector<2x8x1xf32>
    %63 = vector.broadcast %62 : vector<2x8x1xf32> to vector<2x8x8xf32>
    %64 = arith.subf %60, %63 : vector<2x8x8xf32>
    %65 = math.exp %64 : vector<2x8x8xf32>
    %cst_14 = arith.constant dense<0.000000e+00> : vector<2x8xf32>
    %66 = vector.multi_reduction <add>, %65, %cst_14 [2] : vector<2x8x8xf32> to vector<2x8xf32>
    %67 = vector.shape_cast %66 : vector<2x8xf32> to vector<2x8x1xf32>
    %68 = tpu.reciprocal %67 {approx = true} : vector<2x8x1xf32> -> vector<2x8x1xf32>
    %69 = vector.broadcast %68 : vector<2x8x1xf32> to vector<2x8x8xf32>
    %70 = arith.mulf %65, %69 : vector<2x8x8xf32>
    %71 = arith.truncf %70 : vector<2x8x8xf32> to vector<2x8x8xbf16>
    "tpu.trace_start"() <{level = 10 : i32, message = "bts,bsd->btd"}> : () -> ()
    %cst_15 = arith.constant dense<0.000000e+00> : vector<2x8x32xf32>
    %72 = tpu.matmul %71, %59, %cst_15 {dimension_numbers = #tpu.dot_dimension_numbers<[2], [1], [1], [2], [0, 0, 0, 1, 1, 2], [0], [0]>} : vector<2x8x8xbf16>, vector<2x8x32xbf16>, vector<2x8x32xf32> -> vector<2x8x32xf32>
    "tpu.trace_stop"() : () -> ()
    %73 = vector.shape_cast %72 : vector<2x8x32xf32> to vector<16x32xf32>
    %74 = vector.extract_strided_slice %4 {offsets = [0, 96], sizes = [16, 32], strides = [1, 1]} : vector<16x384xf32> to vector<16x32xf32>
    %75 = vector.shape_cast %74 : vector<16x32xf32> to vector<2x8x32xf32>
    %76 = arith.truncf %75 : vector<2x8x32xf32> to vector<2x8x32xbf16>
    %77 = vector.extract_strided_slice %4 {offsets = [0, 224], sizes = [16, 32], strides = [1, 1]} : vector<16x384xf32> to vector<16x32xf32>
    %78 = vector.shape_cast %77 : vector<16x32xf32> to vector<2x8x32xf32>
    %79 = arith.truncf %78 : vector<2x8x32xf32> to vector<2x8x32xbf16>
    %80 = vector.extract_strided_slice %4 {offsets = [0, 352], sizes = [16, 32], strides = [1, 1]} : vector<16x384xf32> to vector<16x32xf32>
    %81 = vector.shape_cast %80 : vector<16x32xf32> to vector<2x8x32xf32>
    %82 = arith.truncf %81 : vector<2x8x32xf32> to vector<2x8x32xbf16>
    "tpu.trace_start"() <{level = 10 : i32, message = "btd,bsd->bts"}> : () -> ()
    %cst_16 = arith.constant dense<0.000000e+00> : vector<2x8x8xf32>
    %83 = tpu.matmul %76, %79, %cst_16 {dimension_numbers = #tpu.dot_dimension_numbers<[2], [2], [1], [1], [0, 0, 0, 1, 1, 1], [0], [0]>} : vector<2x8x32xbf16>, vector<2x8x32xbf16>, vector<2x8x8xf32> -> vector<2x8x8xf32>
    "tpu.trace_stop"() : () -> ()
    %cst_17 = arith.constant dense<0xFF800000> : vector<2x8xf32>
    %84 = vector.multi_reduction <maximumf>, %83, %cst_17 [2] : vector<2x8x8xf32> to vector<2x8xf32>
    %85 = vector.shape_cast %84 : vector<2x8xf32> to vector<2x8x1xf32>
    %86 = vector.broadcast %85 : vector<2x8x1xf32> to vector<2x8x8xf32>
    %87 = arith.subf %83, %86 : vector<2x8x8xf32>
    %88 = math.exp %87 : vector<2x8x8xf32>
    %cst_18 = arith.constant dense<0.000000e+00> : vector<2x8xf32>
    %89 = vector.multi_reduction <add>, %88, %cst_18 [2] : vector<2x8x8xf32> to vector<2x8xf32>
    %90 = vector.shape_cast %89 : vector<2x8xf32> to vector<2x8x1xf32>
    %91 = tpu.reciprocal %90 {approx = true} : vector<2x8x1xf32> -> vector<2x8x1xf32>
    %92 = vector.broadcast %91 : vector<2x8x1xf32> to vector<2x8x8xf32>
    %93 = arith.mulf %88, %92 : vector<2x8x8xf32>
    %94 = arith.truncf %93 : vector<2x8x8xf32> to vector<2x8x8xbf16>
    "tpu.trace_start"() <{level = 10 : i32, message = "bts,bsd->btd"}> : () -> ()
    %cst_19 = arith.constant dense<0.000000e+00> : vector<2x8x32xf32>
    %95 = tpu.matmul %94, %82, %cst_19 {dimension_numbers = #tpu.dot_dimension_numbers<[2], [1], [1], [2], [0, 0, 0, 1, 1, 2], [0], [0]>} : vector<2x8x8xbf16>, vector<2x8x32xbf16>, vector<2x8x32xf32> -> vector<2x8x32xf32>
    "tpu.trace_stop"() : () -> ()
    %96 = vector.shape_cast %95 : vector<2x8x32xf32> to vector<16x32xf32>
    %97 = tpu.concatenate %27, %50, %73, %96 in 1 : vector<16x32xf32>, vector<16x32xf32>, vector<16x32xf32>, vector<16x32xf32> -> vector<16x128xf32>
    %98 = arith.truncf %97 : vector<16x128xf32> to vector<16x128xbf16>
    %c0_20 = arith.constant 0 : index
    %c0_21 = arith.constant 0 : index
    %c0_22 = arith.constant 0 : index
    %99 = vector.load %arg4[%c0_20, %c0_21, %c0_22] : memref<2x128x32xbf16, #tpu.memory_space<vmem>>, vector<1x128x32xbf16>
    %100 = vector.shape_cast %99 : vector<1x128x32xbf16> to vector<128x32xbf16>
    %cst_23 = arith.constant dense<0.000000e+00> : vector<16x32xf32>
    %101 = tpu.matmul %98, %100, %cst_23 {dimension_numbers = #tpu.dot_dimension_numbers<[1], [0], [0], [1], [0, 0, 1, 1], [], []>} : vector<16x128xbf16>, vector<128x32xbf16>, vector<16x32xf32> -> vector<16x32xf32>
    %c0_24 = arith.constant 0 : index
    %c0_25 = arith.constant 0 : index
    %c0_26 = arith.constant 0 : index
    %102 = vector.load %arg5[%c0_24, %c0_25, %c0_26] : memref<2x1x32xf32, #tpu.memory_space<vmem>>, vector<1x1x32xf32>
    %103 = vector.shape_cast %102 : vector<1x1x32xf32> to vector<1x32xf32>
    %104 = vector.broadcast %103 : vector<1x32xf32> to vector<16x32xf32>
    %105 = arith.addf %101, %104 : vector<16x32xf32>
    %106 = arith.addf %105, %0 : vector<16x32xf32>
    %c0_27 = arith.constant 0 : index
    %c0_28 = arith.constant 0 : index
    %c0_29 = arith.constant 0 : index
    %107 = vector.load %arg6[%c0_27, %c0_28, %c0_29] : memref<2x1x32xf32, #tpu.memory_space<vmem>>, vector<1x1x32xf32>
    %108 = vector.shape_cast %107 : vector<1x1x32xf32> to vector<1x32xf32>
    %c0_30 = arith.constant 0 : index
    %c0_31 = arith.constant 0 : index
    %c0_32 = arith.constant 0 : index
    %109 = vector.load %arg7[%c0_30, %c0_31, %c0_32] : memref<2x1x32xf32, #tpu.memory_space<vmem>>, vector<1x1x32xf32>
    %110 = vector.shape_cast %109 : vector<1x1x32xf32> to vector<1x32xf32>
    %cst_33 = arith.constant dense<0.000000e+00> : vector<16xf32>
    %111 = vector.multi_reduction <add>, %106, %cst_33 [1] : vector<16x32xf32> to vector<16xf32>
    %112 = vector.shape_cast %111 : vector<16xf32> to vector<16x1xf32>
    %cst_34 = arith.constant 3.200000e+01 : f32
    %113 = vector.broadcast %cst_34 : f32 to vector<16x1xf32>
    %114 = arith.divf %112, %113 : vector<16x1xf32>
    %115 = vector.broadcast %114 : vector<16x1xf32> to vector<16x32xf32>
    %116 = arith.subf %106, %115 : vector<16x32xf32>
    %117 = arith.mulf %116, %116 : vector<16x32xf32>
    %cst_35 = arith.constant dense<0.000000e+00> : vector<16xf32>
    %118 = vector.multi_reduction <add>, %117, %cst_35 [1] : vector<16x32xf32> to vector<16xf32>
    %119 = vector.shape_cast %118 : vector<16xf32> to vector<16x1xf32>
    %cst_36 = arith.constant 3.200000e+01 : f32
    %120 = vector.broadcast %cst_36 : f32 to vector<16x1xf32>
    %121 = arith.divf %119, %120 : vector<16x1xf32>
    %122 = vector.broadcast %114 : vector<16x1xf32> to vector<16x32xf32>
    %123 = arith.subf %106, %122 : vector<16x32xf32>
    %cst_37 = arith.constant 9.99999974E-6 : f32
    %124 = vector.broadcast %cst_37 : f32 to vector<16x1xf32>
    %125 = arith.addf %121, %124 : vector<16x1xf32>
    %126 = math.rsqrt %125 : vector<16x1xf32>
    %127 = vector.broadcast %126 : vector<16x1xf32> to vector<16x32xf32>
    %128 = arith.mulf %123, %127 : vector<16x32xf32>
    %129 = vector.broadcast %108 : vector<1x32xf32> to vector<16x32xf32>
    %130 = arith.mulf %128, %129 : vector<16x32xf32>
    %131 = vector.broadcast %110 : vector<1x32xf32> to vector<16x32xf32>
    %132 = arith.addf %130, %131 : vector<16x32xf32>
    %133 = arith.truncf %132 : vector<16x32xf32> to vector<16x32xbf16>
    %c0_38 = arith.constant 0 : index
    %c0_39 = arith.constant 0 : index
    %c0_40 = arith.constant 0 : index
    %134 = vector.load %arg8[%c0_38, %c0_39, %c0_40] : memref<2x32x128xbf16, #tpu.memory_space<vmem>>, vector<1x32x128xbf16>
    %135 = vector.shape_cast %134 : vector<1x32x128xbf16> to vector<32x128xbf16>
    %cst_41 = arith.constant dense<0.000000e+00> : vector<16x128xf32>
    %136 = tpu.matmul %133, %135, %cst_41 {dimension_numbers = #tpu.dot_dimension_numbers<[1], [0], [0], [1], [0, 0, 1, 1], [], []>} : vector<16x32xbf16>, vector<32x128xbf16>, vector<16x128xf32> -> vector<16x128xf32>
    %c0_42 = arith.constant 0 : index
    %c0_43 = arith.constant 0 : index
    %c0_44 = arith.constant 0 : index
    %137 = vector.load %arg9[%c0_42, %c0_43, %c0_44] : memref<2x1x128xf32, #tpu.memory_space<vmem>>, vector<1x1x128xf32>
    %138 = vector.shape_cast %137 : vector<1x1x128xf32> to vector<1x128xf32>
    %139 = vector.broadcast %138 : vector<1x128xf32> to vector<16x128xf32>
    %140 = arith.addf %136, %139 : vector<16x128xf32>
    %cst_45 = arith.constant 0.000000e+00 : f32
    %141 = vector.broadcast %cst_45 : f32 to vector<16x128xf32>
    %142 = arith.maximumf %140, %141 : vector<16x128xf32>
    %143 = arith.truncf %142 : vector<16x128xf32> to vector<16x128xbf16>
    %c0_46 = arith.constant 0 : index
    %c0_47 = arith.constant 0 : index
    %c0_48 = arith.constant 0 : index
    %144 = vector.load %arg10[%c0_46, %c0_47, %c0_48] : memref<2x128x32xbf16, #tpu.memory_space<vmem>>, vector<1x128x32xbf16>
    %145 = vector.shape_cast %144 : vector<1x128x32xbf16> to vector<128x32xbf16>
    %cst_49 = arith.constant dense<0.000000e+00> : vector<16x32xf32>
    %146 = tpu.matmul %143, %145, %cst_49 {dimension_numbers = #tpu.dot_dimension_numbers<[1], [0], [0], [1], [0, 0, 1, 1], [], []>} : vector<16x128xbf16>, vector<128x32xbf16>, vector<16x32xf32> -> vector<16x32xf32>
    %c0_50 = arith.constant 0 : index
    %c0_51 = arith.constant 0 : index
    %c0_52 = arith.constant 0 : index
    %147 = vector.load %arg11[%c0_50, %c0_51, %c0_52] : memref<2x1x32xf32, #tpu.memory_space<vmem>>, vector<1x1x32xf32>
    %148 = vector.shape_cast %147 : vector<1x1x32xf32> to vector<1x32xf32>
    %149 = vector.broadcast %148 : vector<1x32xf32> to vector<16x32xf32>
    %150 = arith.addf %146, %149 : vector<16x32xf32>
    %151 = arith.addf %150, %132 : vector<16x32xf32>
    %c0_53 = arith.constant 0 : index
    %c0_54 = arith.constant 0 : index
    %c0_55 = arith.constant 0 : index
    %152 = vector.load %arg12[%c0_53, %c0_54, %c0_55] : memref<2x1x32xf32, #tpu.memory_space<vmem>>, vector<1x1x32xf32>
    %153 = vector.shape_cast %152 : vector<1x1x32xf32> to vector<1x32xf32>
    %c0_56 = arith.constant 0 : index
    %c0_57 = arith.constant 0 : index
    %c0_58 = arith.constant 0 : index
    %154 = vector.load %arg13[%c0_56, %c0_57, %c0_58] : memref<2x1x32xf32, #tpu.memory_space<vmem>>, vector<1x1x32xf32>
    %155 = vector.shape_cast %154 : vector<1x1x32xf32> to vector<1x32xf32>
    %cst_59 = arith.constant dense<0.000000e+00> : vector<16xf32>
    %156 = vector.multi_reduction <add>, %151, %cst_59 [1] : vector<16x32xf32> to vector<16xf32>
    %157 = vector.shape_cast %156 : vector<16xf32> to vector<16x1xf32>
    %cst_60 = arith.constant 3.200000e+01 : f32
    %158 = vector.broadcast %cst_60 : f32 to vector<16x1xf32>
    %159 = arith.divf %157, %158 : vector<16x1xf32>
    %160 = vector.broadcast %159 : vector<16x1xf32> to vector<16x32xf32>
    %161 = arith.subf %151, %160 : vector<16x32xf32>
    %162 = arith.mulf %161, %161 : vector<16x32xf32>
    %cst_61 = arith.constant dense<0.000000e+00> : vector<16xf32>
    %163 = vector.multi_reduction <add>, %162, %cst_61 [1] : vector<16x32xf32> to vector<16xf32>
    %164 = vector.shape_cast %163 : vector<16xf32> to vector<16x1xf32>
    %cst_62 = arith.constant 3.200000e+01 : f32
    %165 = vector.broadcast %cst_62 : f32 to vector<16x1xf32>
    %166 = arith.divf %164, %165 : vector<16x1xf32>
    %167 = vector.broadcast %159 : vector<16x1xf32> to vector<16x32xf32>
    %168 = arith.subf %151, %167 : vector<16x32xf32>
    %cst_63 = arith.constant 9.99999974E-6 : f32
    %169 = vector.broadcast %cst_63 : f32 to vector<16x1xf32>
    %170 = arith.addf %166, %169 : vector<16x1xf32>
    %171 = math.rsqrt %170 : vector<16x1xf32>
    %172 = vector.broadcast %171 : vector<16x1xf32> to vector<16x32xf32>
    %173 = arith.mulf %168, %172 : vector<16x32xf32>
    %174 = vector.broadcast %153 : vector<1x32xf32> to vector<16x32xf32>
    %175 = arith.mulf %173, %174 : vector<16x32xf32>
    %176 = vector.broadcast %155 : vector<1x32xf32> to vector<16x32xf32>
    %177 = arith.addf %175, %176 : vector<16x32xf32>
    %178 = arith.truncf %177 : vector<16x32xf32> to vector<16x32xbf16>
    %c1 = arith.constant 1 : index
    %c0_64 = arith.constant 0 : index
    %c0_65 = arith.constant 0 : index
    %179 = vector.load %arg3[%c1, %c0_64, %c0_65] : memref<2x32x384xbf16, #tpu.memory_space<vmem>>, vector<1x32x384xbf16>
    %180 = vector.shape_cast %179 : vector<1x32x384xbf16> to vector<32x384xbf16>
    %cst_66 = arith.constant dense<0.000000e+00> : vector<16x384xf32>
    %181 = tpu.matmul %178, %180, %cst_66 {dimension_numbers = #tpu.dot_dimension_numbers<[1], [0], [0], [1], [0, 0, 1, 1], [], []>} : vector<16x32xbf16>, vector<32x384xbf16>, vector<16x384xf32> -> vector<16x384xf32>
    %182 = vector.extract_strided_slice %181 {offsets = [0, 0], sizes = [16, 32], strides = [1, 1]} : vector<16x384xf32> to vector<16x32xf32>
    %183 = vector.shape_cast %182 : vector<16x32xf32> to vector<2x8x32xf32>
    %184 = arith.truncf %183 : vector<2x8x32xf32> to vector<2x8x32xbf16>
    %185 = vector.extract_strided_slice %181 {offsets = [0, 128], sizes = [16, 32], strides = [1, 1]} : vector<16x384xf32> to vector<16x32xf32>
    %186 = vector.shape_cast %185 : vector<16x32xf32> to vector<2x8x32xf32>
    %187 = arith.truncf %186 : vector<2x8x32xf32> to vector<2x8x32xbf16>
    %188 = vector.extract_strided_slice %181 {offsets = [0, 256], sizes = [16, 32], strides = [1, 1]} : vector<16x384xf32> to vector<16x32xf32>
    %189 = vector.shape_cast %188 : vector<16x32xf32> to vector<2x8x32xf32>
    %190 = arith.truncf %189 : vector<2x8x32xf32> to vector<2x8x32xbf16>
    "tpu.trace_start"() <{level = 10 : i32, message = "btd,bsd->bts"}> : () -> ()
    %cst_67 = arith.constant dense<0.000000e+00> : vector<2x8x8xf32>
    %191 = tpu.matmul %184, %187, %cst_67 {dimension_numbers = #tpu.dot_dimension_numbers<[2], [2], [1], [1], [0, 0, 0, 1, 1, 1], [0], [0]>} : vector<2x8x32xbf16>, vector<2x8x32xbf16>, vector<2x8x8xf32> -> vector<2x8x8xf32>
    "tpu.trace_stop"() : () -> ()
    %cst_68 = arith.constant dense<0xFF800000> : vector<2x8xf32>
    %192 = vector.multi_reduction <maximumf>, %191, %cst_68 [2] : vector<2x8x8xf32> to vector<2x8xf32>
    %193 = vector.shape_cast %192 : vector<2x8xf32> to vector<2x8x1xf32>
    %194 = vector.broadcast %193 : vector<2x8x1xf32> to vector<2x8x8xf32>
    %195 = arith.subf %191, %194 : vector<2x8x8xf32>
    %196 = math.exp %195 : vector<2x8x8xf32>
    %cst_69 = arith.constant dense<0.000000e+00> : vector<2x8xf32>
    %197 = vector.multi_reduction <add>, %196, %cst_69 [2] : vector<2x8x8xf32> to vector<2x8xf32>
    %198 = vector.shape_cast %197 : vector<2x8xf32> to vector<2x8x1xf32>
    %199 = tpu.reciprocal %198 {approx = true} : vector<2x8x1xf32> -> vector<2x8x1xf32>
    %200 = vector.broadcast %199 : vector<2x8x1xf32> to vector<2x8x8xf32>
    %201 = arith.mulf %196, %200 : vector<2x8x8xf32>
    %202 = arith.truncf %201 : vector<2x8x8xf32> to vector<2x8x8xbf16>
    "tpu.trace_start"() <{level = 10 : i32, message = "bts,bsd->btd"}> : () -> ()
    %cst_70 = arith.constant dense<0.000000e+00> : vector<2x8x32xf32>
    %203 = tpu.matmul %202, %190, %cst_70 {dimension_numbers = #tpu.dot_dimension_numbers<[2], [1], [1], [2], [0, 0, 0, 1, 1, 2], [0], [0]>} : vector<2x8x8xbf16>, vector<2x8x32xbf16>, vector<2x8x32xf32> -> vector<2x8x32xf32>
    "tpu.trace_stop"() : () -> ()
    %204 = vector.shape_cast %203 : vector<2x8x32xf32> to vector<16x32xf32>
    %205 = vector.extract_strided_slice %181 {offsets = [0, 32], sizes = [16, 32], strides = [1, 1]} : vector<16x384xf32> to vector<16x32xf32>
    %206 = vector.shape_cast %205 : vector<16x32xf32> to vector<2x8x32xf32>
    %207 = arith.truncf %206 : vector<2x8x32xf32> to vector<2x8x32xbf16>
    %208 = vector.extract_strided_slice %181 {offsets = [0, 160], sizes = [16, 32], strides = [1, 1]} : vector<16x384xf32> to vector<16x32xf32>
    %209 = vector.shape_cast %208 : vector<16x32xf32> to vector<2x8x32xf32>
    %210 = arith.truncf %209 : vector<2x8x32xf32> to vector<2x8x32xbf16>
    %211 = vector.extract_strided_slice %181 {offsets = [0, 288], sizes = [16, 32], strides = [1, 1]} : vector<16x384xf32> to vector<16x32xf32>
    %212 = vector.shape_cast %211 : vector<16x32xf32> to vector<2x8x32xf32>
    %213 = arith.truncf %212 : vector<2x8x32xf32> to vector<2x8x32xbf16>
    "tpu.trace_start"() <{level = 10 : i32, message = "btd,bsd->bts"}> : () -> ()
    %cst_71 = arith.constant dense<0.000000e+00> : vector<2x8x8xf32>
    %214 = tpu.matmul %207, %210, %cst_71 {dimension_numbers = #tpu.dot_dimension_numbers<[2], [2], [1], [1], [0, 0, 0, 1, 1, 1], [0], [0]>} : vector<2x8x32xbf16>, vector<2x8x32xbf16>, vector<2x8x8xf32> -> vector<2x8x8xf32>
    "tpu.trace_stop"() : () -> ()
    %cst_72 = arith.constant dense<0xFF800000> : vector<2x8xf32>
    %215 = vector.multi_reduction <maximumf>, %214, %cst_72 [2] : vector<2x8x8xf32> to vector<2x8xf32>
    %216 = vector.shape_cast %215 : vector<2x8xf32> to vector<2x8x1xf32>
    %217 = vector.broadcast %216 : vector<2x8x1xf32> to vector<2x8x8xf32>
    %218 = arith.subf %214, %217 : vector<2x8x8xf32>
    %219 = math.exp %218 : vector<2x8x8xf32>
    %cst_73 = arith.constant dense<0.000000e+00> : vector<2x8xf32>
    %220 = vector.multi_reduction <add>, %219, %cst_73 [2] : vector<2x8x8xf32> to vector<2x8xf32>
    %221 = vector.shape_cast %220 : vector<2x8xf32> to vector<2x8x1xf32>
    %222 = tpu.reciprocal %221 {approx = true} : vector<2x8x1xf32> -> vector<2x8x1xf32>
    %223 = vector.broadcast %222 : vector<2x8x1xf32> to vector<2x8x8xf32>
    %224 = arith.mulf %219, %223 : vector<2x8x8xf32>
    %225 = arith.truncf %224 : vector<2x8x8xf32> to vector<2x8x8xbf16>
    "tpu.trace_start"() <{level = 10 : i32, message = "bts,bsd->btd"}> : () -> ()
    %cst_74 = arith.constant dense<0.000000e+00> : vector<2x8x32xf32>
    %226 = tpu.matmul %225, %213, %cst_74 {dimension_numbers = #tpu.dot_dimension_numbers<[2], [1], [1], [2], [0, 0, 0, 1, 1, 2], [0], [0]>} : vector<2x8x8xbf16>, vector<2x8x32xbf16>, vector<2x8x32xf32> -> vector<2x8x32xf32>
    "tpu.trace_stop"() : () -> ()
    %227 = vector.shape_cast %226 : vector<2x8x32xf32> to vector<16x32xf32>
    %228 = vector.extract_strided_slice %181 {offsets = [0, 64], sizes = [16, 32], strides = [1, 1]} : vector<16x384xf32> to vector<16x32xf32>
    %229 = vector.shape_cast %228 : vector<16x32xf32> to vector<2x8x32xf32>
    %230 = arith.truncf %229 : vector<2x8x32xf32> to vector<2x8x32xbf16>
    %231 = vector.extract_strided_slice %181 {offsets = [0, 192], sizes = [16, 32], strides = [1, 1]} : vector<16x384xf32> to vector<16x32xf32>
    %232 = vector.shape_cast %231 : vector<16x32xf32> to vector<2x8x32xf32>
    %233 = arith.truncf %232 : vector<2x8x32xf32> to vector<2x8x32xbf16>
    %234 = vector.extract_strided_slice %181 {offsets = [0, 320], sizes = [16, 32], strides = [1, 1]} : vector<16x384xf32> to vector<16x32xf32>
    %235 = vector.shape_cast %234 : vector<16x32xf32> to vector<2x8x32xf32>
    %236 = arith.truncf %235 : vector<2x8x32xf32> to vector<2x8x32xbf16>
    "tpu.trace_start"() <{level = 10 : i32, message = "btd,bsd->bts"}> : () -> ()
    %cst_75 = arith.constant dense<0.000000e+00> : vector<2x8x8xf32>
    %237 = tpu.matmul %230, %233, %cst_75 {dimension_numbers = #tpu.dot_dimension_numbers<[2], [2], [1], [1], [0, 0, 0, 1, 1, 1], [0], [0]>} : vector<2x8x32xbf16>, vector<2x8x32xbf16>, vector<2x8x8xf32> -> vector<2x8x8xf32>
    "tpu.trace_stop"() : () -> ()
    %cst_76 = arith.constant dense<0xFF800000> : vector<2x8xf32>
    %238 = vector.multi_reduction <maximumf>, %237, %cst_76 [2] : vector<2x8x8xf32> to vector<2x8xf32>
    %239 = vector.shape_cast %238 : vector<2x8xf32> to vector<2x8x1xf32>
    %240 = vector.broadcast %239 : vector<2x8x1xf32> to vector<2x8x8xf32>
    %241 = arith.subf %237, %240 : vector<2x8x8xf32>
    %242 = math.exp %241 : vector<2x8x8xf32>
    %cst_77 = arith.constant dense<0.000000e+00> : vector<2x8xf32>
    %243 = vector.multi_reduction <add>, %242, %cst_77 [2] : vector<2x8x8xf32> to vector<2x8xf32>
    %244 = vector.shape_cast %243 : vector<2x8xf32> to vector<2x8x1xf32>
    %245 = tpu.reciprocal %244 {approx = true} : vector<2x8x1xf32> -> vector<2x8x1xf32>
    %246 = vector.broadcast %245 : vector<2x8x1xf32> to vector<2x8x8xf32>
    %247 = arith.mulf %242, %246 : vector<2x8x8xf32>
    %248 = arith.truncf %247 : vector<2x8x8xf32> to vector<2x8x8xbf16>
    "tpu.trace_start"() <{level = 10 : i32, message = "bts,bsd->btd"}> : () -> ()
    %cst_78 = arith.constant dense<0.000000e+00> : vector<2x8x32xf32>
    %249 = tpu.matmul %248, %236, %cst_78 {dimension_numbers = #tpu.dot_dimension_numbers<[2], [1], [1], [2], [0, 0, 0, 1, 1, 2], [0], [0]>} : vector<2x8x8xbf16>, vector<2x8x32xbf16>, vector<2x8x32xf32> -> vector<2x8x32xf32>
    "tpu.trace_stop"() : () -> ()
    %250 = vector.shape_cast %249 : vector<2x8x32xf32> to vector<16x32xf32>
    %251 = vector.extract_strided_slice %181 {offsets = [0, 96], sizes = [16, 32], strides = [1, 1]} : vector<16x384xf32> to vector<16x32xf32>
    %252 = vector.shape_cast %251 : vector<16x32xf32> to vector<2x8x32xf32>
    %253 = arith.truncf %252 : vector<2x8x32xf32> to vector<2x8x32xbf16>
    %254 = vector.extract_strided_slice %181 {offsets = [0, 224], sizes = [16, 32], strides = [1, 1]} : vector<16x384xf32> to vector<16x32xf32>
    %255 = vector.shape_cast %254 : vector<16x32xf32> to vector<2x8x32xf32>
    %256 = arith.truncf %255 : vector<2x8x32xf32> to vector<2x8x32xbf16>
    %257 = vector.extract_strided_slice %181 {offsets = [0, 352], sizes = [16, 32], strides = [1, 1]} : vector<16x384xf32> to vector<16x32xf32>
    %258 = vector.shape_cast %257 : vector<16x32xf32> to vector<2x8x32xf32>
    %259 = arith.truncf %258 : vector<2x8x32xf32> to vector<2x8x32xbf16>
    "tpu.trace_start"() <{level = 10 : i32, message = "btd,bsd->bts"}> : () -> ()
    %cst_79 = arith.constant dense<0.000000e+00> : vector<2x8x8xf32>
    %260 = tpu.matmul %253, %256, %cst_79 {dimension_numbers = #tpu.dot_dimension_numbers<[2], [2], [1], [1], [0, 0, 0, 1, 1, 1], [0], [0]>} : vector<2x8x32xbf16>, vector<2x8x32xbf16>, vector<2x8x8xf32> -> vector<2x8x8xf32>
    "tpu.trace_stop"() : () -> ()
    %cst_80 = arith.constant dense<0xFF800000> : vector<2x8xf32>
    %261 = vector.multi_reduction <maximumf>, %260, %cst_80 [2] : vector<2x8x8xf32> to vector<2x8xf32>
    %262 = vector.shape_cast %261 : vector<2x8xf32> to vector<2x8x1xf32>
    %263 = vector.broadcast %262 : vector<2x8x1xf32> to vector<2x8x8xf32>
    %264 = arith.subf %260, %263 : vector<2x8x8xf32>
    %265 = math.exp %264 : vector<2x8x8xf32>
    %cst_81 = arith.constant dense<0.000000e+00> : vector<2x8xf32>
    %266 = vector.multi_reduction <add>, %265, %cst_81 [2] : vector<2x8x8xf32> to vector<2x8xf32>
    %267 = vector.shape_cast %266 : vector<2x8xf32> to vector<2x8x1xf32>
    %268 = tpu.reciprocal %267 {approx = true} : vector<2x8x1xf32> -> vector<2x8x1xf32>
    %269 = vector.broadcast %268 : vector<2x8x1xf32> to vector<2x8x8xf32>
    %270 = arith.mulf %265, %269 : vector<2x8x8xf32>
    %271 = arith.truncf %270 : vector<2x8x8xf32> to vector<2x8x8xbf16>
    "tpu.trace_start"() <{level = 10 : i32, message = "bts,bsd->btd"}> : () -> ()
    %cst_82 = arith.constant dense<0.000000e+00> : vector<2x8x32xf32>
    %272 = tpu.matmul %271, %259, %cst_82 {dimension_numbers = #tpu.dot_dimension_numbers<[2], [1], [1], [2], [0, 0, 0, 1, 1, 2], [0], [0]>} : vector<2x8x8xbf16>, vector<2x8x32xbf16>, vector<2x8x32xf32> -> vector<2x8x32xf32>
    "tpu.trace_stop"() : () -> ()
    %273 = vector.shape_cast %272 : vector<2x8x32xf32> to vector<16x32xf32>
    %274 = tpu.concatenate %204, %227, %250, %273 in 1 : vector<16x32xf32>, vector<16x32xf32>, vector<16x32xf32>, vector<16x32xf32> -> vector<16x128xf32>
    %275 = arith.truncf %274 : vector<16x128xf32> to vector<16x128xbf16>
    %c1_83 = arith.constant 1 : index
    %c0_84 = arith.constant 0 : index
    %c0_85 = arith.constant 0 : index
    %276 = vector.load %arg4[%c1_83, %c0_84, %c0_85] : memref<2x128x32xbf16, #tpu.memory_space<vmem>>, vector<1x128x32xbf16>
    %277 = vector.shape_cast %276 : vector<1x128x32xbf16> to vector<128x32xbf16>
    %cst_86 = arith.constant dense<0.000000e+00> : vector<16x32xf32>
    %278 = tpu.matmul %275, %277, %cst_86 {dimension_numbers = #tpu.dot_dimension_numbers<[1], [0], [0], [1], [0, 0, 1, 1], [], []>} : vector<16x128xbf16>, vector<128x32xbf16>, vector<16x32xf32> -> vector<16x32xf32>
    %c1_87 = arith.constant 1 : index
    %c0_88 = arith.constant 0 : index
    %c0_89 = arith.constant 0 : index
    %279 = vector.load %arg5[%c1_87, %c0_88, %c0_89] : memref<2x1x32xf32, #tpu.memory_space<vmem>>, vector<1x1x32xf32>
    %280 = vector.shape_cast %279 : vector<1x1x32xf32> to vector<1x32xf32>
    %281 = vector.broadcast %280 : vector<1x32xf32> to vector<16x32xf32>
    %282 = arith.addf %278, %281 : vector<16x32xf32>
    %283 = arith.addf %282, %177 : vector<16x32xf32>
    %c1_90 = arith.constant 1 : index
    %c0_91 = arith.constant 0 : index
    %c0_92 = arith.constant 0 : index
    %284 = vector.load %arg6[%c1_90, %c0_91, %c0_92] : memref<2x1x32xf32, #tpu.memory_space<vmem>>, vector<1x1x32xf32>
    %285 = vector.shape_cast %284 : vector<1x1x32xf32> to vector<1x32xf32>
    %c1_93 = arith.constant 1 : index
    %c0_94 = arith.constant 0 : index
    %c0_95 = arith.constant 0 : index
    %286 = vector.load %arg7[%c1_93, %c0_94, %c0_95] : memref<2x1x32xf32, #tpu.memory_space<vmem>>, vector<1x1x32xf32>
    %287 = vector.shape_cast %286 : vector<1x1x32xf32> to vector<1x32xf32>
    %cst_96 = arith.constant dense<0.000000e+00> : vector<16xf32>
    %288 = vector.multi_reduction <add>, %283, %cst_96 [1] : vector<16x32xf32> to vector<16xf32>
    %289 = vector.shape_cast %288 : vector<16xf32> to vector<16x1xf32>
    %cst_97 = arith.constant 3.200000e+01 : f32
    %290 = vector.broadcast %cst_97 : f32 to vector<16x1xf32>
    %291 = arith.divf %289, %290 : vector<16x1xf32>
    %292 = vector.broadcast %291 : vector<16x1xf32> to vector<16x32xf32>
    %293 = arith.subf %283, %292 : vector<16x32xf32>
    %294 = arith.mulf %293, %293 : vector<16x32xf32>
    %cst_98 = arith.constant dense<0.000000e+00> : vector<16xf32>
    %295 = vector.multi_reduction <add>, %294, %cst_98 [1] : vector<16x32xf32> to vector<16xf32>
    %296 = vector.shape_cast %295 : vector<16xf32> to vector<16x1xf32>
    %cst_99 = arith.constant 3.200000e+01 : f32
    %297 = vector.broadcast %cst_99 : f32 to vector<16x1xf32>
    %298 = arith.divf %296, %297 : vector<16x1xf32>
    %299 = vector.broadcast %291 : vector<16x1xf32> to vector<16x32xf32>
    %300 = arith.subf %283, %299 : vector<16x32xf32>
    %cst_100 = arith.constant 9.99999974E-6 : f32
    %301 = vector.broadcast %cst_100 : f32 to vector<16x1xf32>
    %302 = arith.addf %298, %301 : vector<16x1xf32>
    %303 = math.rsqrt %302 : vector<16x1xf32>
    %304 = vector.broadcast %303 : vector<16x1xf32> to vector<16x32xf32>
    %305 = arith.mulf %300, %304 : vector<16x32xf32>
    %306 = vector.broadcast %285 : vector<1x32xf32> to vector<16x32xf32>
    %307 = arith.mulf %305, %306 : vector<16x32xf32>
    %308 = vector.broadcast %287 : vector<1x32xf32> to vector<16x32xf32>
    %309 = arith.addf %307, %308 : vector<16x32xf32>
    %310 = arith.truncf %309 : vector<16x32xf32> to vector<16x32xbf16>
    %c1_101 = arith.constant 1 : index
    %c0_102 = arith.constant 0 : index
    %c0_103 = arith.constant 0 : index
    %311 = vector.load %arg8[%c1_101, %c0_102, %c0_103] : memref<2x32x128xbf16, #tpu.memory_space<vmem>>, vector<1x32x128xbf16>
    %312 = vector.shape_cast %311 : vector<1x32x128xbf16> to vector<32x128xbf16>
    %cst_104 = arith.constant dense<0.000000e+00> : vector<16x128xf32>
    %313 = tpu.matmul %310, %312, %cst_104 {dimension_numbers = #tpu.dot_dimension_numbers<[1], [0], [0], [1], [0, 0, 1, 1], [], []>} : vector<16x32xbf16>, vector<32x128xbf16>, vector<16x128xf32> -> vector<16x128xf32>
    %c1_105 = arith.constant 1 : index
    %c0_106 = arith.constant 0 : index
    %c0_107 = arith.constant 0 : index
    %314 = vector.load %arg9[%c1_105, %c0_106, %c0_107] : memref<2x1x128xf32, #tpu.memory_space<vmem>>, vector<1x1x128xf32>
    %315 = vector.shape_cast %314 : vector<1x1x128xf32> to vector<1x128xf32>
    %316 = vector.broadcast %315 : vector<1x128xf32> to vector<16x128xf32>
    %317 = arith.addf %313, %316 : vector<16x128xf32>
    %cst_108 = arith.constant 0.000000e+00 : f32
    %318 = vector.broadcast %cst_108 : f32 to vector<16x128xf32>
    %319 = arith.maximumf %317, %318 : vector<16x128xf32>
    %320 = arith.truncf %319 : vector<16x128xf32> to vector<16x128xbf16>
    %c1_109 = arith.constant 1 : index
    %c0_110 = arith.constant 0 : index
    %c0_111 = arith.constant 0 : index
    %321 = vector.load %arg10[%c1_109, %c0_110, %c0_111] : memref<2x128x32xbf16, #tpu.memory_space<vmem>>, vector<1x128x32xbf16>
    %322 = vector.shape_cast %321 : vector<1x128x32xbf16> to vector<128x32xbf16>
    %cst_112 = arith.constant dense<0.000000e+00> : vector<16x32xf32>
    %323 = tpu.matmul %320, %322, %cst_112 {dimension_numbers = #tpu.dot_dimension_numbers<[1], [0], [0], [1], [0, 0, 1, 1], [], []>} : vector<16x128xbf16>, vector<128x32xbf16>, vector<16x32xf32> -> vector<16x32xf32>
    %c1_113 = arith.constant 1 : index
    %c0_114 = arith.constant 0 : index
    %c0_115 = arith.constant 0 : index
    %324 = vector.load %arg11[%c1_113, %c0_114, %c0_115] : memref<2x1x32xf32, #tpu.memory_space<vmem>>, vector<1x1x32xf32>
    %325 = vector.shape_cast %324 : vector<1x1x32xf32> to vector<1x32xf32>
    %326 = vector.broadcast %325 : vector<1x32xf32> to vector<16x32xf32>
    %327 = arith.addf %323, %326 : vector<16x32xf32>
    %328 = arith.addf %327, %309 : vector<16x32xf32>
    %c1_116 = arith.constant 1 : index
    %c0_117 = arith.constant 0 : index
    %c0_118 = arith.constant 0 : index
    %329 = vector.load %arg12[%c1_116, %c0_117, %c0_118] : memref<2x1x32xf32, #tpu.memory_space<vmem>>, vector<1x1x32xf32>
    %330 = vector.shape_cast %329 : vector<1x1x32xf32> to vector<1x32xf32>
    %c1_119 = arith.constant 1 : index
    %c0_120 = arith.constant 0 : index
    %c0_121 = arith.constant 0 : index
    %331 = vector.load %arg13[%c1_119, %c0_120, %c0_121] : memref<2x1x32xf32, #tpu.memory_space<vmem>>, vector<1x1x32xf32>
    %332 = vector.shape_cast %331 : vector<1x1x32xf32> to vector<1x32xf32>
    %cst_122 = arith.constant dense<0.000000e+00> : vector<16xf32>
    %333 = vector.multi_reduction <add>, %328, %cst_122 [1] : vector<16x32xf32> to vector<16xf32>
    %334 = vector.shape_cast %333 : vector<16xf32> to vector<16x1xf32>
    %cst_123 = arith.constant 3.200000e+01 : f32
    %335 = vector.broadcast %cst_123 : f32 to vector<16x1xf32>
    %336 = arith.divf %334, %335 : vector<16x1xf32>
    %337 = vector.broadcast %336 : vector<16x1xf32> to vector<16x32xf32>
    %338 = arith.subf %328, %337 : vector<16x32xf32>
    %339 = arith.mulf %338, %338 : vector<16x32xf32>
    %cst_124 = arith.constant dense<0.000000e+00> : vector<16xf32>
    %340 = vector.multi_reduction <add>, %339, %cst_124 [1] : vector<16x32xf32> to vector<16xf32>
    %341 = vector.shape_cast %340 : vector<16xf32> to vector<16x1xf32>
    %cst_125 = arith.constant 3.200000e+01 : f32
    %342 = vector.broadcast %cst_125 : f32 to vector<16x1xf32>
    %343 = arith.divf %341, %342 : vector<16x1xf32>
    %344 = vector.broadcast %336 : vector<16x1xf32> to vector<16x32xf32>
    %345 = arith.subf %328, %344 : vector<16x32xf32>
    %cst_126 = arith.constant 9.99999974E-6 : f32
    %346 = vector.broadcast %cst_126 : f32 to vector<16x1xf32>
    %347 = arith.addf %343, %346 : vector<16x1xf32>
    %348 = math.rsqrt %347 : vector<16x1xf32>
    %349 = vector.broadcast %348 : vector<16x1xf32> to vector<16x32xf32>
    %350 = arith.mulf %345, %349 : vector<16x32xf32>
    %351 = vector.broadcast %330 : vector<1x32xf32> to vector<16x32xf32>
    %352 = arith.mulf %350, %351 : vector<16x32xf32>
    %353 = vector.broadcast %332 : vector<1x32xf32> to vector<16x32xf32>
    %354 = arith.addf %352, %353 : vector<16x32xf32>
    %c0_127 = arith.constant 0 : index
    %c0_128 = arith.constant 0 : index
    %355 = vector.load %arg2[%c0_127, %c0_128] : memref<2x16xf32, #tpu.memory_space<vmem>>, vector<2x16xf32>
    %cst_129 = arith.constant dense<0.000000e+00> : vector<2x32xf32>
    %356 = tpu.matmul %355, %354, %cst_129 {dimension_numbers = #tpu.dot_dimension_numbers<[1], [0], [0], [1], [0, 0, 1, 1], [], []>} : vector<2x16xf32>, vector<16x32xf32>, vector<2x32xf32> -> vector<2x32xf32>
    %357 = arith.truncf %356 : vector<2x32xf32> to vector<2x32xbf16>
    %c0_130 = arith.constant 0 : index
    %c0_131 = arith.constant 0 : index
    %358 = vector.load %arg14[%c0_130, %c0_131] : memref<32x4xbf16, #tpu.memory_space<vmem>>, vector<32x4xbf16>
    %cst_132 = arith.constant dense<0.000000e+00> : vector<2x4xf32>
    %359 = tpu.matmul %357, %358, %cst_132 {dimension_numbers = #tpu.dot_dimension_numbers<[1], [0], [0], [1], [0, 0, 1, 1], [], []>} : vector<2x32xbf16>, vector<32x4xbf16>, vector<2x4xf32> -> vector<2x4xf32>
    %c0_133 = arith.constant 0 : index
    %c0_134 = arith.constant 0 : index
    %360 = vector.load %arg15[%c0_133, %c0_134] : memref<1x4xf32, #tpu.memory_space<vmem>>, vector<1x4xf32>
    %361 = vector.broadcast %360 : vector<1x4xf32> to vector<2x4xf32>
    %362 = arith.addf %359, %361 : vector<2x4xf32>
    %cst_135 = arith.constant dense<0xFF800000> : vector<2xf32>
    %363 = vector.multi_reduction <maximumf>, %362, %cst_135 [1] : vector<2x4xf32> to vector<2xf32>
    %364 = vector.shape_cast %363 : vector<2xf32> to vector<2x1xf32>
    %365 = vector.broadcast %364 : vector<2x1xf32> to vector<2x4xf32>
    %366 = arith.subf %362, %365 : vector<2x4xf32>
    %367 = math.exp %366 : vector<2x4xf32>
    %cst_136 = arith.constant dense<0.000000e+00> : vector<2xf32>
    %368 = vector.multi_reduction <add>, %367, %cst_136 [1] : vector<2x4xf32> to vector<2xf32>
    %369 = vector.shape_cast %368 : vector<2xf32> to vector<2x1xf32>
    %370 = math.log %369 : vector<2x1xf32>
    %371 = arith.addf %364, %370 : vector<2x1xf32>
    %372 = vector.broadcast %371 : vector<2x1xf32> to vector<2x4xf32>
    %373 = arith.subf %362, %372 : vector<2x4xf32>
    %c0_137 = arith.constant 0 : index
    %c0_138 = arith.constant 0 : index
    %374 = vector.load %arg16[%c0_137, %c0_138] : memref<2x4xf32, #tpu.memory_space<vmem>>, vector<2x4xf32>
    tpu.vector_store %arg16[%c0_137, %c0_138], %373 {strides = array<i32>} : memref<2x4xf32, #tpu.memory_space<vmem>>, vector<2x4xf32>,
    return
  }
  func.func @transform_0(%arg0: i32) -> (i32, i32) {
    %c0_i32 = arith.constant 0 : i32
    %c0_i32_0 = arith.constant 0 : i32
    %c0_i32_1 = arith.constant 0 : i32
    return %c0_i32, %c0_i32_0 : i32, i32
  }
  func.func @transform_1(%arg0: i32) -> (i32, i32) {
    %c0_i32 = arith.constant 0 : i32
    %c0_i32_0 = arith.constant 0 : i32
    %c0_i32_1 = arith.constant 0 : i32
    return %c0_i32, %c0_i32_0 : i32, i32
  }
  func.func @transform_2(%arg0: i32) -> (i32, i32, i32) {
    %c0_i32 = arith.constant 0 : i32
    %c0_i32_0 = arith.constant 0 : i32
    %c0_i32_1 = arith.constant 0 : i32
    %c0_i32_2 = arith.constant 0 : i32
    return %c0_i32, %c0_i32_0, %c0_i32_1 : i32, i32, i32
  }
  func.func @transform_3(%arg0: i32) -> (i32, i32, i32) {
    %c0_i32 = arith.constant 0 : i32
    %c0_i32_0 = arith.constant 0 : i32
    %c0_i32_1 = arith.constant 0 : i32
    %c0_i32_2 = arith.constant 0 : i32
    return %c0_i32, %c0_i32_0, %c0_i32_1 : i32, i32, i32
  }
  func.func @transform_4(%arg0: i32) -> (i32, i32, i32) {
    %c0_i32 = arith.constant 0 : i32
    %c0_i32_0 = arith.constant 0 : i32
    %c0_i32_1 = arith.constant 0 : i32
    %c0_i32_2 = arith.constant 0 : i32
    return %c0_i32, %c0_i32_0, %c0_i32_1 : i32, i32, i32
  }
  func.func @transform_5(%arg0: i32) -> (i32, i32, i32) {
    %c0_i32 = arith.constant 0 : i32
    %c0_i32_0 = arith.constant 0 : i32
    %c0_i32_1 = arith.constant 0 : i32
    %c0_i32_2 = arith.constant 0 : i32
    return %c0_i32, %c0_i32_0, %c0_i32_1 : i32, i32, i32
  }
  func.func @transform_6(%arg0: i32) -> (i32, i32, i32) {
    %c0_i32 = arith.constant 0 : i32
    %c0_i32_0 = arith.constant 0 : i32
    %c0_i32_1 = arith.constant 0 : i32
    %c0_i32_2 = arith.constant 0 : i32
    return %c0_i32, %c0_i32_0, %c0_i32_1 : i32, i32, i32
  }
  func.func @transform_7(%arg0: i32) -> (i32, i32, i32) {
    %c0_i32 = arith.constant 0 : i32
    %c0_i32_0 = arith.constant 0 : i32
    %c0_i32_1 = arith.constant 0 : i32
    %c0_i32_2 = arith.constant 0 : i32
    return %c0_i32, %c0_i32_0, %c0_i32_1 : i32, i32, i32
  }
  func.func @transform_8(%arg0: i32) -> (i32, i32, i32) {
    %c0_i32 = arith.constant 0 : i32
    %c0_i32_0 = arith.constant 0 : i32
    %c0_i32_1 = arith.constant 0 : i32
    %c0_i32_2 = arith.constant 0 : i32
    return %c0_i32, %c0_i32_0, %c0_i32_1 : i32, i32, i32
  }
  func.func @transform_9(%arg0: i32) -> (i32, i32, i32) {
    %c0_i32 = arith.constant 0 : i32
    %c0_i32_0 = arith.constant 0 : i32
    %c0_i32_1 = arith.constant 0 : i32
    %c0_i32_2 = arith.constant 0 : i32
    return %c0_i32, %c0_i32_0, %c0_i32_1 : i32, i32, i32
  }
  func.func @transform_10(%arg0: i32) -> (i32, i32, i32) {
    %c0_i32 = arith.constant 0 : i32
    %c0_i32_0 = arith.constant 0 : i32
    %c0_i32_1 = arith.constant 0 : i32
    %c0_i32_2 = arith.constant 0 : i32
    return %c0_i32, %c0_i32_0, %c0_i32_1 : i32, i32, i32
  }
  func.func @transform_11(%arg0: i32) -> (i32, i32, i32) {
    %c0_i32 = arith.constant 0 : i32
    %c0_i32_0 = arith.constant 0 : i32
    %c0_i32_1 = arith.constant 0 : i32
    %c0_i32_2 = arith.constant 0 : i32
    return %c0_i32, %c0_i32_0, %c0_i32_1 : i32, i32, i32
  }
  func.func @transform_12(%arg0: i32) -> (i32, i32, i32) {
    %c0_i32 = arith.constant 0 : i32
    %c0_i32_0 = arith.constant 0 : i32
    %c0_i32_1 = arith.constant 0 : i32
    %c0_i32_2 = arith.constant 0 : i32
    return %c0_i32, %c0_i32_0, %c0_i32_1 : i32, i32, i32
  }
  func.func @transform_13(%arg0: i32) -> (i32, i32) {
    %c0_i32 = arith.constant 0 : i32
    %c0_i32_0 = arith.constant 0 : i32
    %c0_i32_1 = arith.constant 0 : i32
    return %c0_i32, %c0_i32_0 : i32, i32
  }
  func.func @transform_14(%arg0: i32) -> (i32, i32) {
    %c0_i32 = arith.constant 0 : i32
    %c0_i32_0 = arith.constant 0 : i32
    %c0_i32_1 = arith.constant 0 : i32
    return %c0_i32, %c0_i32_0 : i32, i32
  }
  func.func @transform_15(%arg0: i32) -> (i32, i32) {
    %c0_i32 = arith.constant 0 : i32
    %c0_i32_0 = arith.constant 0 : i32
    %c0_i32_1 = arith.constant 0 : i32
    return %c0_i32, %c0_i32_0 : i32, i32
  }
}

</mosaic_0001>

<llo_original>
// kernel: _lambda_.1
$region0: #{_lambda_.1}
  #allocation0 [shape = 'u32[]', space=smem, size = 0x4, offset = 0x4, fixed_abs, tag = 'smem constant byte address 0x4 - core index']
  #allocation1 [shape = 'u32[144,128]{1,0:T(1,128)}', space=vmem, size = 0x12000, scoped, tag = 'internal scratch']
  %s0 = inlined_call_operand.vmem [shape: f32[16,32], index: 0, kind: input, shape index: {}]
  %s1 = inlined_call_operand.vmem [shape: f32[2,16], index: 1, kind: input, shape index: {}]
  %s2 = inlined_call_operand.vmem [shape: bf16[2,32,384], index: 2, kind: input, shape index: {}]
  %s3 = inlined_call_operand.hbm [shape: bf16[2,128,32], index: 3, kind: input, shape index: {}]
  %s4 = inlined_call_operand.hbm [shape: f32[2,1,32], index: 4, kind: input, shape index: {}]
  %s5 = inlined_call_operand.vmem [shape: f32[2,1,32], index: 5, kind: input, shape index: {}, may-alias: {5,11}]
  %s6 = inlined_call_operand.vmem [shape: f32[2,1,32], index: 6, kind: input, shape index: {}, may-alias: {6,12}]
  %s7 = inlined_call_operand.hbm [shape: bf16[2,32,128], index: 7, kind: input, shape index: {}]
  %s8 = inlined_call_operand.hbm [shape: f32[2,1,128], index: 8, kind: input, shape index: {}]
  %s9 = inlined_call_operand.vmem [shape: bf16[2,128,32], index: 9, kind: input, shape index: {}]
  %s10 = inlined_call_operand.hbm [shape: f32[2,1,32], index: 10, kind: input, shape index: {}]
  %s11 = inlined_call_operand.vmem [shape: f32[2,1,32], index: 11, kind: input, shape index: {}, may-alias: {5,11}]
  %s12 = inlined_call_operand.vmem [shape: f32[2,1,32], index: 12, kind: input, shape index: {}, may-alias: {6,12}]
  %s13 = inlined_call_operand.vmem [shape: bf16[32,4], index: 13, kind: input, shape index: {}]
  %s14 = inlined_call_operand.hbm [shape: f32[1,4], index: 14, kind: input, shape index: {}]
  %s15 = inlined_call_operand.hbm [shape: f32[2,4], index: 15, kind: output, shape index: {}]
  %s16 = sld [smem:[#allocation0]]
  $region94: #{_lambda_.1} parent=0
    _
  %s18 = ssub.s32 1, %s16
  %s19 = scalar_select 0, %s18, %s16
  $region1: #{_lambda_.1} parent=0
    #allocation2 [shape = 'u8[65536]{0}', space=vmem, size = 0x10000, scoped, tag = 'input window, operand 3, single buffered']
    #allocation3 [shape = 's32[1]{0}', space=sflag, size = 0x4, scoped, tag = 'scoped memory for _lambda_.1']
    #allocation4 [shape = 's32[1]{0}', space=sflag, size = 0x4, scoped, tag = 'scoped memory for _lambda_.1']
    #allocation5 [shape = 'u8[1024]{0}', space=vmem, size = 0x400, scoped, tag = 'input window, operand 4, single buffered']
    #allocation6 [shape = 's32[1]{0}', space=sflag, size = 0x4, scoped, tag = 'scoped memory for _lambda_.1']
    #allocation7 [shape = 'u8[16384]{0}', space=vmem, size = 0x4000, scoped, tag = 'input window, operand 7, single buffered']
    #allocation8 [shape = 'u8[1024]{0}', space=vmem, size = 0x400, scoped, tag = 'input window, operand 8, single buffered']
    #allocation9 [shape = 's32[1]{0}', space=sflag, size = 0x4, scoped, tag = 'scoped memory for _lambda_.1']
    #allocation10 [shape = 'u8[1024]{0}', space=vmem, size = 0x400, scoped, tag = 'input window, operand 10, single buffered']
    #allocation11 [shape = 'u8[512]{0}', space=vmem, size = 0x400, scoped, tag = 'input window, operand 14, single buffered']
    #allocation12 [shape = 's32[1]{0}', space=sflag, size = 0x4, scoped, tag = 'scoped memory for _lambda_.1']
    #allocation13 [shape = 'u8[1024]{0}', space=vmem, size = 0x400, scoped, tag = 'output window, operand 0, single buffered']
    %20 = vsyncpa [#allocation3], 0
    %21 = vsyncpa [#allocation6], 0
    %22 = vsyncpa [#allocation9], 0
    %23 = vsyncpa [#allocation12], 0
    %24 = vsyncpa [#allocation4], 0
    // Predicated region
    $region2: #{_lambda_.1} parent=1 // pred_check
      _
    $region3: #{_lambda_.1} parent=1 // pred_check_branch
      %26 = sbr.rel (0) target = $region5
    $region4: #{_lambda_.1} parent=1 // pred_region
      _
    $region5: #{_lambda_.1} parent=1 // pred_fallthru
      _
    // Predicated region
    $region6: #{_lambda_.1} parent=1 // pred_check
      _
    $region7: #{_lambda_.1} parent=1 // pred_check_branch
      %28 = sbr.rel (0) target = $region9
    $region8: #{_lambda_.1} parent=1 // pred_region
      _
    $region9: #{_lambda_.1} parent=1 // pred_fallthru
      _
    // Predicated region
    $region10: #{_lambda_.1} parent=1 // pred_check
      _
    $region11: #{_lambda_.1} parent=1 // pred_check_branch
      %30 = sbr.rel (0) target = $region13
    $region12: #{_lambda_.1} parent=1 // pred_region
      _
    $region13: #{_lambda_.1} parent=1 // pred_fallthru
      _
    // Predicated region
    $region14: #{_lambda_.1} parent=1 // pred_check
      _
    $region15: #{_lambda_.1} parent=1 // pred_check_branch
      %32 = sbr.rel (0) target = $region17
    $region16: #{_lambda_.1} parent=1 // pred_region
      %s34 = ssub.s32 2048, 2048
      %35 = vsyncadd [#allocation3], %s34
      %s36 = sshll.u32 [#allocation2], 4
      %s37 = int_to_ptr.vmem [resolvable:$true] %s36
      %42 = dma.hbm_to_vmem [thread:$0]  %s3, 2048, %s37, [#allocation3], 64, 64, 4
    $region17: #{_lambda_.1} parent=1 // pred_fallthru
      _
    // Predicated region
    $region18: #{_lambda_.1} parent=1 // pred_check
      _
    $region19: #{_lambda_.1} parent=1 // pred_check_branch
      %44 = sbr.rel (0) target = $region21
    $region20: #{_lambda_.1} parent=1 // pred_region
      %s46 = ssub.s32 32, 32
      %47 = vsyncadd [#allocation6], %s46
      %s48 = sshll.u32 [#allocation5], 4
      %s49 = int_to_ptr.vmem [resolvable:$true] %s48
      %54 = dma.hbm_to_vmem [thread:$0]  %s4, 32, %s49, [#allocation6], 16, 16, 1
    $region21: #{_lambda_.1} parent=1 // pred_fallthru
      _
    // Predicated region
    $region22: #{_lambda_.1} parent=1 // pred_check
      _
    $region23: #{_lambda_.1} parent=1 // pred_check_branch
      %56 = sbr.rel (0) target = $region25
    $region24: #{_lambda_.1} parent=1 // pred_region
      _
    $region25: #{_lambda_.1} parent=1 // pred_fallthru
      _
    // Predicated region
    $region26: #{_lambda_.1} parent=1 // pred_check
      _
    $region27: #{_lambda_.1} parent=1 // pred_check_branch
      %58 = sbr.rel (0) target = $region29
    $region28: #{_lambda_.1} parent=1 // pred_region
      _
    $region29: #{_lambda_.1} parent=1 // pred_fallthru
      _
    // Predicated region
    $region30: #{_lambda_.1} parent=1 // pred_check
      _
    $region31: #{_lambda_.1} parent=1 // pred_check_branch
      %60 = sbr.rel (0) target = $region33
    $region32: #{_lambda_.1} parent=1 // pred_region
      %s62 = ssub.s32 512, 512
      %63 = vsyncadd [#allocation6], %s62
      %s64 = sshll.u32 [#allocation7], 4
      %s65 = int_to_ptr.vmem [resolvable:$true] %s64
      %70 = dma.hbm_to_vmem [thread:$0]  %s7, 512, %s65, [#allocation6], 64, 64, 4
    $region33: #{_lambda_.1} parent=1 // pred_fallthru
      _
    // Predicated region
    $region34: #{_lambda_.1} parent=1 // pred_check
      _
    $region35: #{_lambda_.1} parent=1 // pred_check_branch
      %72 = sbr.rel (0) target = $region37
    $region36: #{_lambda_.1} parent=1 // pred_region
      %s74 = ssub.s32 32, 32
      %75 = vsyncadd [#allocation9], %s74
      %s76 = sshll.u32 [#allocation8], 4
      %s77 = int_to_ptr.vmem [resolvable:$true] %s76
      %82 = dma.hbm_to_vmem [thread:$0]  %s8, 32, %s77, [#allocation9], 16, 16, 1
    $region37: #{_lambda_.1} parent=1 // pred_fallthru
      _
    // Predicated region
    $region38: #{_lambda_.1} parent=1 // pred_check
      _
    $region39: #{_lambda_.1} parent=1 // pred_check_branch
      %84 = sbr.rel (0) target = $region41
    $region40: #{_lambda_.1} parent=1 // pred_region
      _
    $region41: #{_lambda_.1} parent=1 // pred_fallthru
      _
    // Predicated region
    $region42: #{_lambda_.1} parent=1 // pred_check
      _
    $region43: #{_lambda_.1} parent=1 // pred_check_branch
      %86 = sbr.rel (0) target = $region45
    $region44: #{_lambda_.1} parent=1 // pred_region
      %s88 = ssub.s32 32, 32
      %89 = vsyncadd [#allocation9], %s88
      %s90 = sshll.u32 [#allocation10], 4
      %s91 = int_to_ptr.vmem [resolvable:$true] %s90
      %96 = dma.hbm_to_vmem [thread:$0]  %s10, 32, %s91, [#allocation9], 16, 16, 1
    $region45: #{_lambda_.1} parent=1 // pred_fallthru
      _
    // Predicated region
    $region46: #{_lambda_.1} parent=1 // pred_check
      _
    $region47: #{_lambda_.1} parent=1 // pred_check_branch
      %98 = sbr.rel (0) target = $region49
    $region48: #{_lambda_.1} parent=1 // pred_region
      _
    $region49: #{_lambda_.1} parent=1 // pred_fallthru
      _
    // Predicated region
    $region50: #{_lambda_.1} parent=1 // pred_check
      _
    $region51: #{_lambda_.1} parent=1 // pred_check_branch
      %100 = sbr.rel (0) target = $region53
    $region52: #{_lambda_.1} parent=1 // pred_region
      _
    $region53: #{_lambda_.1} parent=1 // pred_fallthru
      _
    // Predicated region
    $region54: #{_lambda_.1} parent=1 // pred_check
      _
    $region55: #{_lambda_.1} parent=1 // pred_check_branch
      %102 = sbr.rel (0) target = $region57
    $region56: #{_lambda_.1} parent=1 // pred_region
      _
    $region57: #{_lambda_.1} parent=1 // pred_fallthru
      _
    // Predicated region
    $region58: #{_lambda_.1} parent=1 // pred_check
      _
    $region59: #{_lambda_.1} parent=1 // pred_check_branch
      %104 = sbr.rel (0) target = $region61
    $region60: #{_lambda_.1} parent=1 // pred_region
      %s106 = ssub.s32 16, 16
      %107 = vsyncadd [#allocation12], %s106
      %s109 = sshll.u32 [#allocation11], 4
      %s110 = int_to_ptr.vmem [resolvable:$true] %s109
      %112 = dma.hbm_to_vmem [thread:$0]  %s14, 16, %s110, [#allocation12]
    $region61: #{_lambda_.1} parent=1 // pred_fallthru
      _
    // Predicated region
    $region62: #{_lambda_.1} parent=1 // pred_check
      _
    $region63: #{_lambda_.1} parent=1 // pred_check_branch
      %114 = sbr.rel (0) target = $region65
    $region64: #{_lambda_.1} parent=1 // pred_region
      %115 = dma.done [#allocation3], 2048
    $region65: #{_lambda_.1} parent=1 // pred_fallthru
      _
    // Predicated region
    $region66: #{_lambda_.1} parent=1 // pred_check
      _
    $region67: #{_lambda_.1} parent=1 // pred_check_branch
      %117 = sbr.rel (0) target = $region69
    $region68: #{_lambda_.1} parent=1 // pred_region
      %118 = dma.done [#allocation6], 32
    $region69: #{_lambda_.1} parent=1 // pred_fallthru
      _
    // Predicated region
    $region70: #{_lambda_.1} parent=1 // pred_check
      _
    $region71: #{_lambda_.1} parent=1 // pred_check_branch
      %120 = sbr.rel (0) target = $region73
    $region72: #{_lambda_.1} parent=1 // pred_region
      %121 = dma.done [#allocation6], 512
    $region73: #{_lambda_.1} parent=1 // pred_fallthru
      _
    // Predicated region
    $region74: #{_lambda_.1} parent=1 // pred_check
      _
    $region75: #{_lambda_.1} parent=1 // pred_check_branch
      %123 = sbr.rel (0) target = $region77
    $region76: #{_lambda_.1} parent=1 // pred_region
      %124 = dma.done [#allocation9], 32
    $region77: #{_lambda_.1} parent=1 // pred_fallthru
      _
    // Predicated region
    $region78: #{_lambda_.1} parent=1 // pred_check
      _
    $region79: #{_lambda_.1} parent=1 // pred_check_branch
      %126 = sbr.rel (0) target = $region81
    $region80: #{_lambda_.1} parent=1 // pred_region
      %127 = dma.done [#allocation9], 32
    $region81: #{_lambda_.1} parent=1 // pred_fallthru
      _
    // Predicated region
    $region82: #{_lambda_.1} parent=1 // pred_check
      _
    $region83: #{_lambda_.1} parent=1 // pred_check_branch
      %129 = sbr.rel (0) target = $region85
    $region84: #{_lambda_.1} parent=1 // pred_region
      %130 = dma.done [#allocation12], 16
    $region85: #{_lambda_.1} parent=1 // pred_fallthru
      _
    %v132 = vld [vmem:[%s0] sm:$0xff]
    %v133 = vld [vmem:[%s0 + $0x8] sm:$0xff]
    %v134 = vpack.c.bf16 %v133, %v132
    %v135 = vld [vmem:[%s2] sm:$0xff]
    %v136 = vld [vmem:[%s2 + $0x8] sm:$0xf]
    %v137 = vld [vmem:[%s2 + $0xc] sm:$0xff]
    %v138 = vld [vmem:[%s2 + $0x14] sm:$0xf]
    %v139 = vld [vmem:[%s2 + $0x18] sm:$0xff]
    %v140 = vld [vmem:[%s2 + $0x20] sm:$0xf]
    %v141 = vld [vmem:[%s2 + $0x24] sm:$0xff]
    %v142 = vld [vmem:[%s2 + $0x2c] sm:$0xf]
    %v151 = vunpack.c.l.b16 %v135
    %v152 = vunpack.c.h.b16 %v135
    %v153 = vunpack.c.l.b16 %v136
    %v154 = vunpack.c.l.b16 %v137
    %v155 = vunpack.c.h.b16 %v137
    %v156 = vunpack.c.l.b16 %v138
    %v157 = vunpack.c.l.b16 %v139
    %v158 = vunpack.c.h.b16 %v139
    %v159 = vunpack.c.l.b16 %v140
    %v160 = vunpack.c.l.b16 %v141
    %v161 = vunpack.c.h.b16 %v141
    %v162 = vunpack.c.l.b16 %v142
    %v163 = vpack.c.b16 %v154, %v151
    %v164 = vpack.c.b16 %v155, %v152
    %v165 = vpack.c.b16 %v156, %v153
    %v166 = vpack.c.b16 %v160, %v157
    %v167 = vpack.c.b16 %v161, %v158
    %v168 = vpack.c.b16 %v162, %v159
    %vm175 = vcmask 261120
    %v177 = vsel %vm175, %v134, 0
    %179 = vmatprep.subr.bf16.mxu0 0
    %180 = vmatpush1.bf16.msra.mxu0 0
    %181 = vmatprep.subr.bf16.mxu0 0
    %182 = vmatpush1.bf16.msra.mxu0 0
    %183 = vmatprep.subr.bf16.mxu0 0
    %184 = vmatpush1.bf16.msra.mxu0 0
    %185 = vmatprep.subr.bf16.mxu0 0
    %186 = vmatpush1.bf16.msra.mxu0 0
    %187 = vmatprep.subr.bf16.mxu0 0
    %188 = vmatpush1.bf16.msra.mxu0 0
    %189 = vmatprep.subr.bf16.mxu0 0
    %190 = vmatpush1.bf16.msra.mxu0 0
    %191 = vmatprep.subr.bf16.mxu0 %v167
    %192 = vmatpush1.bf16.msra.mxu0 %v166
    %193 = vmatprep.subr.bf16.mxu0 %v164
    %194 = vmatpush1.bf16.msra.mxu0 %v163
    %195 = vmatprep.subr.bf16.mxu0 0
    %196 = vmatpush2.bf16.msra.mxu0 0
    %197 = vmatprep.subr.bf16.mxu0 0
    %198 = vmatpush2.bf16.msra.mxu0 0
    %199 = vmatprep.subr.bf16.mxu0 0
    %200 = vmatpush2.bf16.msra.mxu0 0
    %201 = vmatprep.subr.bf16.mxu0 0
    %202 = vmatpush2.bf16.msra.mxu0 0
    %203 = vmatprep.subr.bf16.mxu0 0
    %204 = vmatpush2.bf16.msra.mxu0 0
    %205 = vmatprep.subr.bf16.mxu0 0
    %206 = vmatpush2.bf16.msra.mxu0 0
    %207 = vmatprep.subr.bf16.mxu0 0
    %208 = vmatpush2.bf16.msra.mxu0 0
    %209 = vmatprep.subr.bf16.mxu0 0
    %210 = vmatpush2.bf16.msra.mxu0 0
    %211 = vmatprep.mubr.bf16.mxu0 0
    %212 = vmatmul.mubr.bf16.gmra.mxu0 %v177
    %v213 = vpop.f32.mrf.mxu0
    %v214 = vadd.f32 0.0, %v213
    %v215 = vpop.f32.mrf.mxu0
    %v216 = vadd.f32 0.0, %v215
    %v217 = vpop.f32.mrf.mxu0
    %v218 = vadd.f32 0.0, %v217
    %v219 = vpop.f32.mrf.mxu0
    %v220 = vadd.f32 0.0, %v219
    %221 = vdwg.mxu0
    %222 = vmatprep.subr.bf16.mxu0 0
    %223 = vmatpush1.bf16.msra.mxu0 0
    %224 = vmatprep.subr.bf16.mxu0 0
    %225 = vmatpush1.bf16.msra.mxu0 0
    %226 = vmatprep.subr.bf16.mxu0 0
    %227 = vmatpush1.bf16.msra.mxu0 0
    %228 = vmatprep.subr.bf16.mxu0 0
    %229 = vmatpush1.bf16.msra.mxu0 0
    %230 = vmatprep.subr.bf16.mxu0 0
    %231 = vmatpush1.bf16.msra.mxu0 0
    %232 = vmatprep.subr.bf16.mxu0 0
    %233 = vmatpush1.bf16.msra.mxu0 0
    %234 = vmatprep.subr.bf16.mxu0 0
    %235 = vmatpush1.bf16.msra.mxu0 %v168
    %236 = vmatprep.subr.bf16.mxu0 0
    %237 = vmatpush1.bf16.msra.mxu0 %v165
    %238 = vmatprep.subr.bf16.mxu0 0
    %239 = vmatpush2.bf16.msra.mxu0 0
    %240 = vmatprep.subr.bf16.mxu0 0
    %241 = vmatpush2.bf16.msra.mxu0 0
    %242 = vmatprep.subr.bf16.mxu0 0
    %243 = vmatpush2.bf16.msra.mxu0 0
    %244 = vmatprep.subr.bf16.mxu0 0
    %245 = vmatpush2.bf16.msra.mxu0 0
    %246 = vmatprep.subr.bf16.mxu0 0
    %247 = vmatpush2.bf16.msra.mxu0 0
    %248 = vmatprep.subr.bf16.mxu0 0
    %249 = vmatpush2.bf16.msra.mxu0 0
    %250 = vmatprep.subr.bf16.mxu0 0
    %251 = vmatpush2.bf16.msra.mxu0 0
    %252 = vmatprep.subr.bf16.mxu0 0
    %253 = vmatpush2.bf16.msra.mxu0 0
    %254 = vmatprep.mubr.bf16.mxu0 0
    %255 = vmatmul.mubr.bf16.gmra.mxu0 %v177
    %v256 = vpop.f32.mrf.mxu0
    %v257 = vadd.f32 0.0, %v256
    %v258 = vpop.f32.mrf.mxu0
    %v259 = vpop.f32.mrf.mxu0
    %v260 = vadd.f32 0.0, %v259
    %v261 = vpop.f32.mrf.mxu0
    %262 = vdwg.mxu0
    %v263 = vpack.c.bf16 %v214, %v214
    %v264 = vpack.c.bf16 %v218, %v218
    %v265 = vpack.c.bf16 %v216, %v216
    %v266 = vpack.c.bf16 %v220, %v220
    %v267 = vpack.c.bf16 %v257, %v257
    %v268 = vpack.c.bf16 %v260, %v260
    %v270 = vsel %vm175, %v263, 0
    %v273 = vsel %vm175, %v265, 0
    %275 = vmatprep.subr.bf16.mxu0 0
    %276 = vmatpush1.bf16.xpose.msra.mxu0 0
    %277 = vmatprep.subr.bf16.mxu0 0
    %278 = vmatpush1.bf16.xpose.msra.mxu0 0
    %279 = vmatprep.subr.bf16.mxu0 0
    %280 = vmatpush1.bf16.xpose.msra.mxu0 0
    %281 = vmatprep.subr.bf16.mxu0 0
    %282 = vmatpush1.bf16.xpose.msra.mxu0 0
    %283 = vmatprep.subr.bf16.mxu0 0
    %284 = vmatpush1.bf16.xpose.msra.mxu0 0
    %285 = vmatprep.subr.bf16.mxu0 0
    %286 = vmatpush1.bf16.xpose.msra.mxu0 0
    %287 = vmatprep.subr.bf16.mxu0 0
    %288 = vmatpush1.bf16.xpose.msra.mxu0 0
    %289 = vmatprep.subr.bf16.mxu0 0
    %290 = vmatpush1.bf16.xpose.msra.mxu0 %v273
    %291 = vmatprep.subr.bf16.mxu0 0
    %292 = vmatpush2.bf16.xpose.msra.mxu0 0
    %293 = vmatprep.subr.bf16.mxu0 0
    %294 = vmatpush2.bf16.xpose.msra.mxu0 0
    %295 = vmatprep.subr.bf16.mxu0 0
    %296 = vmatpush2.bf16.xpose.msra.mxu0 0
    %297 = vmatprep.subr.bf16.mxu0 0
    %298 = vmatpush2.bf16.xpose.msra.mxu0 0
    %299 = vmatprep.subr.bf16.mxu0 0
    %300 = vmatpush2.bf16.xpose.msra.mxu0 0
    %301 = vmatprep.subr.bf16.mxu0 0
    %302 = vmatpush2.bf16.xpose.msra.mxu0 0
    %303 = vmatprep.subr.bf16.mxu0 0
    %304 = vmatpush2.bf16.xpose.msra.mxu0 0
    %305 = vmatprep.subr.bf16.mxu0 0
    %306 = vmatpush2.bf16.xpose.msra.mxu0 0
    %307 = vmatprep.mubr.bf16.mxu0 0
    %308 = vmatmul.mubr.bf16.gmra.mxu0 %v270
    %v309 = vpop.f32.mrf.mxu0
    %v310 = vadd.f32 0.0, %v309
    %v311 = vpop.f32.mrf.mxu0
    %v312 = vpop.f32.mrf.mxu0
    %v313 = vpop.f32.mrf.mxu0
    %314 = vdwg.mxu0
    %v316 = vsel %vm175, %v264, 0
    %v319 = vsel %vm175, %v266, 0
    %321 = vmatprep.subr.bf16.mxu0 0
    %322 = vmatpush1.bf16.xpose.msra.mxu0 0
    %323 = vmatprep.subr.bf16.mxu0 0
    %324 = vmatpush1.bf16.xpose.msra.mxu0 0
    %325 = vmatprep.subr.bf16.mxu0 0
    %326 = vmatpush1.bf16.xpose.msra.mxu0 0
    %327 = vmatprep.subr.bf16.mxu0 0
    %328 = vmatpush1.bf16.xpose.msra.mxu0 0
    %329 = vmatprep.subr.bf16.mxu0 0
    %330 = vmatpush1.bf16.xpose.msra.mxu0 0
    %331 = vmatprep.subr.bf16.mxu0 0
    %332 = vmatpush1.bf16.xpose.msra.mxu0 0
    %333 = vmatprep.subr.bf16.mxu0 0
    %334 = vmatpush1.bf16.xpose.msra.mxu0 0
    %335 = vmatprep.subr.bf16.mxu0 0
    %336 = vmatpush1.bf16.xpose.msra.mxu0 %v319
    %337 = vmatprep.subr.bf16.mxu0 0
    %338 = vmatpush2.bf16.xpose.msra.mxu0 0
    %339 = vmatprep.subr.bf16.mxu0 0
    %340 = vmatpush2.bf16.xpose.msra.mxu0 0
    %341 = vmatprep.subr.bf16.mxu0 0
    %342 = vmatpush2.bf16.xpose.msra.mxu0 0
    %343 = vmatprep.subr.bf16.mxu0 0
    %344 = vmatpush2.bf16.xpose.msra.mxu0 0
    %345 = vmatprep.subr.bf16.mxu0 0
    %346 = vmatpush2.bf16.xpose.msra.mxu0 0
    %347 = vmatprep.subr.bf16.mxu0 0
    %348 = vmatpush2.bf16.xpose.msra.mxu0 0
    %349 = vmatprep.subr.bf16.mxu0 0
    %350 = vmatpush2.bf16.xpose.msra.mxu0 0
    %351 = vmatprep.subr.bf16.mxu0 0
    %352 = vmatpush2.bf16.xpose.msra.mxu0 0
    %353 = vmatprep.mubr.bf16.mxu0 0
    %354 = vmatmul.mubr.bf16.gmra.mxu0 %v316
    %v355 = vpop.f32.mrf.mxu0
    %v356 = vadd.f32 0.0, %v355
    %v357 = vpop.f32.mrf.mxu0
    %v358 = vpop.f32.mrf.mxu0
    %v359 = vpop.f32.mrf.mxu0
    %360 = vdwg.mxu0
    %vm361 = vcmask 64512
    %v362 = vsel %vm361, %v310, -inf
    %363 = vmax.xlane.f32.xlu0 %v362
    %v364 = vpop.xlane.xlu0 %363
    %v365 = vsel %vm361, %v356, -inf
    %366 = vmax.xlane.f32.xlu0 %v365
    %v367 = vpop.xlane.xlu0 %366
    %v368 = vsub.f32 %v310, %v364
    %v369 = vsub.f32 %v356, %v367
    %v370 = vmul.f32 %v368, 1.442695
    %v371 = vpow.pop %v370
    %v372 = vmul.f32 %v369, 1.442695
    %v373 = vpow.pop %v372
    %v374 = vsel %vm361, %v371, 0.0
    %375 = vadd.xlane.f32.xlu0 %v374
    %v376 = vpop.xlane.xlu0 %375
    %v377 = vsel %vm361, %v373, 0.0
    %378 = vadd.xlane.f32.xlu0 %v377
    %v379 = vpop.xlane.xlu0 %378
    %v380 = vrcp.pop %v376
    %v381 = vrcp.pop %v379
    %v382 = vmul.f32 %v371, %v380
    %v383 = vmul.f32 %v373, %v381
    %v384 = vpack.c.bf16 %v382, %v382
    %v385 = vpack.c.bf16 %v383, %v383
    %v387 = vsel %vm361, %v384, 0
    %vm389 = vcmask 1043456
    %v391 = vsel %vm389, %v267, 0
    %393 = vmatprep.subr.bf16.mxu0 0
    %394 = vmatpush1.bf16.msra.mxu0 0
    %395 = vmatprep.subr.bf16.mxu0 0
    %396 = vmatpush1.bf16.msra.mxu0 0
    %397 = vmatprep.subr.bf16.mxu0 0
    %398 = vmatpush1.bf16.msra.mxu0 0
    %399 = vmatprep.subr.bf16.mxu0 0
    %400 = vmatpush1.bf16.msra.mxu0 0
    %401 = vmatprep.subr.bf16.mxu0 0
    %402 = vmatpush1.bf16.msra.mxu0 0
    %403 = vmatprep.subr.bf16.mxu0 0
    %404 = vmatpush1.bf16.msra.mxu0 0
    %405 = vmatprep.subr.bf16.mxu0 0
    %406 = vmatpush1.bf16.msra.mxu0 0
    %407 = vmatprep.subr.bf16.mxu0 0
    %408 = vmatpush1.bf16.msra.mxu0 %v391
    %409 = vmatprep.subr.bf16.mxu0 0
    %410 = vmatpush2.bf16.msra.mxu0 0
    %411 = vmatprep.subr.bf16.mxu0 0
    %412 = vmatpush2.bf16.msra.mxu0 0
    %413 = vmatprep.subr.bf16.mxu0 0
    %414 = vmatpush2.bf16.msra.mxu0 0
    %415 = vmatprep.subr.bf16.mxu0 0
    %416 = vmatpush2.bf16.msra.mxu0 0
    %417 = vmatprep.subr.bf16.mxu0 0
    %418 = vmatpush2.bf16.msra.mxu0 0
    %419 = vmatprep.subr.bf16.mxu0 0
    %420 = vmatpush2.bf16.msra.mxu0 0
    %421 = vmatprep.subr.bf16.mxu0 0
    %422 = vmatpush2.bf16.msra.mxu0 0
    %423 = vmatprep.subr.bf16.mxu0 0
    %424 = vmatpush2.bf16.msra.mxu0 0
    %425 = vmatprep.mubr.bf16.mxu0 0
    %426 = vmatmul.mubr.bf16.gmra.mxu0 %v387
    %v427 = vpop.f32.mrf.mxu0
    %v428 = vadd.f32 0.0, %v427
    %v429 = vpop.f32.mrf.mxu0
    %v430 = vpop.f32.mrf.mxu0
    %v431 = vpop.f32.mrf.mxu0
    %432 = vdwg.mxu0
    %v434 = vsel %vm361, %v385, 0
    %v437 = vsel %vm389, %v268, 0
    %439 = vmatprep.subr.bf16.mxu0 0
    %440 = vmatpush1.bf16.msra.mxu0 0
    %441 = vmatprep.subr.bf16.mxu0 0
    %442 = vmatpush1.bf16.msra.mxu0 0
    %443 = vmatprep.subr.bf16.mxu0 0
    %444 = vmatpush1.bf16.msra.mxu0 0
    %445 = vmatprep.subr.bf16.mxu0 0
    %446 = vmatpush1.bf16.msra.mxu0 0
    %447 = vmatprep.subr.bf16.mxu0 0
    %448 = vmatpush1.bf16.msra.mxu0 0
    %449 = vmatprep.subr.bf16.mxu0 0
    %450 = vmatpush1.bf16.msra.mxu0 0
    %451 = vmatprep.subr.bf16.mxu0 0
    %452 = vmatpush1.bf16.msra.mxu0 0
    %453 = vmatprep.subr.bf16.mxu0 0
    %454 = vmatpush1.bf16.msra.mxu0 %v437
    %455 = vmatprep.subr.bf16.mxu0 0
    %456 = vmatpush2.bf16.msra.mxu0 0
    %457 = vmatprep.subr.bf16.mxu0 0
    %458 = vmatpush2.bf16.msra.mxu0 0
    %459 = vmatprep.subr.bf16.mxu0 0
    %460 = vmatpush2.bf16.msra.mxu0 0
    %461 = vmatprep.subr.bf16.mxu0 0
    %462 = vmatpush2.bf16.msra.mxu0 0
    %463 = vmatprep.subr.bf16.mxu0 0
    %464 = vmatpush2.bf16.msra.mxu0 0
    %465 = vmatprep.subr.bf16.mxu0 0
    %466 = vmatpush2.bf16.msra.mxu0 0
    %467 = vmatprep.subr.bf16.mxu0 0
    %468 = vmatpush2.bf16.msra.mxu0 0
    %469 = vmatprep.subr.bf16.mxu0 0
    %470 = vmatpush2.bf16.msra.mxu0 0
    %471 = vmatprep.mubr.bf16.mxu0 0
    %472 = vmatmul.mubr.bf16.gmra.mxu0 %v434
    %v473 = vpop.f32.mrf.mxu0
    %v474 = vadd.f32 0.0, %v473
    %v475 = vpop.f32.mrf.mxu0
    %v476 = vpop.f32.mrf.mxu0
    %v477 = vpop.f32.mrf.mxu0
    %478 = vdwg.mxu0
    %480 = vrot.lane.b32.xlu0 %v263, 96
    %v481 = vpop.permute.xlu0 %480
    %483 = vrot.lane.b32.xlu0 %v265, 96
    %v484 = vpop.permute.xlu0 %483
    %v486 = vsel %vm175, %v481, 0
    %v489 = vsel %vm175, %v484, 0
    %491 = vmatprep.subr.bf16.mxu0 0
    %492 = vmatpush1.bf16.xpose.msra.mxu0 0
    %493 = vmatprep.subr.bf16.mxu0 0
    %494 = vmatpush1.bf16.xpose.msra.mxu0 0
    %495 = vmatprep.subr.bf16.mxu0 0
    %496 = vmatpush1.bf16.xpose.msra.mxu0 0
    %497 = vmatprep.subr.bf16.mxu0 0
    %498 = vmatpush1.bf16.xpose.msra.mxu0 0
    %499 = vmatprep.subr.bf16.mxu0 0
    %500 = vmatpush1.bf16.xpose.msra.mxu0 0
    %501 = vmatprep.subr.bf16.mxu0 0
    %502 = vmatpush1.bf16.xpose.msra.mxu0 0
    %503 = vmatprep.subr.bf16.mxu0 0
    %504 = vmatpush1.bf16.xpose.msra.mxu0 0
    %505 = vmatprep.subr.bf16.mxu0 0
    %506 = vmatpush1.bf16.xpose.msra.mxu0 %v489
    %507 = vmatprep.subr.bf16.mxu0 0
    %508 = vmatpush2.bf16.xpose.msra.mxu0 0
    %509 = vmatprep.subr.bf16.mxu0 0
    %510 = vmatpush2.bf16.xpose.msra.mxu0 0
    %511 = vmatprep.subr.bf16.mxu0 0
    %512 = vmatpush2.bf16.xpose.msra.mxu0 0
    %513 = vmatprep.subr.bf16.mxu0 0
    %514 = vmatpush2.bf16.xpose.msra.mxu0 0
    %515 = vmatprep.subr.bf16.mxu0 0
    %516 = vmatpush2.bf16.xpose.msra.mxu0 0
    %517 = vmatprep.subr.bf16.mxu0 0
    %518 = vmatpush2.bf16.xpose.msra.mxu0 0
    %519 = vmatprep.subr.bf16.mxu0 0
    %520 = vmatpush2.bf16.xpose.msra.mxu0 0
    %521 = vmatprep.subr.bf16.mxu0 0
    %522 = vmatpush2.bf16.xpose.msra.mxu0 0
    %523 = vmatprep.mubr.bf16.mxu0 0
    %524 = vmatmul.mubr.bf16.gmra.mxu0 %v486
    %v525 = vpop.f32.mrf.mxu0
    %v526 = vadd.f32 0.0, %v525
    %v527 = vpop.f32.mrf.mxu0
    %v528 = vpop.f32.mrf.mxu0
    %v529 = vpop.f32.mrf.mxu0
    %530 = vdwg.mxu0
    %532 = vrot.lane.b32.xlu0 %v264, 96
    %v533 = vpop.permute.xlu0 %532
    %535 = vrot.lane.b32.xlu0 %v266, 96
    %v536 = vpop.permute.xlu0 %535
    %v538 = vsel %vm175, %v533, 0
    %v541 = vsel %vm175, %v536, 0
    %543 = vmatprep.subr.bf16.mxu0 0
    %544 = vmatpush1.bf16.xpose.msra.mxu0 0
    %545 = vmatprep.subr.bf16.mxu0 0
    %546 = vmatpush1.bf16.xpose.msra.mxu0 0
    %547 = vmatprep.subr.bf16.mxu0 0
    %548 = vmatpush1.bf16.xpose.msra.mxu0 0
    %549 = vmatprep.subr.bf16.mxu0 0
    %550 = vmatpush1.bf16.xpose.msra.mxu0 0
    %551 = vmatprep.subr.bf16.mxu0 0
    %552 = vmatpush1.bf16.xpose.msra.mxu0 0
    %553 = vmatprep.subr.bf16.mxu0 0
    %554 = vmatpush1.bf16.xpose.msra.mxu0 0
    %555 = vmatprep.subr.bf16.mxu0 0
    %556 = vmatpush1.bf16.xpose.msra.mxu0 0
    %557 = vmatprep.subr.bf16.mxu0 0
    %558 = vmatpush1.bf16.xpose.msra.mxu0 %v541
    %559 = vmatprep.subr.bf16.mxu0 0
    %560 = vmatpush2.bf16.xpose.msra.mxu0 0
    %561 = vmatprep.subr.bf16.mxu0 0
    %562 = vmatpush2.bf16.xpose.msra.mxu0 0
    %563 = vmatprep.subr.bf16.mxu0 0
    %564 = vmatpush2.bf16.xpose.msra.mxu0 0
    %565 = vmatprep.subr.bf16.mxu0 0
    %566 = vmatpush2.bf16.xpose.msra.mxu0 0
    %567 = vmatprep.subr.bf16.mxu0 0
    %568 = vmatpush2.bf16.xpose.msra.mxu0 0
    %569 = vmatprep.subr.bf16.mxu0 0
    %570 = vmatpush2.bf16.xpose.msra.mxu0 0
    %571 = vmatprep.subr.bf16.mxu0 0
    %572 = vmatpush2.bf16.xpose.msra.mxu0 0
    %573 = vmatprep.subr.bf16.mxu0 0
    %574 = vmatpush2.bf16.xpose.msra.mxu0 0
    %575 = vmatprep.mubr.bf16.mxu0 0
    %576 = vmatmul.mubr.bf16.gmra.mxu0 %v538
    %v577 = vpop.f32.mrf.mxu0
    %v578 = vadd.f32 0.0, %v577
    %v579 = vpop.f32.mrf.mxu0
    %v580 = vpop.f32.mrf.mxu0
    %v581 = vpop.f32.mrf.mxu0
    %582 = vdwg.mxu0
    %v583 = vsel %vm361, %v526, -inf
    %584 = vmax.xlane.f32.xlu0 %v583
    %v585 = vpop.xlane.xlu0 %584
    %v586 = vsel %vm361, %v578, -inf
    %587 = vmax.xlane.f32.xlu0 %v586
    %v588 = vpop.xlane.xlu0 %587
    %v589 = vsub.f32 %v526, %v585
    %v590 = vsub.f32 %v578, %v588
    %v591 = vmul.f32 %v589, 1.442695
    %v592 = vpow.pop %v591
    %v593 = vmul.f32 %v590, 1.442695
    %v594 = vpow.pop %v593
    %v595 = vsel %vm361, %v592, 0.0
    %596 = vadd.xlane.f32.xlu0 %v595
    %v597 = vpop.xlane.xlu0 %596
    %v598 = vsel %vm361, %v594, 0.0
    %599 = vadd.xlane.f32.xlu0 %v598
    %v600 = vpop.xlane.xlu0 %599
    %v601 = vrcp.pop %v597
    %v602 = vrcp.pop %v600
    %v603 = vmul.f32 %v592, %v601
    %v604 = vmul.f32 %v594, %v602
    %v605 = vpack.c.bf16 %v603, %v603
    %v606 = vpack.c.bf16 %v604, %v604
    %608 = vrot.lane.b32.xlu0 %v267, 96
    %v609 = vpop.permute.xlu0 %608
    %v611 = vsel %vm361, %v605, 0
    %v614 = vsel %vm389, %v609, 0
    %616 = vmatprep.subr.bf16.mxu0 0
    %617 = vmatpush1.bf16.msra.mxu0 0
    %618 = vmatprep.subr.bf16.mxu0 0
    %619 = vmatpush1.bf16.msra.mxu0 0
    %620 = vmatprep.subr.bf16.mxu0 0
    %621 = vmatpush1.bf16.msra.mxu0 0
    %622 = vmatprep.subr.bf16.mxu0 0
    %623 = vmatpush1.bf16.msra.mxu0 0
    %624 = vmatprep.subr.bf16.mxu0 0
    %625 = vmatpush1.bf16.msra.mxu0 0
    %626 = vmatprep.subr.bf16.mxu0 0
    %627 = vmatpush1.bf16.msra.mxu0 0
    %628 = vmatprep.subr.bf16.mxu0 0
    %629 = vmatpush1.bf16.msra.mxu0 0
    %630 = vmatprep.subr.bf16.mxu0 0
    %631 = vmatpush1.bf16.msra.mxu0 %v614
    %632 = vmatprep.subr.bf16.mxu0 0
    %633 = vmatpush2.bf16.msra.mxu0 0
    %634 = vmatprep.subr.bf16.mxu0 0
    %635 = vmatpush2.bf16.msra.mxu0 0
    %636 = vmatprep.subr.bf16.mxu0 0
    %637 = vmatpush2.bf16.msra.mxu0 0
    %638 = vmatprep.subr.bf16.mxu0 0
    %639 = vmatpush2.bf16.msra.mxu0 0
    %640 = vmatprep.subr.bf16.mxu0 0
    %641 = vmatpush2.bf16.msra.mxu0 0
    %642 = vmatprep.subr.bf16.mxu0 0
    %643 = vmatpush2.bf16.msra.mxu0 0
    %644 = vmatprep.subr.bf16.mxu0 0
    %645 = vmatpush2.bf16.msra.mxu0 0
    %646 = vmatprep.subr.bf16.mxu0 0
    %647 = vmatpush2.bf16.msra.mxu0 0
    %648 = vmatprep.mubr.bf16.mxu0 0
    %649 = vmatmul.mubr.bf16.gmra.mxu0 %v611
    %v650 = vpop.f32.mrf.mxu0
    %v651 = vadd.f32 0.0, %v650
    %v652 = vpop.f32.mrf.mxu0
    %v653 = vpop.f32.mrf.mxu0
    %v654 = vpop.f32.mrf.mxu0
    %655 = vdwg.mxu0
    %657 = vrot.lane.b32.xlu0 %v268, 96
    %v658 = vpop.permute.xlu0 %657
    %v660 = vsel %vm361, %v606, 0
    %v663 = vsel %vm389, %v658, 0
    %665 = vmatprep.subr.bf16.mxu0 0
    %666 = vmatpush1.bf16.msra.mxu0 0
    %667 = vmatprep.subr.bf16.mxu0 0
    %668 = vmatpush1.bf16.msra.mxu0 0
    %669 = vmatprep.subr.bf16.mxu0 0
    %670 = vmatpush1.bf16.msra.mxu0 0
    %671 = vmatprep.subr.bf16.mxu0 0
    %672 = vmatpush1.bf16.msra.mxu0 0
    %673 = vmatprep.subr.bf16.mxu0 0
    %674 = vmatpush1.bf16.msra.mxu0 0
    %675 = vmatprep.subr.bf16.mxu0 0
    %676 = vmatpush1.bf16.msra.mxu0 0
    %677 = vmatprep.subr.bf16.mxu0 0
    %678 = vmatpush1.bf16.msra.mxu0 0
    %679 = vmatprep.subr.bf16.mxu0 0
    %680 = vmatpush1.bf16.msra.mxu0 %v663
    %681 = vmatprep.subr.bf16.mxu0 0
    %682 = vmatpush2.bf16.msra.mxu0 0
    %683 = vmatprep.subr.bf16.mxu0 0
    %684 = vmatpush2.bf16.msra.mxu0 0
    %685 = vmatprep.subr.bf16.mxu0 0
    %686 = vmatpush2.bf16.msra.mxu0 0
    %687 = vmatprep.subr.bf16.mxu0 0
    %688 = vmatpush2.bf16.msra.mxu0 0
    %689 = vmatprep.subr.bf16.mxu0 0
    %690 = vmatpush2.bf16.msra.mxu0 0
    %691 = vmatprep.subr.bf16.mxu0 0
    %692 = vmatpush2.bf16.msra.mxu0 0
    %693 = vmatprep.subr.bf16.mxu0 0
    %694 = vmatpush2.bf16.msra.mxu0 0
    %695 = vmatprep.subr.bf16.mxu0 0
    %696 = vmatpush2.bf16.msra.mxu0 0
    %697 = vmatprep.mubr.bf16.mxu0 0
    %698 = vmatmul.mubr.bf16.gmra.mxu0 %v660
    %v699 = vpop.f32.mrf.mxu0
    %v700 = vadd.f32 0.0, %v699
    %v701 = vpop.f32.mrf.mxu0
    %v702 = vpop.f32.mrf.mxu0
    %v703 = vpop.f32.mrf.mxu0
    %704 = vdwg.mxu0
    %705 = vrot.lane.b32.xlu0 %v263, 64
    %v706 = vpop.permute.xlu0 %705
    %707 = vrot.lane.b32.xlu0 %v265, 64
    %v708 = vpop.permute.xlu0 %707
    %v710 = vsel %vm175, %v706, 0
    %v713 = vsel %vm175, %v708, 0
    %715 = vmatprep.subr.bf16.mxu0 0
    %716 = vmatpush1.bf16.xpose.msra.mxu0 0
    %717 = vmatprep.subr.bf16.mxu0 0
    %718 = vmatpush1.bf16.xpose.msra.mxu0 0
    %719 = vmatprep.subr.bf16.mxu0 0
    %720 = vmatpush1.bf16.xpose.msra.mxu0 0
    %721 = vmatprep.subr.bf16.mxu0 0
    %722 = vmatpush1.bf16.xpose.msra.mxu0 0
    %723 = vmatprep.subr.bf16.mxu0 0
    %724 = vmatpush1.bf16.xpose.msra.mxu0 0
    %725 = vmatprep.subr.bf16.mxu0 0
    %726 = vmatpush1.bf16.xpose.msra.mxu0 0
    %727 = vmatprep.subr.bf16.mxu0 0
    %728 = vmatpush1.bf16.xpose.msra.mxu0 0
    %729 = vmatprep.subr.bf16.mxu0 0
    %730 = vmatpush1.bf16.xpose.msra.mxu0 %v713
    %731 = vmatprep.subr.bf16.mxu0 0
    %732 = vmatpush2.bf16.xpose.msra.mxu0 0
    %733 = vmatprep.subr.bf16.mxu0 0
    %734 = vmatpush2.bf16.xpose.msra.mxu0 0
    %735 = vmatprep.subr.bf16.mxu0 0
    %736 = vmatpush2.bf16.xpose.msra.mxu0 0
    %737 = vmatprep.subr.bf16.mxu0 0
    %738 = vmatpush2.bf16.xpose.msra.mxu0 0
    %739 = vmatprep.subr.bf16.mxu0 0
    %740 = vmatpush2.bf16.xpose.msra.mxu0 0
    %741 = vmatprep.subr.bf16.mxu0 0
    %742 = vmatpush2.bf16.xpose.msra.mxu0 0
    %743 = vmatprep.subr.bf16.mxu0 0
    %744 = vmatpush2.bf16.xpose.msra.mxu0 0
    %745 = vmatprep.subr.bf16.mxu0 0
    %746 = vmatpush2.bf16.xpose.msra.mxu0 0
    %747 = vmatprep.mubr.bf16.mxu0 0
    %748 = vmatmul.mubr.bf16.gmra.mxu0 %v710
    %v749 = vpop.f32.mrf.mxu0
    %v750 = vadd.f32 0.0, %v749
    %v751 = vpop.f32.mrf.mxu0
    %v752 = vpop.f32.mrf.mxu0
    %v753 = vpop.f32.mrf.mxu0
    %754 = vdwg.mxu0
    %755 = vrot.lane.b32.xlu0 %v264, 64
    %v756 = vpop.permute.xlu0 %755
    %757 = vrot.lane.b32.xlu0 %v266, 64
    %v758 = vpop.permute.xlu0 %757
    %v760 = vsel %vm175, %v756, 0
    %v763 = vsel %vm175, %v758, 0
    %765 = vmatprep.subr.bf16.mxu0 0
    %766 = vmatpush1.bf16.xpose.msra.mxu0 0
    %767 = vmatprep.subr.bf16.mxu0 0
    %768 = vmatpush1.bf16.xpose.msra.mxu0 0
    %769 = vmatprep.subr.bf16.mxu0 0
    %770 = vmatpush1.bf16.xpose.msra.mxu0 0
    %771 = vmatprep.subr.bf16.mxu0 0
    %772 = vmatpush1.bf16.xpose.msra.mxu0 0
    %773 = vmatprep.subr.bf16.mxu0 0
    %774 = vmatpush1.bf16.xpose.msra.mxu0 0
    %775 = vmatprep.subr.bf16.mxu0 0
    %776 = vmatpush1.bf16.xpose.msra.mxu0 0
    %777 = vmatprep.subr.bf16.mxu0 0
    %778 = vmatpush1.bf16.xpose.msra.mxu0 0
    %779 = vmatprep.subr.bf16.mxu0 0
    %780 = vmatpush1.bf16.xpose.msra.mxu0 %v763
    %781 = vmatprep.subr.bf16.mxu0 0
    %782 = vmatpush2.bf16.xpose.msra.mxu0 0
    %783 = vmatprep.subr.bf16.mxu0 0
    %784 = vmatpush2.bf16.xpose.msra.mxu0 0
    %785 = vmatprep.subr.bf16.mxu0 0
    %786 = vmatpush2.bf16.xpose.msra.mxu0 0
    %787 = vmatprep.subr.bf16.mxu0 0
    %788 = vmatpush2.bf16.xpose.msra.mxu0 0
    %789 = vmatprep.subr.bf16.mxu0 0
    %790 = vmatpush2.bf16.xpose.msra.mxu0 0
    %791 = vmatprep.subr.bf16.mxu0 0
    %792 = vmatpush2.bf16.xpose.msra.mxu0 0
    %793 = vmatprep.subr.bf16.mxu0 0
    %794 = vmatpush2.bf16.xpose.msra.mxu0 0
    %795 = vmatprep.subr.bf16.mxu0 0
    %796 = vmatpush2.bf16.xpose.msra.mxu0 0
    %797 = vmatprep.mubr.bf16.mxu0 0
    %798 = vmatmul.mubr.bf16.gmra.mxu0 %v760
    %v799 = vpop.f32.mrf.mxu0
    %v800 = vadd.f32 0.0, %v799
    %v801 = vpop.f32.mrf.mxu0
    %v802 = vpop.f32.mrf.mxu0
    %v803 = vpop.f32.mrf.mxu0
    %804 = vdwg.mxu0
    %v805 = vsel %vm361, %v750, -inf
    %806 = vmax.xlane.f32.xlu0 %v805
    %v807 = vpop.xlane.xlu0 %806
    %v808 = vsel %vm361, %v800, -inf
    %809 = vmax.xlane.f32.xlu0 %v808
    %v810 = vpop.xlane.xlu0 %809
    %v811 = vsub.f32 %v750, %v807
    %v812 = vsub.f32 %v800, %v810
    %v813 = vmul.f32 %v811, 1.442695
    %v814 = vpow.pop %v813
    %v815 = vmul.f32 %v812, 1.442695
    %v816 = vpow.pop %v815
    %v817 = vsel %vm361, %v814, 0.0
    %818 = vadd.xlane.f32.xlu0 %v817
    %v819 = vpop.xlane.xlu0 %818
    %v820 = vsel %vm361, %v816, 0.0
    %821 = vadd.xlane.f32.xlu0 %v820
    %v822 = vpop.xlane.xlu0 %821
    %v823 = vrcp.pop %v819
    %v824 = vrcp.pop %v822
    %v825 = vmul.f32 %v814, %v823
    %v826 = vmul.f32 %v816, %v824
    %v827 = vpack.c.bf16 %v825, %v825
    %v828 = vpack.c.bf16 %v826, %v826
    %829 = vrot.lane.b32.xlu0 %v267, 64
    %v830 = vpop.permute.xlu0 %829
    %v832 = vsel %vm361, %v827, 0
    %v835 = vsel %vm389, %v830, 0
    %837 = vmatprep.subr.bf16.mxu0 0
    %838 = vmatpush1.bf16.msra.mxu0 0
    %839 = vmatprep.subr.bf16.mxu0 0
    %840 = vmatpush1.bf16.msra.mxu0 0
    %841 = vmatprep.subr.bf16.mxu0 0
    %842 = vmatpush1.bf16.msra.mxu0 0
    %843 = vmatprep.subr.bf16.mxu0 0
    %844 = vmatpush1.bf16.msra.mxu0 0
    %845 = vmatprep.subr.bf16.mxu0 0
    %846 = vmatpush1.bf16.msra.mxu0 0
    %847 = vmatprep.subr.bf16.mxu0 0
    %848 = vmatpush1.bf16.msra.mxu0 0
    %849 = vmatprep.subr.bf16.mxu0 0
    %850 = vmatpush1.bf16.msra.mxu0 0
    %851 = vmatprep.subr.bf16.mxu0 0
    %852 = vmatpush1.bf16.msra.mxu0 %v835
    %853 = vmatprep.subr.bf16.mxu0 0
    %854 = vmatpush2.bf16.msra.mxu0 0
    %855 = vmatprep.subr.bf16.mxu0 0
    %856 = vmatpush2.bf16.msra.mxu0 0
    %857 = vmatprep.subr.bf16.mxu0 0
    %858 = vmatpush2.bf16.msra.mxu0 0
    %859 = vmatprep.subr.bf16.mxu0 0
    %860 = vmatpush2.bf16.msra.mxu0 0
    %861 = vmatprep.subr.bf16.mxu0 0
    %862 = vmatpush2.bf16.msra.mxu0 0
    %863 = vmatprep.subr.bf16.mxu0 0
    %864 = vmatpush2.bf16.msra.mxu0 0
    %865 = vmatprep.subr.bf16.mxu0 0
    %866 = vmatpush2.bf16.msra.mxu0 0
    %867 = vmatprep.subr.bf16.mxu0 0
    %868 = vmatpush2.bf16.msra.mxu0 0
    %869 = vmatprep.mubr.bf16.mxu0 0
    %870 = vmatmul.mubr.bf16.gmra.mxu0 %v832
    %v871 = vpop.f32.mrf.mxu0
    %v872 = vadd.f32 0.0, %v871
    %v873 = vpop.f32.mrf.mxu0
    %v874 = vpop.f32.mrf.mxu0
    %v875 = vpop.f32.mrf.mxu0
    %876 = vdwg.mxu0
    %877 = vrot.lane.b32.xlu0 %v268, 64
    %v878 = vpop.permute.xlu0 %877
    %v880 = vsel %vm361, %v828, 0
    %v883 = vsel %vm389, %v878, 0
    %885 = vmatprep.subr.bf16.mxu0 0
    %886 = vmatpush1.bf16.msra.mxu0 0
    %887 = vmatprep.subr.bf16.mxu0 0
    %888 = vmatpush1.bf16.msra.mxu0 0
    %889 = vmatprep.subr.bf16.mxu0 0
    %890 = vmatpush1.bf16.msra.mxu0 0
    %891 = vmatprep.subr.bf16.mxu0 0
    %892 = vmatpush1.bf16.msra.mxu0 0
    %893 = vmatprep.subr.bf16.mxu0 0
    %894 = vmatpush1.bf16.msra.mxu0 0
    %895 = vmatprep.subr.bf16.mxu0 0
    %896 = vmatpush1.bf16.msra.mxu0 0
    %897 = vmatprep.subr.bf16.mxu0 0
    %898 = vmatpush1.bf16.msra.mxu0 0
    %899 = vmatprep.subr.bf16.mxu0 0
    %900 = vmatpush1.bf16.msra.mxu0 %v883
    %901 = vmatprep.subr.bf16.mxu0 0
    %902 = vmatpush2.bf16.msra.mxu0 0
    %903 = vmatprep.subr.bf16.mxu0 0
    %904 = vmatpush2.bf16.msra.mxu0 0
    %905 = vmatprep.subr.bf16.mxu0 0
    %906 = vmatpush2.bf16.msra.mxu0 0
    %907 = vmatprep.subr.bf16.mxu0 0
    %908 = vmatpush2.bf16.msra.mxu0 0
    %909 = vmatprep.subr.bf16.mxu0 0
    %910 = vmatpush2.bf16.msra.mxu0 0
    %911 = vmatprep.subr.bf16.mxu0 0
    %912 = vmatpush2.bf16.msra.mxu0 0
    %913 = vmatprep.subr.bf16.mxu0 0
    %914 = vmatpush2.bf16.msra.mxu0 0
    %915 = vmatprep.subr.bf16.mxu0 0
    %916 = vmatpush2.bf16.msra.mxu0 0
    %917 = vmatprep.mubr.bf16.mxu0 0
    %918 = vmatmul.mubr.bf16.gmra.mxu0 %v880
    %v919 = vpop.f32.mrf.mxu0
    %v920 = vadd.f32 0.0, %v919
    %v921 = vpop.f32.mrf.mxu0
    %v922 = vpop.f32.mrf.mxu0
    %v923 = vpop.f32.mrf.mxu0
    %924 = vdwg.mxu0
    %925 = vrot.lane.b32.xlu0 %v263, 32
    %v926 = vpop.permute.xlu0 %925
    %927 = vrot.lane.b32.xlu0 %v265, 32
    %v928 = vpop.permute.xlu0 %927
    %v930 = vsel %vm175, %v926, 0
    %v933 = vsel %vm175, %v928, 0
    %935 = vmatprep.subr.bf16.mxu0 0
    %936 = vmatpush1.bf16.xpose.msra.mxu0 0
    %937 = vmatprep.subr.bf16.mxu0 0
    %938 = vmatpush1.bf16.xpose.msra.mxu0 0
    %939 = vmatprep.subr.bf16.mxu0 0
    %940 = vmatpush1.bf16.xpose.msra.mxu0 0
    %941 = vmatprep.subr.bf16.mxu0 0
    %942 = vmatpush1.bf16.xpose.msra.mxu0 0
    %943 = vmatprep.subr.bf16.mxu0 0
    %944 = vmatpush1.bf16.xpose.msra.mxu0 0
    %945 = vmatprep.subr.bf16.mxu0 0
    %946 = vmatpush1.bf16.xpose.msra.mxu0 0
    %947 = vmatprep.subr.bf16.mxu0 0
    %948 = vmatpush1.bf16.xpose.msra.mxu0 0
    %949 = vmatprep.subr.bf16.mxu0 0
    %950 = vmatpush1.bf16.xpose.msra.mxu0 %v933
    %951 = vmatprep.subr.bf16.mxu0 0
    %952 = vmatpush2.bf16.xpose.msra.mxu0 0
    %953 = vmatprep.subr.bf16.mxu0 0
    %954 = vmatpush2.bf16.xpose.msra.mxu0 0
    %955 = vmatprep.subr.bf16.mxu0 0
    %956 = vmatpush2.bf16.xpose.msra.mxu0 0
    %957 = vmatprep.subr.bf16.mxu0 0
    %958 = vmatpush2.bf16.xpose.msra.mxu0 0
    %959 = vmatprep.subr.bf16.mxu0 0
    %960 = vmatpush2.bf16.xpose.msra.mxu0 0
    %961 = vmatprep.subr.bf16.mxu0 0
    %962 = vmatpush2.bf16.xpose.msra.mxu0 0
    %963 = vmatprep.subr.bf16.mxu0 0
    %964 = vmatpush2.bf16.xpose.msra.mxu0 0
    %965 = vmatprep.subr.bf16.mxu0 0
    %966 = vmatpush2.bf16.xpose.msra.mxu0 0
    %967 = vmatprep.mubr.bf16.mxu0 0
    %968 = vmatmul.mubr.bf16.gmra.mxu0 %v930
    %v969 = vpop.f32.mrf.mxu0
    %v970 = vadd.f32 0.0, %v969
    %v971 = vpop.f32.mrf.mxu0
    %v972 = vpop.f32.mrf.mxu0
    %v973 = vpop.f32.mrf.mxu0
    %974 = vdwg.mxu0
    %975 = vrot.lane.b32.xlu0 %v264, 32
    %v976 = vpop.permute.xlu0 %975
    %977 = vrot.lane.b32.xlu0 %v266, 32
    %v978 = vpop.permute.xlu0 %977
    %v980 = vsel %vm175, %v976, 0
    %v983 = vsel %vm175, %v978, 0
    %985 = vmatprep.subr.bf16.mxu0 0
    %986 = vmatpush1.bf16.xpose.msra.mxu0 0
    %987 = vmatprep.subr.bf16.mxu0 0
    %988 = vmatpush1.bf16.xpose.msra.mxu0 0
    %989 = vmatprep.subr.bf16.mxu0 0
    %990 = vmatpush1.bf16.xpose.msra.mxu0 0
    %991 = vmatprep.subr.bf16.mxu0 0
    %992 = vmatpush1.bf16.xpose.msra.mxu0 0
    %993 = vmatprep.subr.bf16.mxu0 0
    %994 = vmatpush1.bf16.xpose.msra.mxu0 0
    %995 = vmatprep.subr.bf16.mxu0 0
    %996 = vmatpush1.bf16.xpose.msra.mxu0 0
    %997 = vmatprep.subr.bf16.mxu0 0
    %998 = vmatpush1.bf16.xpose.msra.mxu0 0
    %999 = vmatprep.subr.bf16.mxu0 0
    %1000 = vmatpush1.bf16.xpose.msra.mxu0 %v983
    %1001 = vmatprep.subr.bf16.mxu0 0
    %1002 = vmatpush2.bf16.xpose.msra.mxu0 0
    %1003 = vmatprep.subr.bf16.mxu0 0
    %1004 = vmatpush2.bf16.xpose.msra.mxu0 0
    %1005 = vmatprep.subr.bf16.mxu0 0
    %1006 = vmatpush2.bf16.xpose.msra.mxu0 0
    %1007 = vmatprep.subr.bf16.mxu0 0
    %1008 = vmatpush2.bf16.xpose.msra.mxu0 0
    %1009 = vmatprep.subr.bf16.mxu0 0
    %1010 = vmatpush2.bf16.xpose.msra.mxu0 0
    %1011 = vmatprep.subr.bf16.mxu0 0
    %1012 = vmatpush2.bf16.xpose.msra.mxu0 0
    %1013 = vmatprep.subr.bf16.mxu0 0
    %1014 = vmatpush2.bf16.xpose.msra.mxu0 0
    %1015 = vmatprep.subr.bf16.mxu0 0
    %1016 = vmatpush2.bf16.xpose.msra.mxu0 0
    %1017 = vmatprep.mubr.bf16.mxu0 0
    %1018 = vmatmul.mubr.bf16.gmra.mxu0 %v980
    %v1019 = vpop.f32.mrf.mxu0
    %v1020 = vadd.f32 0.0, %v1019
    %v1021 = vpop.f32.mrf.mxu0
    %v1022 = vpop.f32.mrf.mxu0
    %v1023 = vpop.f32.mrf.mxu0
    %1024 = vdwg.mxu0
    %v1025 = vsel %vm361, %v970, -inf
    %1026 = vmax.xlane.f32.xlu0 %v1025
    %v1027 = vpop.xlane.xlu0 %1026
    %v1028 = vsel %vm361, %v1020, -inf
    %1029 = vmax.xlane.f32.xlu0 %v1028
    %v1030 = vpop.xlane.xlu0 %1029
    %v1031 = vsub.f32 %v970, %v1027
    %v1032 = vsub.f32 %v1020, %v1030
    %v1033 = vmul.f32 %v1031, 1.442695
    %v1034 = vpow.pop %v1033
    %v1035 = vmul.f32 %v1032, 1.442695
    %v1036 = vpow.pop %v1035
    %v1037 = vsel %vm361, %v1034, 0.0
    %1038 = vadd.xlane.f32.xlu0 %v1037
    %v1039 = vpop.xlane.xlu0 %1038
    %v1040 = vsel %vm361, %v1036, 0.0
    %1041 = vadd.xlane.f32.xlu0 %v1040
    %v1042 = vpop.xlane.xlu0 %1041
    %v1043 = vrcp.pop %v1039
    %v1044 = vrcp.pop %v1042
    %v1045 = vmul.f32 %v1034, %v1043
    %v1046 = vmul.f32 %v1036, %v1044
    %v1047 = vpack.c.bf16 %v1045, %v1045
    %v1048 = vpack.c.bf16 %v1046, %v1046
    %1049 = vrot.lane.b32.xlu0 %v267, 32
    %v1050 = vpop.permute.xlu0 %1049
    %v1052 = vsel %vm361, %v1047, 0
    %v1055 = vsel %vm389, %v1050, 0
    %1057 = vmatprep.subr.bf16.mxu0 0
    %1058 = vmatpush1.bf16.msra.mxu0 0
    %1059 = vmatprep.subr.bf16.mxu0 0
    %1060 = vmatpush1.bf16.msra.mxu0 0
    %1061 = vmatprep.subr.bf16.mxu0 0
    %1062 = vmatpush1.bf16.msra.mxu0 0
    %1063 = vmatprep.subr.bf16.mxu0 0
    %1064 = vmatpush1.bf16.msra.mxu0 0
    %1065 = vmatprep.subr.bf16.mxu0 0
    %1066 = vmatpush1.bf16.msra.mxu0 0
    %1067 = vmatprep.subr.bf16.mxu0 0
    %1068 = vmatpush1.bf16.msra.mxu0 0
    %1069 = vmatprep.subr.bf16.mxu0 0
    %1070 = vmatpush1.bf16.msra.mxu0 0
    %1071 = vmatprep.subr.bf16.mxu0 0
    %1072 = vmatpush1.bf16.msra.mxu0 %v1055
    %1073 = vmatprep.subr.bf16.mxu0 0
    %1074 = vmatpush2.bf16.msra.mxu0 0
    %1075 = vmatprep.subr.bf16.mxu0 0
    %1076 = vmatpush2.bf16.msra.mxu0 0
    %1077 = vmatprep.subr.bf16.mxu0 0
    %1078 = vmatpush2.bf16.msra.mxu0 0
    %1079 = vmatprep.subr.bf16.mxu0 0
    %1080 = vmatpush2.bf16.msra.mxu0 0
    %1081 = vmatprep.subr.bf16.mxu0 0
    %1082 = vmatpush2.bf16.msra.mxu0 0
    %1083 = vmatprep.subr.bf16.mxu0 0
    %1084 = vmatpush2.bf16.msra.mxu0 0
    %1085 = vmatprep.subr.bf16.mxu0 0
    %1086 = vmatpush2.bf16.msra.mxu0 0
    %1087 = vmatprep.subr.bf16.mxu0 0
    %1088 = vmatpush2.bf16.msra.mxu0 0
    %1089 = vmatprep.mubr.bf16.mxu0 0
    %1090 = vmatmul.mubr.bf16.gmra.mxu0 %v1052
    %v1091 = vpop.f32.mrf.mxu0
    %v1092 = vadd.f32 0.0, %v1091
    %v1093 = vpop.f32.mrf.mxu0
    %v1094 = vpop.f32.mrf.mxu0
    %v1095 = vpop.f32.mrf.mxu0
    %1096 = vdwg.mxu0
    %1097 = vrot.lane.b32.xlu0 %v268, 32
    %v1098 = vpop.permute.xlu0 %1097
    %v1100 = vsel %vm361, %v1048, 0
    %v1103 = vsel %vm389, %v1098, 0
    %1105 = vmatprep.subr.bf16.mxu0 0
    %1106 = vmatpush1.bf16.msra.mxu0 0
    %1107 = vmatprep.subr.bf16.mxu0 0
    %1108 = vmatpush1.bf16.msra.mxu0 0
    %1109 = vmatprep.subr.bf16.mxu0 0
    %1110 = vmatpush1.bf16.msra.mxu0 0
    %1111 = vmatprep.subr.bf16.mxu0 0
    %1112 = vmatpush1.bf16.msra.mxu0 0
    %1113 = vmatprep.subr.bf16.mxu0 0
    %1114 = vmatpush1.bf16.msra.mxu0 0
    %1115 = vmatprep.subr.bf16.mxu0 0
    %1116 = vmatpush1.bf16.msra.mxu0 0
    %1117 = vmatprep.subr.bf16.mxu0 0
    %1118 = vmatpush1.bf16.msra.mxu0 0
    %1119 = vmatprep.subr.bf16.mxu0 0
    %1120 = vmatpush1.bf16.msra.mxu0 %v1103
    %1121 = vmatprep.subr.bf16.mxu0 0
    %1122 = vmatpush2.bf16.msra.mxu0 0
    %1123 = vmatprep.subr.bf16.mxu0 0
    %1124 = vmatpush2.bf16.msra.mxu0 0
    %1125 = vmatprep.subr.bf16.mxu0 0
    %1126 = vmatpush2.bf16.msra.mxu0 0
    %1127 = vmatprep.subr.bf16.mxu0 0
    %1128 = vmatpush2.bf16.msra.mxu0 0
    %1129 = vmatprep.subr.bf16.mxu0 0
    %1130 = vmatpush2.bf16.msra.mxu0 0
    %1131 = vmatprep.subr.bf16.mxu0 0
    %1132 = vmatpush2.bf16.msra.mxu0 0
    %1133 = vmatprep.subr.bf16.mxu0 0
    %1134 = vmatpush2.bf16.msra.mxu0 0
    %1135 = vmatprep.subr.bf16.mxu0 0
    %1136 = vmatpush2.bf16.msra.mxu0 0
    %1137 = vmatprep.mubr.bf16.mxu0 0
    %1138 = vmatmul.mubr.bf16.gmra.mxu0 %v1100
    %v1139 = vpop.f32.mrf.mxu0
    %v1140 = vadd.f32 0.0, %v1139
    %v1141 = vpop.f32.mrf.mxu0
    %v1142 = vpop.f32.mrf.mxu0
    %v1143 = vpop.f32.mrf.mxu0
    %1144 = vdwg.mxu0
    %1147 = vrot.lane.b32.xlu0 %v651, 32
    %v1148 = vpop.permute.xlu0 %1147
    %1149 = vrot.lane.b32.xlu0 %v700, 32
    %v1150 = vpop.permute.xlu0 %1149
    %1155 = vrot.lane.b32.xlu0 %v872, 64
    %v1156 = vpop.permute.xlu0 %1155
    %1157 = vrot.lane.b32.xlu0 %v920, 64
    %v1158 = vpop.permute.xlu0 %1157
    %1163 = vrot.lane.b32.xlu0 %v1092, 96
    %v1164 = vpop.permute.xlu0 %1163
    %1165 = vrot.lane.b32.xlu0 %v1140, 96
    %v1166 = vpop.permute.xlu0 %1165
    %v1169 = vsel %vm175, %v428, %v1148
    %v1170 = vsel %vm175, %v474, %v1150
    %vm1171 = vcmask 523264
    %v1172 = vsel %vm1171, %v1169, %v1156
    %v1173 = vsel %vm1171, %v1170, %v1158
    %vm1174 = vcmask 785408
    %v1175 = vsel %vm1174, %v1172, %v1164
    %v1176 = vsel %vm1174, %v1173, %v1166
    %v1177 = vpack.c.bf16 %v1176, %v1175
    %v1178 = vld [vmem:[#allocation2] sm:$0xf]
    %v1179 = vld [vmem:[#allocation2 + $0x4] sm:$0xf]
    %v1180 = vld [vmem:[#allocation2 + $0x8] sm:$0xf]
    %v1181 = vld [vmem:[#allocation2 + $0xc] sm:$0xf]
    %v1182 = vld [vmem:[#allocation2 + $0x10] sm:$0xf]
    %v1183 = vld [vmem:[#allocation2 + $0x14] sm:$0xf]
    %v1184 = vld [vmem:[#allocation2 + $0x18] sm:$0xf]
    %v1185 = vld [vmem:[#allocation2 + $0x1c] sm:$0xf]
    %v1186 = vld [vmem:[#allocation2 + $0x20] sm:$0xf]
    %v1187 = vld [vmem:[#allocation2 + $0x24] sm:$0xf]
    %v1188 = vld [vmem:[#allocation2 + $0x28] sm:$0xf]
    %v1189 = vld [vmem:[#allocation2 + $0x2c] sm:$0xf]
    %v1190 = vld [vmem:[#allocation2 + $0x30] sm:$0xf]
    %v1191 = vld [vmem:[#allocation2 + $0x34] sm:$0xf]
    %v1192 = vld [vmem:[#allocation2 + $0x38] sm:$0xf]
    %v1193 = vld [vmem:[#allocation2 + $0x3c] sm:$0xf]
    %v1194 = vld [vmem:[#allocation5] sm:$0x1]
    %v1196 = vlaneseq
    %v1197 = vshrl.u32 %v1196, 7
    %v1198 = vsub.s32 0, %v1197
    %v1199 = vrot.slane %v1194, %v1198
    %v1217 = vunpack.c.l.b16 %v1178
    %v1218 = vunpack.c.l.b16 %v1179
    %v1219 = vunpack.c.l.b16 %v1180
    %v1220 = vunpack.c.l.b16 %v1181
    %v1221 = vunpack.c.l.b16 %v1182
    %v1222 = vunpack.c.l.b16 %v1183
    %v1223 = vunpack.c.l.b16 %v1184
    %v1224 = vunpack.c.l.b16 %v1185
    %v1225 = vunpack.c.l.b16 %v1186
    %v1226 = vunpack.c.l.b16 %v1187
    %v1227 = vunpack.c.l.b16 %v1188
    %v1228 = vunpack.c.l.b16 %v1189
    %v1229 = vunpack.c.l.b16 %v1190
    %v1230 = vunpack.c.l.b16 %v1191
    %v1231 = vunpack.c.l.b16 %v1192
    %v1232 = vunpack.c.l.b16 %v1193
    %v1233 = vpack.c.b16 %v1218, %v1217
    %v1234 = vpack.c.b16 %v1220, %v1219
    %v1235 = vpack.c.b16 %v1222, %v1221
    %v1236 = vpack.c.b16 %v1224, %v1223
    %v1237 = vpack.c.b16 %v1226, %v1225
    %v1238 = vpack.c.b16 %v1228, %v1227
    %v1239 = vpack.c.b16 %v1230, %v1229
    %v1240 = vpack.c.b16 %v1232, %v1231
    %1249 = vmatprep.subr.bf16.mxu0 0
    %1250 = vmatpush1.bf16.msra.mxu0 %v1240
    %1251 = vmatprep.subr.bf16.mxu0 0
    %1252 = vmatpush1.bf16.msra.mxu0 %v1239
    %1253 = vmatprep.subr.bf16.mxu0 0
    %1254 = vmatpush1.bf16.msra.mxu0 %v1238
    %1255 = vmatprep.subr.bf16.mxu0 0
    %1256 = vmatpush1.bf16.msra.mxu0 %v1237
    %1257 = vmatprep.subr.bf16.mxu0 0
    %1258 = vmatpush1.bf16.msra.mxu0 %v1236
    %1259 = vmatprep.subr.bf16.mxu0 0
    %1260 = vmatpush1.bf16.msra.mxu0 %v1235
    %1261 = vmatprep.subr.bf16.mxu0 0
    %1262 = vmatpush1.bf16.msra.mxu0 %v1234
    %1263 = vmatprep.subr.bf16.mxu0 0
    %1264 = vmatpush1.bf16.msra.mxu0 %v1233
    %1265 = vmatprep.subr.bf16.mxu0 0
    %1266 = vmatpush2.bf16.msra.mxu0 0
    %1267 = vmatprep.subr.bf16.mxu0 0
    %1268 = vmatpush2.bf16.msra.mxu0 0
    %1269 = vmatprep.subr.bf16.mxu0 0
    %1270 = vmatpush2.bf16.msra.mxu0 0
    %1271 = vmatprep.subr.bf16.mxu0 0
    %1272 = vmatpush2.bf16.msra.mxu0 0
    %1273 = vmatprep.subr.bf16.mxu0 0
    %1274 = vmatpush2.bf16.msra.mxu0 0
    %1275 = vmatprep.subr.bf16.mxu0 0
    %1276 = vmatpush2.bf16.msra.mxu0 0
    %1277 = vmatprep.subr.bf16.mxu0 0
    %1278 = vmatpush2.bf16.msra.mxu0 0
    %1279 = vmatprep.subr.bf16.mxu0 0
    %1280 = vmatpush2.bf16.msra.mxu0 0
    %1281 = vmatprep.mubr.bf16.mxu0 0
    %1282 = vmatmul.mubr.bf16.gmra.mxu0 %v1177
    %v1283 = vpop.f32.mrf.mxu0
    %v1284 = vadd.f32 %v1199, %v1283
    %v1285 = vpop.f32.mrf.mxu0
    %v1286 = vpop.f32.mrf.mxu0
    %v1287 = vadd.f32 %v1199, %v1286
    %v1288 = vpop.f32.mrf.mxu0
    %1289 = vdwg.mxu0
    %v1290 = vadd.f32 %v1284, %v132
    %v1291 = vadd.f32 %v1287, %v133
    %v1292 = vld [vmem:[%s5] sm:$0x1]
    %v1293 = vld [vmem:[%s6] sm:$0x1]
    %v1294 = vsel %vm175, %v1290, 0.0
    %1295 = vadd.xlane.f32.xlu0 %v1294
    %v1296 = vpop.xlane.xlu0 %1295
    %v1297 = vsel %vm175, %v1291, 0.0
    %1298 = vadd.xlane.f32.xlu0 %v1297
    %v1299 = vpop.xlane.xlu0 %1298
    %v1300 = vrcp.pop 32.0
    %v1301 = vmul.f32 %v1296, %v1300
    %v1302 = vmul.f32 %v1299, %v1300
    %v1303 = vsub.f32 %v1290, %v1301
    %v1304 = vsub.f32 %v1291, %v1302
    %v1305 = vmul.f32 %v1303, %v1303
    %v1306 = vmul.f32 %v1304, %v1304
    %v1307 = vsel %vm175, %v1305, 0.0
    %1308 = vadd.xlane.f32.xlu0 %v1307
    %v1309 = vpop.xlane.xlu0 %1308
    %v1310 = vsel %vm175, %v1306, 0.0
    %1311 = vadd.xlane.f32.xlu0 %v1310
    %v1312 = vpop.xlane.xlu0 %1311
    %v1313 = vmul.f32 %v1309, %v1300
    %v1314 = vmul.f32 %v1312, %v1300
    %v1315 = vadd.f32 %v1313, 1e-05
    %v1316 = vadd.f32 %v1314, 1e-05
    %v1317 = vrsqrt.pop %v1315
    %v1318 = vrsqrt.pop %v1316
    %v1319 = vmul.f32 %v1303, %v1317
    %v1320 = vmul.f32 %v1304, %v1318
    %v1322 = vlaneseq
    %v1323 = vshrl.u32 %v1322, 7
    %v1324 = vsub.s32 0, %v1323
    %v1325 = vrot.slane %v1292, %v1324
    %v1327 = vmul.f32 %v1319, %v1325
    %v1328 = vmul.f32 %v1320, %v1325
    %v1330 = vlaneseq
    %v1331 = vshrl.u32 %v1330, 7
    %v1332 = vsub.s32 0, %v1331
    %v1333 = vrot.slane %v1293, %v1332
    %v1335 = vadd.f32 %v1327, %v1333
    %v1336 = vadd.f32 %v1328, %v1333
    %v1337 = vpack.c.bf16 %v1336, %v1335
    %v1338 = vld [vmem:[#allocation7] sm:$0xf]
    %v1339 = vld [vmem:[#allocation7 + $0x4] sm:$0xf]
    %v1340 = vld [vmem:[#allocation7 + $0x8] sm:$0xf]
    %v1341 = vld [vmem:[#allocation7 + $0xc] sm:$0xf]
    %v1342 = vld [vmem:[#allocation8] sm:$0x1]
    %v1344 = vlaneseq
    %v1345 = vshrl.u32 %v1344, 7
    %v1346 = vsub.s32 0, %v1345
    %v1347 = vrot.slane %v1342, %v1346
    %v1353 = vunpack.c.l.b16 %v1338
    %v1354 = vunpack.c.l.b16 %v1339
    %v1355 = vunpack.c.l.b16 %v1340
    %v1356 = vunpack.c.l.b16 %v1341
    %v1357 = vpack.c.b16 %v1354, %v1353
    %v1358 = vpack.c.b16 %v1356, %v1355
    %v1362 = vsel %vm175, %v1337, 0
    %1364 = vmatprep.subr.bf16.mxu0 0
    %1365 = vmatpush1.bf16.msra.mxu0 0
    %1366 = vmatprep.subr.bf16.mxu0 0
    %1367 = vmatpush1.bf16.msra.mxu0 0
    %1368 = vmatprep.subr.bf16.mxu0 0
    %1369 = vmatpush1.bf16.msra.mxu0 0
    %1370 = vmatprep.subr.bf16.mxu0 0
    %1371 = vmatpush1.bf16.msra.mxu0 0
    %1372 = vmatprep.subr.bf16.mxu0 0
    %1373 = vmatpush1.bf16.msra.mxu0 0
    %1374 = vmatprep.subr.bf16.mxu0 0
    %1375 = vmatpush1.bf16.msra.mxu0 0
    %1376 = vmatprep.subr.bf16.mxu0 0
    %1377 = vmatpush1.bf16.msra.mxu0 %v1358
    %1378 = vmatprep.subr.bf16.mxu0 0
    %1379 = vmatpush1.bf16.msra.mxu0 %v1357
    %1380 = vmatprep.subr.bf16.mxu0 0
    %1381 = vmatpush2.bf16.msra.mxu0 0
    %1382 = vmatprep.subr.bf16.mxu0 0
    %1383 = vmatpush2.bf16.msra.mxu0 0
    %1384 = vmatprep.subr.bf16.mxu0 0
    %1385 = vmatpush2.bf16.msra.mxu0 0
    %1386 = vmatprep.subr.bf16.mxu0 0
    %1387 = vmatpush2.bf16.msra.mxu0 0
    %1388 = vmatprep.subr.bf16.mxu0 0
    %1389 = vmatpush2.bf16.msra.mxu0 0
    %1390 = vmatprep.subr.bf16.mxu0 0
    %1391 = vmatpush2.bf16.msra.mxu0 0
    %1392 = vmatprep.subr.bf16.mxu0 0
    %1393 = vmatpush2.bf16.msra.mxu0 0
    %1394 = vmatprep.subr.bf16.mxu0 0
    %1395 = vmatpush2.bf16.msra.mxu0 0
    %1396 = vmatprep.mubr.bf16.mxu0 0
    %1397 = vmatmul.mubr.bf16.gmra.mxu0 %v1362
    %v1398 = vpop.f32.mrf.mxu0
    %v1399 = vadd.f32 %v1347, %v1398
    %v1400 = vpop.f32.mrf.mxu0
    %v1401 = vpop.f32.mrf.mxu0
    %v1402 = vadd.f32 %v1347, %v1401
    %v1403 = vpop.f32.mrf.mxu0
    %1404 = vdwg.mxu0
    %v1405 = vmax.f32 %v1399, 0.0
    %v1406 = vmax.f32 %v1402, 0.0
    %v1407 = vpack.c.bf16 %v1406, %v1405
    %v1408 = vld [vmem:[%s9] sm:$0xf]
    %v1409 = vld [vmem:[%s9 + $0x4] sm:$0xf]
    %v1410 = vld [vmem:[%s9 + $0x8] sm:$0xf]
    %v1411 = vld [vmem:[%s9 + $0xc] sm:$0xf]
    %v1412 = vld [vmem:[%s9 + $0x10] sm:$0xf]
    %v1413 = vld [vmem:[%s9 + $0x14] sm:$0xf]
    %v1414 = vld [vmem:[%s9 + $0x18] sm:$0xf]
    %v1415 = vld [vmem:[%s9 + $0x1c] sm:$0xf]
    %v1416 = vld [vmem:[%s9 + $0x20] sm:$0xf]
    %v1417 = vld [vmem:[%s9 + $0x24] sm:$0xf]
    %v1418 = vld [vmem:[%s9 + $0x28] sm:$0xf]
    %v1419 = vld [vmem:[%s9 + $0x2c] sm:$0xf]
    %v1420 = vld [vmem:[%s9 + $0x30] sm:$0xf]
    %v1421 = vld [vmem:[%s9 + $0x34] sm:$0xf]
    %v1422 = vld [vmem:[%s9 + $0x38] sm:$0xf]
    %v1423 = vld [vmem:[%s9 + $0x3c] sm:$0xf]
    %v1424 = vld [vmem:[#allocation10] sm:$0x1]
    %v1426 = vlaneseq
    %v1427 = vshrl.u32 %v1426, 7
    %v1428 = vsub.s32 0, %v1427
    %v1429 = vrot.slane %v1424, %v1428
    %v1447 = vunpack.c.l.b16 %v1408
    %v1448 = vunpack.c.l.b16 %v1409
    %v1449 = vunpack.c.l.b16 %v1410
    %v1450 = vunpack.c.l.b16 %v1411
    %v1451 = vunpack.c.l.b16 %v1412
    %v1452 = vunpack.c.l.b16 %v1413
    %v1453 = vunpack.c.l.b16 %v1414
    %v1454 = vunpack.c.l.b16 %v1415
    %v1455 = vunpack.c.l.b16 %v1416
    %v1456 = vunpack.c.l.b16 %v1417
    %v1457 = vunpack.c.l.b16 %v1418
    %v1458 = vunpack.c.l.b16 %v1419
    %v1459 = vunpack.c.l.b16 %v1420
    %v1460 = vunpack.c.l.b16 %v1421
    %v1461 = vunpack.c.l.b16 %v1422
    %v1462 = vunpack.c.l.b16 %v1423
    %v1463 = vpack.c.b16 %v1448, %v1447
    %v1464 = vpack.c.b16 %v1450, %v1449
    %v1465 = vpack.c.b16 %v1452, %v1451
    %v1466 = vpack.c.b16 %v1454, %v1453
    %v1467 = vpack.c.b16 %v1456, %v1455
    %v1468 = vpack.c.b16 %v1458, %v1457
    %v1469 = vpack.c.b16 %v1460, %v1459
    %v1470 = vpack.c.b16 %v1462, %v1461
    %1479 = vmatprep.subr.bf16.mxu0 0
    %1480 = vmatpush1.bf16.msra.mxu0 %v1470
    %1481 = vmatprep.subr.bf16.mxu0 0
    %1482 = vmatpush1.bf16.msra.mxu0 %v1469
    %1483 = vmatprep.subr.bf16.mxu0 0
    %1484 = vmatpush1.bf16.msra.mxu0 %v1468
    %1485 = vmatprep.subr.bf16.mxu0 0
    %1486 = vmatpush1.bf16.msra.mxu0 %v1467
    %1487 = vmatprep.subr.bf16.mxu0 0
    %1488 = vmatpush1.bf16.msra.mxu0 %v1466
    %1489 = vmatprep.subr.bf16.mxu0 0
    %1490 = vmatpush1.bf16.msra.mxu0 %v1465
    %1491 = vmatprep.subr.bf16.mxu0 0
    %1492 = vmatpush1.bf16.msra.mxu0 %v1464
    %1493 = vmatprep.subr.bf16.mxu0 0
    %1494 = vmatpush1.bf16.msra.mxu0 %v1463
    %1495 = vmatprep.subr.bf16.mxu0 0
    %1496 = vmatpush2.bf16.msra.mxu0 0
    %1497 = vmatprep.subr.bf16.mxu0 0
    %1498 = vmatpush2.bf16.msra.mxu0 0
    %1499 = vmatprep.subr.bf16.mxu0 0
    %1500 = vmatpush2.bf16.msra.mxu0 0
    %1501 = vmatprep.subr.bf16.mxu0 0
    %1502 = vmatpush2.bf16.msra.mxu0 0
    %1503 = vmatprep.subr.bf16.mxu0 0
    %1504 = vmatpush2.bf16.msra.mxu0 0
    %1505 = vmatprep.subr.bf16.mxu0 0
    %1506 = vmatpush2.bf16.msra.mxu0 0
    %1507 = vmatprep.subr.bf16.mxu0 0
    %1508 = vmatpush2.bf16.msra.mxu0 0
    %1509 = vmatprep.subr.bf16.mxu0 0
    %1510 = vmatpush2.bf16.msra.mxu0 0
    %1511 = vmatprep.mubr.bf16.mxu0 0
    %1512 = vmatmul.mubr.bf16.gmra.mxu0 %v1407
    %v1513 = vpop.f32.mrf.mxu0
    %v1514 = vadd.f32 %v1429, %v1513
    %v1515 = vpop.f32.mrf.mxu0
    %v1516 = vpop.f32.mrf.mxu0
    %v1517 = vadd.f32 %v1429, %v1516
    %v1518 = vpop.f32.mrf.mxu0
    %1519 = vdwg.mxu0
    %v1520 = vadd.f32 %v1514, %v1335
    %v1521 = vadd.f32 %v1517, %v1336
    %v1522 = vld [vmem:[%s11] sm:$0x1]
    %v1523 = vld [vmem:[%s12] sm:$0x1]
    %v1524 = vsel %vm175, %v1520, 0.0
    %1525 = vadd.xlane.f32.xlu0 %v1524
    %v1526 = vpop.xlane.xlu0 %1525
    %v1527 = vsel %vm175, %v1521, 0.0
    %1528 = vadd.xlane.f32.xlu0 %v1527
    %v1529 = vpop.xlane.xlu0 %1528
    %v1530 = vmul.f32 %v1526, %v1300
    %v1531 = vmul.f32 %v1529, %v1300
    %v1532 = vsub.f32 %v1520, %v1530
    %v1533 = vsub.f32 %v1521, %v1531
    %v1534 = vmul.f32 %v1532, %v1532
    %v1535 = vmul.f32 %v1533, %v1533
    %v1536 = vsel %vm175, %v1534, 0.0
    %1537 = vadd.xlane.f32.xlu0 %v1536
    %v1538 = vpop.xlane.xlu0 %1537
    %v1539 = vsel %vm175, %v1535, 0.0
    %1540 = vadd.xlane.f32.xlu0 %v1539
    %v1541 = vpop.xlane.xlu0 %1540
    %v1542 = vmul.f32 %v1538, %v1300
    %v1543 = vmul.f32 %v1541, %v1300
    %v1544 = vadd.f32 %v1542, 1e-05
    %v1545 = vadd.f32 %v1543, 1e-05
    %v1546 = vrsqrt.pop %v1544
    %v1547 = vrsqrt.pop %v1545
    %v1548 = vmul.f32 %v1532, %v1546
    %v1549 = vmul.f32 %v1533, %v1547
    %v1551 = vlaneseq
    %v1552 = vshrl.u32 %v1551, 7
    %v1553 = vsub.s32 0, %v1552
    %v1554 = vrot.slane %v1522, %v1553
    %v1556 = vmul.f32 %v1548, %v1554
    %v1557 = vmul.f32 %v1549, %v1554
    %v1559 = vlaneseq
    %v1560 = vshrl.u32 %v1559, 7
    %v1561 = vsub.s32 0, %v1560
    %v1562 = vrot.slane %v1523, %v1561
    %v1564 = vadd.f32 %v1556, %v1562
    %v1565 = vadd.f32 %v1557, %v1562
    %v1566 = vpack.c.bf16 %v1565, %v1564
    %s1567 = scalar_lea.vmem %s2, 48
    %v1568 = vld [vmem:[%s1567] sm:$0xff]
    %v1569 = vld [vmem:[%s1567 + $0x8] sm:$0xf]
    %v1570 = vld [vmem:[%s1567 + $0xc] sm:$0xff]
    %v1571 = vld [vmem:[%s1567 + $0x14] sm:$0xf]
    %v1572 = vld [vmem:[%s1567 + $0x18] sm:$0xff]
    %v1573 = vld [vmem:[%s1567 + $0x20] sm:$0xf]
    %v1574 = vld [vmem:[%s1567 + $0x24] sm:$0xff]
    %v1575 = vld [vmem:[%s1567 + $0x2c] sm:$0xf]
    %v1584 = vunpack.c.l.b16 %v1568
    %v1585 = vunpack.c.h.b16 %v1568
    %v1586 = vunpack.c.l.b16 %v1569
    %v1587 = vunpack.c.l.b16 %v1570
    %v1588 = vunpack.c.h.b16 %v1570
    %v1589 = vunpack.c.l.b16 %v1571
    %v1590 = vunpack.c.l.b16 %v1572
    %v1591 = vunpack.c.h.b16 %v1572
    %v1592 = vunpack.c.l.b16 %v1573
    %v1593 = vunpack.c.l.b16 %v1574
    %v1594 = vunpack.c.h.b16 %v1574
    %v1595 = vunpack.c.l.b16 %v1575
    %v1596 = vpack.c.b16 %v1587, %v1584
    %v1597 = vpack.c.b16 %v1588, %v1585
    %v1598 = vpack.c.b16 %v1589, %v1586
    %v1599 = vpack.c.b16 %v1593, %v1590
    %v1600 = vpack.c.b16 %v1594, %v1591
    %v1601 = vpack.c.b16 %v1595, %v1592
    %v1609 = vsel %vm175, %v1566, 0
    %1611 = vmatprep.subr.bf16.mxu0 0
    %1612 = vmatpush1.bf16.msra.mxu0 0
    %1613 = vmatprep.subr.bf16.mxu0 0
    %1614 = vmatpush1.bf16.msra.mxu0 0
    %1615 = vmatprep.subr.bf16.mxu0 0
    %1616 = vmatpush1.bf16.msra.mxu0 0
    %1617 = vmatprep.subr.bf16.mxu0 0
    %1618 = vmatpush1.bf16.msra.mxu0 0
    %1619 = vmatprep.subr.bf16.mxu0 0
    %1620 = vmatpush1.bf16.msra.mxu0 0
    %1621 = vmatprep.subr.bf16.mxu0 0
    %1622 = vmatpush1.bf16.msra.mxu0 0
    %1623 = vmatprep.subr.bf16.mxu0 %v1600
    %1624 = vmatpush1.bf16.msra.mxu0 %v1599
    %1625 = vmatprep.subr.bf16.mxu0 %v1597
    %1626 = vmatpush1.bf16.msra.mxu0 %v1596
    %1627 = vmatprep.subr.bf16.mxu0 0
    %1628 = vmatpush2.bf16.msra.mxu0 0
    %1629 = vmatprep.subr.bf16.mxu0 0
    %1630 = vmatpush2.bf16.msra.mxu0 0
    %1631 = vmatprep.subr.bf16.mxu0 0
    %1632 = vmatpush2.bf16.msra.mxu0 0
    %1633 = vmatprep.subr.bf16.mxu0 0
    %1634 = vmatpush2.bf16.msra.mxu0 0
    %1635 = vmatprep.subr.bf16.mxu0 0
    %1636 = vmatpush2.bf16.msra.mxu0 0
    %1637 = vmatprep.subr.bf16.mxu0 0
    %1638 = vmatpush2.bf16.msra.mxu0 0
    %1639 = vmatprep.subr.bf16.mxu0 0
    %1640 = vmatpush2.bf16.msra.mxu0 0
    %1641 = vmatprep.subr.bf16.mxu0 0
    %1642 = vmatpush2.bf16.msra.mxu0 0
    %1643 = vmatprep.mubr.bf16.mxu0 0
    %1644 = vmatmul.mubr.bf16.gmra.mxu0 %v1609
    %v1645 = vpop.f32.mrf.mxu0
    %v1646 = vadd.f32 0.0, %v1645
    %v1647 = vpop.f32.mrf.mxu0
    %v1648 = vadd.f32 0.0, %v1647
    %v1649 = vpop.f32.mrf.mxu0
    %v1650 = vadd.f32 0.0, %v1649
    %v1651 = vpop.f32.mrf.mxu0
    %v1652 = vadd.f32 0.0, %v1651
    %1653 = vdwg.mxu0
    %1654 = vmatprep.subr.bf16.mxu0 0
    %1655 = vmatpush1.bf16.msra.mxu0 0
    %1656 = vmatprep.subr.bf16.mxu0 0
    %1657 = vmatpush1.bf16.msra.mxu0 0
    %1658 = vmatprep.subr.bf16.mxu0 0
    %1659 = vmatpush1.bf16.msra.mxu0 0
    %1660 = vmatprep.subr.bf16.mxu0 0
    %1661 = vmatpush1.bf16.msra.mxu0 0
    %1662 = vmatprep.subr.bf16.mxu0 0
    %1663 = vmatpush1.bf16.msra.mxu0 0
    %1664 = vmatprep.subr.bf16.mxu0 0
    %1665 = vmatpush1.bf16.msra.mxu0 0
    %1666 = vmatprep.subr.bf16.mxu0 0
    %1667 = vmatpush1.bf16.msra.mxu0 %v1601
    %1668 = vmatprep.subr.bf16.mxu0 0
    %1669 = vmatpush1.bf16.msra.mxu0 %v1598
    %1670 = vmatprep.subr.bf16.mxu0 0
    %1671 = vmatpush2.bf16.msra.mxu0 0
    %1672 = vmatprep.subr.bf16.mxu0 0
    %1673 = vmatpush2.bf16.msra.mxu0 0
    %1674 = vmatprep.subr.bf16.mxu0 0
    %1675 = vmatpush2.bf16.msra.mxu0 0
    %1676 = vmatprep.subr.bf16.mxu0 0
    %1677 = vmatpush2.bf16.msra.mxu0 0
    %1678 = vmatprep.subr.bf16.mxu0 0
    %1679 = vmatpush2.bf16.msra.mxu0 0
    %1680 = vmatprep.subr.bf16.mxu0 0
    %1681 = vmatpush2.bf16.msra.mxu0 0
    %1682 = vmatprep.subr.bf16.mxu0 0
    %1683 = vmatpush2.bf16.msra.mxu0 0
    %1684 = vmatprep.subr.bf16.mxu0 0
    %1685 = vmatpush2.bf16.msra.mxu0 0
    %1686 = vmatprep.mubr.bf16.mxu0 0
    %1687 = vmatmul.mubr.bf16.gmra.mxu0 %v1609
    %v1688 = vpop.f32.mrf.mxu0
    %v1689 = vadd.f32 0.0, %v1688
    %v1690 = vpop.f32.mrf.mxu0
    %v1691 = vpop.f32.mrf.mxu0
    %v1692 = vadd.f32 0.0, %v1691
    %v1693 = vpop.f32.mrf.mxu0
    %1694 = vdwg.mxu0
    %v1695 = vpack.c.bf16 %v1646, %v1646
    %v1696 = vpack.c.bf16 %v1650, %v1650
    %v1697 = vpack.c.bf16 %v1648, %v1648
    %v1698 = vpack.c.bf16 %v1652, %v1652
    %v1699 = vpack.c.bf16 %v1689, %v1689
    %v1700 = vpack.c.bf16 %v1692, %v1692
    %v1702 = vsel %vm175, %v1695, 0
    %v1705 = vsel %vm175, %v1697, 0
    %1707 = vmatprep.subr.bf16.mxu0 0
    %1708 = vmatpush1.bf16.xpose.msra.mxu0 0
    %1709 = vmatprep.subr.bf16.mxu0 0
    %1710 = vmatpush1.bf16.xpose.msra.mxu0 0
    %1711 = vmatprep.subr.bf16.mxu0 0
    %1712 = vmatpush1.bf16.xpose.msra.mxu0 0
    %1713 = vmatprep.subr.bf16.mxu0 0
    %1714 = vmatpush1.bf16.xpose.msra.mxu0 0
    %1715 = vmatprep.subr.bf16.mxu0 0
    %1716 = vmatpush1.bf16.xpose.msra.mxu0 0
    %1717 = vmatprep.subr.bf16.mxu0 0
    %1718 = vmatpush1.bf16.xpose.msra.mxu0 0
    %1719 = vmatprep.subr.bf16.mxu0 0
    %1720 = vmatpush1.bf16.xpose.msra.mxu0 0
    %1721 = vmatprep.subr.bf16.mxu0 0
    %1722 = vmatpush1.bf16.xpose.msra.mxu0 %v1705
    %1723 = vmatprep.subr.bf16.mxu0 0
    %1724 = vmatpush2.bf16.xpose.msra.mxu0 0
    %1725 = vmatprep.subr.bf16.mxu0 0
    %1726 = vmatpush2.bf16.xpose.msra.mxu0 0
    %1727 = vmatprep.subr.bf16.mxu0 0
    %1728 = vmatpush2.bf16.xpose.msra.mxu0 0
    %1729 = vmatprep.subr.bf16.mxu0 0
    %1730 = vmatpush2.bf16.xpose.msra.mxu0 0
    %1731 = vmatprep.subr.bf16.mxu0 0
    %1732 = vmatpush2.bf16.xpose.msra.mxu0 0
    %1733 = vmatprep.subr.bf16.mxu0 0
    %1734 = vmatpush2.bf16.xpose.msra.mxu0 0
    %1735 = vmatprep.subr.bf16.mxu0 0
    %1736 = vmatpush2.bf16.xpose.msra.mxu0 0
    %1737 = vmatprep.subr.bf16.mxu0 0
    %1738 = vmatpush2.bf16.xpose.msra.mxu0 0
    %1739 = vmatprep.mubr.bf16.mxu0 0
    %1740 = vmatmul.mubr.bf16.gmra.mxu0 %v1702
    %v1741 = vpop.f32.mrf.mxu0
    %v1742 = vadd.f32 0.0, %v1741
    %v1743 = vpop.f32.mrf.mxu0
    %v1744 = vpop.f32.mrf.mxu0
    %v1745 = vpop.f32.mrf.mxu0
    %1746 = vdwg.mxu0
    %v1748 = vsel %vm175, %v1696, 0
    %v1751 = vsel %vm175, %v1698, 0
    %1753 = vmatprep.subr.bf16.mxu0 0
    %1754 = vmatpush1.bf16.xpose.msra.mxu0 0
    %1755 = vmatprep.subr.bf16.mxu0 0
    %1756 = vmatpush1.bf16.xpose.msra.mxu0 0
    %1757 = vmatprep.subr.bf16.mxu0 0
    %1758 = vmatpush1.bf16.xpose.msra.mxu0 0
    %1759 = vmatprep.subr.bf16.mxu0 0
    %1760 = vmatpush1.bf16.xpose.msra.mxu0 0
    %1761 = vmatprep.subr.bf16.mxu0 0
    %1762 = vmatpush1.bf16.xpose.msra.mxu0 0
    %1763 = vmatprep.subr.bf16.mxu0 0
    %1764 = vmatpush1.bf16.xpose.msra.mxu0 0
    %1765 = vmatprep.subr.bf16.mxu0 0
    %1766 = vmatpush1.bf16.xpose.msra.mxu0 0
    %1767 = vmatprep.subr.bf16.mxu0 0
    %1768 = vmatpush1.bf16.xpose.msra.mxu0 %v1751
    %1769 = vmatprep.subr.bf16.mxu0 0
    %1770 = vmatpush2.bf16.xpose.msra.mxu0 0
    %1771 = vmatprep.subr.bf16.mxu0 0
    %1772 = vmatpush2.bf16.xpose.msra.mxu0 0
    %1773 = vmatprep.subr.bf16.mxu0 0
    %1774 = vmatpush2.bf16.xpose.msra.mxu0 0
    %1775 = vmatprep.subr.bf16.mxu0 0
    %1776 = vmatpush2.bf16.xpose.msra.mxu0 0
    %1777 = vmatprep.subr.bf16.mxu0 0
    %1778 = vmatpush2.bf16.xpose.msra.mxu0 0
    %1779 = vmatprep.subr.bf16.mxu0 0
    %1780 = vmatpush2.bf16.xpose.msra.mxu0 0
    %1781 = vmatprep.subr.bf16.mxu0 0
    %1782 = vmatpush2.bf16.xpose.msra.mxu0 0
    %1783 = vmatprep.subr.bf16.mxu0 0
    %1784 = vmatpush2.bf16.xpose.msra.mxu0 0
    %1785 = vmatprep.mubr.bf16.mxu0 0
    %1786 = vmatmul.mubr.bf16.gmra.mxu0 %v1748
    %v1787 = vpop.f32.mrf.mxu0
    %v1788 = vadd.f32 0.0, %v1787
    %v1789 = vpop.f32.mrf.mxu0
    %v1790 = vpop.f32.mrf.mxu0
    %v1791 = vpop.f32.mrf.mxu0
    %1792 = vdwg.mxu0
    %v1793 = vsel %vm361, %v1742, -inf
    %1794 = vmax.xlane.f32.xlu0 %v1793
    %v1795 = vpop.xlane.xlu0 %1794
    %v1796 = vsel %vm361, %v1788, -inf
    %1797 = vmax.xlane.f32.xlu0 %v1796
    %v1798 = vpop.xlane.xlu0 %1797
    %v1799 = vsub.f32 %v1742, %v1795
    %v1800 = vsub.f32 %v1788, %v1798
    %v1801 = vmul.f32 %v1799, 1.442695
    %v1802 = vpow.pop %v1801
    %v1803 = vmul.f32 %v1800, 1.442695
    %v1804 = vpow.pop %v1803
    %v1805 = vsel %vm361, %v1802, 0.0
    %1806 = vadd.xlane.f32.xlu0 %v1805
    %v1807 = vpop.xlane.xlu0 %1806
    %v1808 = vsel %vm361, %v1804, 0.0
    %1809 = vadd.xlane.f32.xlu0 %v1808
    %v1810 = vpop.xlane.xlu0 %1809
    %v1811 = vrcp.pop %v1807
    %v1812 = vrcp.pop %v1810
    %v1813 = vmul.f32 %v1802, %v1811
    %v1814 = vmul.f32 %v1804, %v1812
    %v1815 = vpack.c.bf16 %v1813, %v1813
    %v1816 = vpack.c.bf16 %v1814, %v1814
    %v1818 = vsel %vm361, %v1815, 0
    %v1821 = vsel %vm389, %v1699, 0
    %1823 = vmatprep.subr.bf16.mxu0 0
    %1824 = vmatpush1.bf16.msra.mxu0 0
    %1825 = vmatprep.subr.bf16.mxu0 0
    %1826 = vmatpush1.bf16.msra.mxu0 0
    %1827 = vmatprep.subr.bf16.mxu0 0
    %1828 = vmatpush1.bf16.msra.mxu0 0
    %1829 = vmatprep.subr.bf16.mxu0 0
    %1830 = vmatpush1.bf16.msra.mxu0 0
    %1831 = vmatprep.subr.bf16.mxu0 0
    %1832 = vmatpush1.bf16.msra.mxu0 0
    %1833 = vmatprep.subr.bf16.mxu0 0
    %1834 = vmatpush1.bf16.msra.mxu0 0
    %1835 = vmatprep.subr.bf16.mxu0 0
    %1836 = vmatpush1.bf16.msra.mxu0 0
    %1837 = vmatprep.subr.bf16.mxu0 0
    %1838 = vmatpush1.bf16.msra.mxu0 %v1821
    %1839 = vmatprep.subr.bf16.mxu0 0
    %1840 = vmatpush2.bf16.msra.mxu0 0
    %1841 = vmatprep.subr.bf16.mxu0 0
    %1842 = vmatpush2.bf16.msra.mxu0 0
    %1843 = vmatprep.subr.bf16.mxu0 0
    %1844 = vmatpush2.bf16.msra.mxu0 0
    %1845 = vmatprep.subr.bf16.mxu0 0
    %1846 = vmatpush2.bf16.msra.mxu0 0
    %1847 = vmatprep.subr.bf16.mxu0 0
    %1848 = vmatpush2.bf16.msra.mxu0 0
    %1849 = vmatprep.subr.bf16.mxu0 0
    %1850 = vmatpush2.bf16.msra.mxu0 0
    %1851 = vmatprep.subr.bf16.mxu0 0
    %1852 = vmatpush2.bf16.msra.mxu0 0
    %1853 = vmatprep.subr.bf16.mxu0 0
    %1854 = vmatpush2.bf16.msra.mxu0 0
    %1855 = vmatprep.mubr.bf16.mxu0 0
    %1856 = vmatmul.mubr.bf16.gmra.mxu0 %v1818
    %v1857 = vpop.f32.mrf.mxu0
    %v1858 = vadd.f32 0.0, %v1857
    %v1859 = vpop.f32.mrf.mxu0
    %v1860 = vpop.f32.mrf.mxu0
    %v1861 = vpop.f32.mrf.mxu0
    %1862 = vdwg.mxu0
    %v1864 = vsel %vm361, %v1816, 0
    %v1867 = vsel %vm389, %v1700, 0
    %1869 = vmatprep.subr.bf16.mxu0 0
    %1870 = vmatpush1.bf16.msra.mxu0 0
    %1871 = vmatprep.subr.bf16.mxu0 0
    %1872 = vmatpush1.bf16.msra.mxu0 0
    %1873 = vmatprep.subr.bf16.mxu0 0
    %1874 = vmatpush1.bf16.msra.mxu0 0
    %1875 = vmatprep.subr.bf16.mxu0 0
    %1876 = vmatpush1.bf16.msra.mxu0 0
    %1877 = vmatprep.subr.bf16.mxu0 0
    %1878 = vmatpush1.bf16.msra.mxu0 0
    %1879 = vmatprep.subr.bf16.mxu0 0
    %1880 = vmatpush1.bf16.msra.mxu0 0
    %1881 = vmatprep.subr.bf16.mxu0 0
    %1882 = vmatpush1.bf16.msra.mxu0 0
    %1883 = vmatprep.subr.bf16.mxu0 0
    %1884 = vmatpush1.bf16.msra.mxu0 %v1867
    %1885 = vmatprep.subr.bf16.mxu0 0
    %1886 = vmatpush2.bf16.msra.mxu0 0
    %1887 = vmatprep.subr.bf16.mxu0 0
    %1888 = vmatpush2.bf16.msra.mxu0 0
    %1889 = vmatprep.subr.bf16.mxu0 0
    %1890 = vmatpush2.bf16.msra.mxu0 0
    %1891 = vmatprep.subr.bf16.mxu0 0
    %1892 = vmatpush2.bf16.msra.mxu0 0
    %1893 = vmatprep.subr.bf16.mxu0 0
    %1894 = vmatpush2.bf16.msra.mxu0 0
    %1895 = vmatprep.subr.bf16.mxu0 0
    %1896 = vmatpush2.bf16.msra.mxu0 0
    %1897 = vmatprep.subr.bf16.mxu0 0
    %1898 = vmatpush2.bf16.msra.mxu0 0
    %1899 = vmatprep.subr.bf16.mxu0 0
    %1900 = vmatpush2.bf16.msra.mxu0 0
    %1901 = vmatprep.mubr.bf16.mxu0 0
    %1902 = vmatmul.mubr.bf16.gmra.mxu0 %v1864
    %v1903 = vpop.f32.mrf.mxu0
    %v1904 = vadd.f32 0.0, %v1903
    %v1905 = vpop.f32.mrf.mxu0
    %v1906 = vpop.f32.mrf.mxu0
    %v1907 = vpop.f32.mrf.mxu0
    %1908 = vdwg.mxu0
    %1910 = vrot.lane.b32.xlu0 %v1695, 96
    %v1911 = vpop.permute.xlu0 %1910
    %1913 = vrot.lane.b32.xlu0 %v1697, 96
    %v1914 = vpop.permute.xlu0 %1913
    %v1916 = vsel %vm175, %v1911, 0
    %v1919 = vsel %vm175, %v1914, 0
    %1921 = vmatprep.subr.bf16.mxu0 0
    %1922 = vmatpush1.bf16.xpose.msra.mxu0 0
    %1923 = vmatprep.subr.bf16.mxu0 0
    %1924 = vmatpush1.bf16.xpose.msra.mxu0 0
    %1925 = vmatprep.subr.bf16.mxu0 0
    %1926 = vmatpush1.bf16.xpose.msra.mxu0 0
    %1927 = vmatprep.subr.bf16.mxu0 0
    %1928 = vmatpush1.bf16.xpose.msra.mxu0 0
    %1929 = vmatprep.subr.bf16.mxu0 0
    %1930 = vmatpush1.bf16.xpose.msra.mxu0 0
    %1931 = vmatprep.subr.bf16.mxu0 0
    %1932 = vmatpush1.bf16.xpose.msra.mxu0 0
    %1933 = vmatprep.subr.bf16.mxu0 0
    %1934 = vmatpush1.bf16.xpose.msra.mxu0 0
    %1935 = vmatprep.subr.bf16.mxu0 0
    %1936 = vmatpush1.bf16.xpose.msra.mxu0 %v1919
    %1937 = vmatprep.subr.bf16.mxu0 0
    %1938 = vmatpush2.bf16.xpose.msra.mxu0 0
    %1939 = vmatprep.subr.bf16.mxu0 0
    %1940 = vmatpush2.bf16.xpose.msra.mxu0 0
    %1941 = vmatprep.subr.bf16.mxu0 0
    %1942 = vmatpush2.bf16.xpose.msra.mxu0 0
    %1943 = vmatprep.subr.bf16.mxu0 0
    %1944 = vmatpush2.bf16.xpose.msra.mxu0 0
    %1945 = vmatprep.subr.bf16.mxu0 0
    %1946 = vmatpush2.bf16.xpose.msra.mxu0 0
    %1947 = vmatprep.subr.bf16.mxu0 0
    %1948 = vmatpush2.bf16.xpose.msra.mxu0 0
    %1949 = vmatprep.subr.bf16.mxu0 0
    %1950 = vmatpush2.bf16.xpose.msra.mxu0 0
    %1951 = vmatprep.subr.bf16.mxu0 0
    %1952 = vmatpush2.bf16.xpose.msra.mxu0 0
    %1953 = vmatprep.mubr.bf16.mxu0 0
    %1954 = vmatmul.mubr.bf16.gmra.mxu0 %v1916
    %v1955 = vpop.f32.mrf.mxu0
    %v1956 = vadd.f32 0.0, %v1955
    %v1957 = vpop.f32.mrf.mxu0
    %v1958 = vpop.f32.mrf.mxu0
    %v1959 = vpop.f32.mrf.mxu0
    %1960 = vdwg.mxu0
    %1962 = vrot.lane.b32.xlu0 %v1696, 96
    %v1963 = vpop.permute.xlu0 %1962
    %1965 = vrot.lane.b32.xlu0 %v1698, 96
    %v1966 = vpop.permute.xlu0 %1965
    %v1968 = vsel %vm175, %v1963, 0
    %v1971 = vsel %vm175, %v1966, 0
    %1973 = vmatprep.subr.bf16.mxu0 0
    %1974 = vmatpush1.bf16.xpose.msra.mxu0 0
    %1975 = vmatprep.subr.bf16.mxu0 0
    %1976 = vmatpush1.bf16.xpose.msra.mxu0 0
    %1977 = vmatprep.subr.bf16.mxu0 0
    %1978 = vmatpush1.bf16.xpose.msra.mxu0 0
    %1979 = vmatprep.subr.bf16.mxu0 0
    %1980 = vmatpush1.bf16.xpose.msra.mxu0 0
    %1981 = vmatprep.subr.bf16.mxu0 0
    %1982 = vmatpush1.bf16.xpose.msra.mxu0 0
    %1983 = vmatprep.subr.bf16.mxu0 0
    %1984 = vmatpush1.bf16.xpose.msra.mxu0 0
    %1985 = vmatprep.subr.bf16.mxu0 0
    %1986 = vmatpush1.bf16.xpose.msra.mxu0 0
    %1987 = vmatprep.subr.bf16.mxu0 0
    %1988 = vmatpush1.bf16.xpose.msra.mxu0 %v1971
    %1989 = vmatprep.subr.bf16.mxu0 0
    %1990 = vmatpush2.bf16.xpose.msra.mxu0 0
    %1991 = vmatprep.subr.bf16.mxu0 0
    %1992 = vmatpush2.bf16.xpose.msra.mxu0 0
    %1993 = vmatprep.subr.bf16.mxu0 0
    %1994 = vmatpush2.bf16.xpose.msra.mxu0 0
    %1995 = vmatprep.subr.bf16.mxu0 0
    %1996 = vmatpush2.bf16.xpose.msra.mxu0 0
    %1997 = vmatprep.subr.bf16.mxu0 0
    %1998 = vmatpush2.bf16.xpose.msra.mxu0 0
    %1999 = vmatprep.subr.bf16.mxu0 0
    %2000 = vmatpush2.bf16.xpose.msra.mxu0 0
    %2001 = vmatprep.subr.bf16.mxu0 0
    %2002 = vmatpush2.bf16.xpose.msra.mxu0 0
    %2003 = vmatprep.subr.bf16.mxu0 0
    %2004 = vmatpush2.bf16.xpose.msra.mxu0 0
    %2005 = vmatprep.mubr.bf16.mxu0 0
    %2006 = vmatmul.mubr.bf16.gmra.mxu0 %v1968
    %v2007 = vpop.f32.mrf.mxu0
    %v2008 = vadd.f32 0.0, %v2007
    %v2009 = vpop.f32.mrf.mxu0
    %v2010 = vpop.f32.mrf.mxu0
    %v2011 = vpop.f32.mrf.mxu0
    %2012 = vdwg.mxu0
    %v2013 = vsel %vm361, %v1956, -inf
    %2014 = vmax.xlane.f32.xlu0 %v2013
    %v2015 = vpop.xlane.xlu0 %2014
    %v2016 = vsel %vm361, %v2008, -inf
    %2017 = vmax.xlane.f32.xlu0 %v2016
    %v2018 = vpop.xlane.xlu0 %2017
    %v2019 = vsub.f32 %v1956, %v2015
    %v2020 = vsub.f32 %v2008, %v2018
    %v2021 = vmul.f32 %v2019, 1.442695
    %v2022 = vpow.pop %v2021
    %v2023 = vmul.f32 %v2020, 1.442695
    %v2024 = vpow.pop %v2023
    %v2025 = vsel %vm361, %v2022, 0.0
    %2026 = vadd.xlane.f32.xlu0 %v2025
    %v2027 = vpop.xlane.xlu0 %2026
    %v2028 = vsel %vm361, %v2024, 0.0
    %2029 = vadd.xlane.f32.xlu0 %v2028
    %v2030 = vpop.xlane.xlu0 %2029
    %v2031 = vrcp.pop %v2027
    %v2032 = vrcp.pop %v2030
    %v2033 = vmul.f32 %v2022, %v2031
    %v2034 = vmul.f32 %v2024, %v2032
    %v2035 = vpack.c.bf16 %v2033, %v2033
    %v2036 = vpack.c.bf16 %v2034, %v2034
    %2038 = vrot.lane.b32.xlu0 %v1699, 96
    %v2039 = vpop.permute.xlu0 %2038
    %v2041 = vsel %vm361, %v2035, 0
    %v2044 = vsel %vm389, %v2039, 0
    %2046 = vmatprep.subr.bf16.mxu0 0
    %2047 = vmatpush1.bf16.msra.mxu0 0
    %2048 = vmatprep.subr.bf16.mxu0 0
    %2049 = vmatpush1.bf16.msra.mxu0 0
    %2050 = vmatprep.subr.bf16.mxu0 0
    %2051 = vmatpush1.bf16.msra.mxu0 0
    %2052 = vmatprep.subr.bf16.mxu0 0
    %2053 = vmatpush1.bf16.msra.mxu0 0
    %2054 = vmatprep.subr.bf16.mxu0 0
    %2055 = vmatpush1.bf16.msra.mxu0 0
    %2056 = vmatprep.subr.bf16.mxu0 0
    %2057 = vmatpush1.bf16.msra.mxu0 0
    %2058 = vmatprep.subr.bf16.mxu0 0
    %2059 = vmatpush1.bf16.msra.mxu0 0
    %2060 = vmatprep.subr.bf16.mxu0 0
    %2061 = vmatpush1.bf16.msra.mxu0 %v2044
    %2062 = vmatprep.subr.bf16.mxu0 0
    %2063 = vmatpush2.bf16.msra.mxu0 0
    %2064 = vmatprep.subr.bf16.mxu0 0
    %2065 = vmatpush2.bf16.msra.mxu0 0
    %2066 = vmatprep.subr.bf16.mxu0 0
    %2067 = vmatpush2.bf16.msra.mxu0 0
    %2068 = vmatprep.subr.bf16.mxu0 0
    %2069 = vmatpush2.bf16.msra.mxu0 0
    %2070 = vmatprep.subr.bf16.mxu0 0
    %2071 = vmatpush2.bf16.msra.mxu0 0
    %2072 = vmatprep.subr.bf16.mxu0 0
    %2073 = vmatpush2.bf16.msra.mxu0 0
    %2074 = vmatprep.subr.bf16.mxu0 0
    %2075 = vmatpush2.bf16.msra.mxu0 0
    %2076 = vmatprep.subr.bf16.mxu0 0
    %2077 = vmatpush2.bf16.msra.mxu0 0
    %2078 = vmatprep.mubr.bf16.mxu0 0
    %2079 = vmatmul.mubr.bf16.gmra.mxu0 %v2041
    %v2080 = vpop.f32.mrf.mxu0
    %v2081 = vadd.f32 0.0, %v2080
    %v2082 = vpop.f32.mrf.mxu0
    %v2083 = vpop.f32.mrf.mxu0
    %v2084 = vpop.f32.mrf.mxu0
    %2085 = vdwg.mxu0
    %2087 = vrot.lane.b32.xlu0 %v1700, 96
    %v2088 = vpop.permute.xlu0 %2087
    %v2090 = vsel %vm361, %v2036, 0
    %v2093 = vsel %vm389, %v2088, 0
    %2095 = vmatprep.subr.bf16.mxu0 0
    %2096 = vmatpush1.bf16.msra.mxu0 0
    %2097 = vmatprep.subr.bf16.mxu0 0
    %2098 = vmatpush1.bf16.msra.mxu0 0
    %2099 = vmatprep.subr.bf16.mxu0 0
    %2100 = vmatpush1.bf16.msra.mxu0 0
    %2101 = vmatprep.subr.bf16.mxu0 0
    %2102 = vmatpush1.bf16.msra.mxu0 0
    %2103 = vmatprep.subr.bf16.mxu0 0
    %2104 = vmatpush1.bf16.msra.mxu0 0
    %2105 = vmatprep.subr.bf16.mxu0 0
    %2106 = vmatpush1.bf16.msra.mxu0 0
    %2107 = vmatprep.subr.bf16.mxu0 0
    %2108 = vmatpush1.bf16.msra.mxu0 0
    %2109 = vmatprep.subr.bf16.mxu0 0
    %2110 = vmatpush1.bf16.msra.mxu0 %v2093
    %2111 = vmatprep.subr.bf16.mxu0 0
    %2112 = vmatpush2.bf16.msra.mxu0 0
    %2113 = vmatprep.subr.bf16.mxu0 0
    %2114 = vmatpush2.bf16.msra.mxu0 0
    %2115 = vmatprep.subr.bf16.mxu0 0
    %2116 = vmatpush2.bf16.msra.mxu0 0
    %2117 = vmatprep.subr.bf16.mxu0 0
    %2118 = vmatpush2.bf16.msra.mxu0 0
    %2119 = vmatprep.subr.bf16.mxu0 0
    %2120 = vmatpush2.bf16.msra.mxu0 0
    %2121 = vmatprep.subr.bf16.mxu0 0
    %2122 = vmatpush2.bf16.msra.mxu0 0
    %2123 = vmatprep.subr.bf16.mxu0 0
    %2124 = vmatpush2.bf16.msra.mxu0 0
    %2125 = vmatprep.subr.bf16.mxu0 0
    %2126 = vmatpush2.bf16.msra.mxu0 0
    %2127 = vmatprep.mubr.bf16.mxu0 0
    %2128 = vmatmul.mubr.bf16.gmra.mxu0 %v2090
    %v2129 = vpop.f32.mrf.mxu0
    %v2130 = vadd.f32 0.0, %v2129
    %v2131 = vpop.f32.mrf.mxu0
    %v2132 = vpop.f32.mrf.mxu0
    %v2133 = vpop.f32.mrf.mxu0
    %2134 = vdwg.mxu0
    %2135 = vrot.lane.b32.xlu0 %v1695, 64
    %v2136 = vpop.permute.xlu0 %2135
    %2137 = vrot.lane.b32.xlu0 %v1697, 64
    %v2138 = vpop.permute.xlu0 %2137
    %v2140 = vsel %vm175, %v2136, 0
    %v2143 = vsel %vm175, %v2138, 0
    %2145 = vmatprep.subr.bf16.mxu0 0
    %2146 = vmatpush1.bf16.xpose.msra.mxu0 0
    %2147 = vmatprep.subr.bf16.mxu0 0
    %2148 = vmatpush1.bf16.xpose.msra.mxu0 0
    %2149 = vmatprep.subr.bf16.mxu0 0
    %2150 = vmatpush1.bf16.xpose.msra.mxu0 0
    %2151 = vmatprep.subr.bf16.mxu0 0
    %2152 = vmatpush1.bf16.xpose.msra.mxu0 0
    %2153 = vmatprep.subr.bf16.mxu0 0
    %2154 = vmatpush1.bf16.xpose.msra.mxu0 0
    %2155 = vmatprep.subr.bf16.mxu0 0
    %2156 = vmatpush1.bf16.xpose.msra.mxu0 0
    %2157 = vmatprep.subr.bf16.mxu0 0
    %2158 = vmatpush1.bf16.xpose.msra.mxu0 0
    %2159 = vmatprep.subr.bf16.mxu0 0
    %2160 = vmatpush1.bf16.xpose.msra.mxu0 %v2143
    %2161 = vmatprep.subr.bf16.mxu0 0
    %2162 = vmatpush2.bf16.xpose.msra.mxu0 0
    %2163 = vmatprep.subr.bf16.mxu0 0
    %2164 = vmatpush2.bf16.xpose.msra.mxu0 0
    %2165 = vmatprep.subr.bf16.mxu0 0
    %2166 = vmatpush2.bf16.xpose.msra.mxu0 0
    %2167 = vmatprep.subr.bf16.mxu0 0
    %2168 = vmatpush2.bf16.xpose.msra.mxu0 0
    %2169 = vmatprep.subr.bf16.mxu0 0
    %2170 = vmatpush2.bf16.xpose.msra.mxu0 0
    %2171 = vmatprep.subr.bf16.mxu0 0
    %2172 = vmatpush2.bf16.xpose.msra.mxu0 0
    %2173 = vmatprep.subr.bf16.mxu0 0
    %2174 = vmatpush2.bf16.xpose.msra.mxu0 0
    %2175 = vmatprep.subr.bf16.mxu0 0
    %2176 = vmatpush2.bf16.xpose.msra.mxu0 0
    %2177 = vmatprep.mubr.bf16.mxu0 0
    %2178 = vmatmul.mubr.bf16.gmra.mxu0 %v2140
    %v2179 = vpop.f32.mrf.mxu0
    %v2180 = vadd.f32 0.0, %v2179
    %v2181 = vpop.f32.mrf.mxu0
    %v2182 = vpop.f32.mrf.mxu0
    %v2183 = vpop.f32.mrf.mxu0
    %2184 = vdwg.mxu0
    %2185 = vrot.lane.b32.xlu0 %v1696, 64
    %v2186 = vpop.permute.xlu0 %2185
    %2187 = vrot.lane.b32.xlu0 %v1698, 64
    %v2188 = vpop.permute.xlu0 %2187
    %v2190 = vsel %vm175, %v2186, 0
    %v2193 = vsel %vm175, %v2188, 0
    %2195 = vmatprep.subr.bf16.mxu0 0
    %2196 = vmatpush1.bf16.xpose.msra.mxu0 0
    %2197 = vmatprep.subr.bf16.mxu0 0
    %2198 = vmatpush1.bf16.xpose.msra.mxu0 0
    %2199 = vmatprep.subr.bf16.mxu0 0
    %2200 = vmatpush1.bf16.xpose.msra.mxu0 0
    %2201 = vmatprep.subr.bf16.mxu0 0
    %2202 = vmatpush1.bf16.xpose.msra.mxu0 0
    %2203 = vmatprep.subr.bf16.mxu0 0
    %2204 = vmatpush1.bf16.xpose.msra.mxu0 0
    %2205 = vmatprep.subr.bf16.mxu0 0
    %2206 = vmatpush1.bf16.xpose.msra.mxu0 0
    %2207 = vmatprep.subr.bf16.mxu0 0
    %2208 = vmatpush1.bf16.xpose.msra.mxu0 0
    %2209 = vmatprep.subr.bf16.mxu0 0
    %2210 = vmatpush1.bf16.xpose.msra.mxu0 %v2193
    %2211 = vmatprep.subr.bf16.mxu0 0
    %2212 = vmatpush2.bf16.xpose.msra.mxu0 0
    %2213 = vmatprep.subr.bf16.mxu0 0
    %2214 = vmatpush2.bf16.xpose.msra.mxu0 0
    %2215 = vmatprep.subr.bf16.mxu0 0
    %2216 = vmatpush2.bf16.xpose.msra.mxu0 0
    %2217 = vmatprep.subr.bf16.mxu0 0
    %2218 = vmatpush2.bf16.xpose.msra.mxu0 0
    %2219 = vmatprep.subr.bf16.mxu0 0
    %2220 = vmatpush2.bf16.xpose.msra.mxu0 0
    %2221 = vmatprep.subr.bf16.mxu0 0
    %2222 = vmatpush2.bf16.xpose.msra.mxu0 0
    %2223 = vmatprep.subr.bf16.mxu0 0
    %2224 = vmatpush2.bf16.xpose.msra.mxu0 0
    %2225 = vmatprep.subr.bf16.mxu0 0
    %2226 = vmatpush2.bf16.xpose.msra.mxu0 0
    %2227 = vmatprep.mubr.bf16.mxu0 0
    %2228 = vmatmul.mubr.bf16.gmra.mxu0 %v2190
    %v2229 = vpop.f32.mrf.mxu0
    %v2230 = vadd.f32 0.0, %v2229
    %v2231 = vpop.f32.mrf.mxu0
    %v2232 = vpop.f32.mrf.mxu0
    %v2233 = vpop.f32.mrf.mxu0
    %2234 = vdwg.mxu0
    %v2235 = vsel %vm361, %v2180, -inf
    %2236 = vmax.xlane.f32.xlu0 %v2235
    %v2237 = vpop.xlane.xlu0 %2236
    %v2238 = vsel %vm361, %v2230, -inf
    %2239 = vmax.xlane.f32.xlu0 %v2238
    %v2240 = vpop.xlane.xlu0 %2239
    %v2241 = vsub.f32 %v2180, %v2237
    %v2242 = vsub.f32 %v2230, %v2240
    %v2243 = vmul.f32 %v2241, 1.442695
    %v2244 = vpow.pop %v2243
    %v2245 = vmul.f32 %v2242, 1.442695
    %v2246 = vpow.pop %v2245
    %v2247 = vsel %vm361, %v2244, 0.0
    %2248 = vadd.xlane.f32.xlu0 %v2247
    %v2249 = vpop.xlane.xlu0 %2248
    %v2250 = vsel %vm361, %v2246, 0.0
    %2251 = vadd.xlane.f32.xlu0 %v2250
    %v2252 = vpop.xlane.xlu0 %2251
    %v2253 = vrcp.pop %v2249
    %v2254 = vrcp.pop %v2252
    %v2255 = vmul.f32 %v2244, %v2253
    %v2256 = vmul.f32 %v2246, %v2254
    %v2257 = vpack.c.bf16 %v2255, %v2255
    %v2258 = vpack.c.bf16 %v2256, %v2256
    %2259 = vrot.lane.b32.xlu0 %v1699, 64
    %v2260 = vpop.permute.xlu0 %2259
    %v2262 = vsel %vm361, %v2257, 0
    %v2265 = vsel %vm389, %v2260, 0
    %2267 = vmatprep.subr.bf16.mxu0 0
    %2268 = vmatpush1.bf16.msra.mxu0 0
    %2269 = vmatprep.subr.bf16.mxu0 0
    %2270 = vmatpush1.bf16.msra.mxu0 0
    %2271 = vmatprep.subr.bf16.mxu0 0
    %2272 = vmatpush1.bf16.msra.mxu0 0
    %2273 = vmatprep.subr.bf16.mxu0 0
    %2274 = vmatpush1.bf16.msra.mxu0 0
    %2275 = vmatprep.subr.bf16.mxu0 0
    %2276 = vmatpush1.bf16.msra.mxu0 0
    %2277 = vmatprep.subr.bf16.mxu0 0
    %2278 = vmatpush1.bf16.msra.mxu0 0
    %2279 = vmatprep.subr.bf16.mxu0 0
    %2280 = vmatpush1.bf16.msra.mxu0 0
    %2281 = vmatprep.subr.bf16.mxu0 0
    %2282 = vmatpush1.bf16.msra.mxu0 %v2265
    %2283 = vmatprep.subr.bf16.mxu0 0
    %2284 = vmatpush2.bf16.msra.mxu0 0
    %2285 = vmatprep.subr.bf16.mxu0 0
    %2286 = vmatpush2.bf16.msra.mxu0 0
    %2287 = vmatprep.subr.bf16.mxu0 0
    %2288 = vmatpush2.bf16.msra.mxu0 0
    %2289 = vmatprep.subr.bf16.mxu0 0
    %2290 = vmatpush2.bf16.msra.mxu0 0
    %2291 = vmatprep.subr.bf16.mxu0 0
    %2292 = vmatpush2.bf16.msra.mxu0 0
    %2293 = vmatprep.subr.bf16.mxu0 0
    %2294 = vmatpush2.bf16.msra.mxu0 0
    %2295 = vmatprep.subr.bf16.mxu0 0
    %2296 = vmatpush2.bf16.msra.mxu0 0
    %2297 = vmatprep.subr.bf16.mxu0 0
    %2298 = vmatpush2.bf16.msra.mxu0 0
    %2299 = vmatprep.mubr.bf16.mxu0 0
    %2300 = vmatmul.mubr.bf16.gmra.mxu0 %v2262
    %v2301 = vpop.f32.mrf.mxu0
    %v2302 = vadd.f32 0.0, %v2301
    %v2303 = vpop.f32.mrf.mxu0
    %v2304 = vpop.f32.mrf.mxu0
    %v2305 = vpop.f32.mrf.mxu0
    %2306 = vdwg.mxu0
    %2307 = vrot.lane.b32.xlu0 %v1700, 64
    %v2308 = vpop.permute.xlu0 %2307
    %v2310 = vsel %vm361, %v2258, 0
    %v2313 = vsel %vm389, %v2308, 0
    %2315 = vmatprep.subr.bf16.mxu0 0
    %2316 = vmatpush1.bf16.msra.mxu0 0
    %2317 = vmatprep.subr.bf16.mxu0 0
    %2318 = vmatpush1.bf16.msra.mxu0 0
    %2319 = vmatprep.subr.bf16.mxu0 0
    %2320 = vmatpush1.bf16.msra.mxu0 0
    %2321 = vmatprep.subr.bf16.mxu0 0
    %2322 = vmatpush1.bf16.msra.mxu0 0
    %2323 = vmatprep.subr.bf16.mxu0 0
    %2324 = vmatpush1.bf16.msra.mxu0 0
    %2325 = vmatprep.subr.bf16.mxu0 0
    %2326 = vmatpush1.bf16.msra.mxu0 0
    %2327 = vmatprep.subr.bf16.mxu0 0
    %2328 = vmatpush1.bf16.msra.mxu0 0
    %2329 = vmatprep.subr.bf16.mxu0 0
    %2330 = vmatpush1.bf16.msra.mxu0 %v2313
    %2331 = vmatprep.subr.bf16.mxu0 0
    %2332 = vmatpush2.bf16.msra.mxu0 0
    %2333 = vmatprep.subr.bf16.mxu0 0
    %2334 = vmatpush2.bf16.msra.mxu0 0
    %2335 = vmatprep.subr.bf16.mxu0 0
    %2336 = vmatpush2.bf16.msra.mxu0 0
    %2337 = vmatprep.subr.bf16.mxu0 0
    %2338 = vmatpush2.bf16.msra.mxu0 0
    %2339 = vmatprep.subr.bf16.mxu0 0
    %2340 = vmatpush2.bf16.msra.mxu0 0
    %2341 = vmatprep.subr.bf16.mxu0 0
    %2342 = vmatpush2.bf16.msra.mxu0 0
    %2343 = vmatprep.subr.bf16.mxu0 0
    %2344 = vmatpush2.bf16.msra.mxu0 0
    %2345 = vmatprep.subr.bf16.mxu0 0
    %2346 = vmatpush2.bf16.msra.mxu0 0
    %2347 = vmatprep.mubr.bf16.mxu0 0
    %2348 = vmatmul.mubr.bf16.gmra.mxu0 %v2310
    %v2349 = vpop.f32.mrf.mxu0
    %v2350 = vadd.f32 0.0, %v2349
    %v2351 = vpop.f32.mrf.mxu0
    %v2352 = vpop.f32.mrf.mxu0
    %v2353 = vpop.f32.mrf.mxu0
    %2354 = vdwg.mxu0
    %2355 = vrot.lane.b32.xlu0 %v1695, 32
    %v2356 = vpop.permute.xlu0 %2355
    %2357 = vrot.lane.b32.xlu0 %v1697, 32
    %v2358 = vpop.permute.xlu0 %2357
    %v2360 = vsel %vm175, %v2356, 0
    %v2363 = vsel %vm175, %v2358, 0
    %2365 = vmatprep.subr.bf16.mxu0 0
    %2366 = vmatpush1.bf16.xpose.msra.mxu0 0
    %2367 = vmatprep.subr.bf16.mxu0 0
    %2368 = vmatpush1.bf16.xpose.msra.mxu0 0
    %2369 = vmatprep.subr.bf16.mxu0 0
    %2370 = vmatpush1.bf16.xpose.msra.mxu0 0
    %2371 = vmatprep.subr.bf16.mxu0 0
    %2372 = vmatpush1.bf16.xpose.msra.mxu0 0
    %2373 = vmatprep.subr.bf16.mxu0 0
    %2374 = vmatpush1.bf16.xpose.msra.mxu0 0
    %2375 = vmatprep.subr.bf16.mxu0 0
    %2376 = vmatpush1.bf16.xpose.msra.mxu0 0
    %2377 = vmatprep.subr.bf16.mxu0 0
    %2378 = vmatpush1.bf16.xpose.msra.mxu0 0
    %2379 = vmatprep.subr.bf16.mxu0 0
    %2380 = vmatpush1.bf16.xpose.msra.mxu0 %v2363
    %2381 = vmatprep.subr.bf16.mxu0 0
    %2382 = vmatpush2.bf16.xpose.msra.mxu0 0
    %2383 = vmatprep.subr.bf16.mxu0 0
    %2384 = vmatpush2.bf16.xpose.msra.mxu0 0
    %2385 = vmatprep.subr.bf16.mxu0 0
    %2386 = vmatpush2.bf16.xpose.msra.mxu0 0
    %2387 = vmatprep.subr.bf16.mxu0 0
    %2388 = vmatpush2.bf16.xpose.msra.mxu0 0
    %2389 = vmatprep.subr.bf16.mxu0 0
    %2390 = vmatpush2.bf16.xpose.msra.mxu0 0
    %2391 = vmatprep.subr.bf16.mxu0 0
    %2392 = vmatpush2.bf16.xpose.msra.mxu0 0
    %2393 = vmatprep.subr.bf16.mxu0 0
    %2394 = vmatpush2.bf16.xpose.msra.mxu0 0
    %2395 = vmatprep.subr.bf16.mxu0 0
    %2396 = vmatpush2.bf16.xpose.msra.mxu0 0
    %2397 = vmatprep.mubr.bf16.mxu0 0
    %2398 = vmatmul.mubr.bf16.gmra.mxu0 %v2360
    %v2399 = vpop.f32.mrf.mxu0
    %v2400 = vadd.f32 0.0, %v2399
    %v2401 = vpop.f32.mrf.mxu0
    %v2402 = vpop.f32.mrf.mxu0
    %v2403 = vpop.f32.mrf.mxu0
    %2404 = vdwg.mxu0
    %2405 = vrot.lane.b32.xlu0 %v1696, 32
    %v2406 = vpop.permute.xlu0 %2405
    %2407 = vrot.lane.b32.xlu0 %v1698, 32
    %v2408 = vpop.permute.xlu0 %2407
    %v2410 = vsel %vm175, %v2406, 0
    %v2413 = vsel %vm175, %v2408, 0
    %2415 = vmatprep.subr.bf16.mxu0 0
    %2416 = vmatpush1.bf16.xpose.msra.mxu0 0
    %2417 = vmatprep.subr.bf16.mxu0 0
    %2418 = vmatpush1.bf16.xpose.msra.mxu0 0
    %2419 = vmatprep.subr.bf16.mxu0 0
    %2420 = vmatpush1.bf16.xpose.msra.mxu0 0
    %2421 = vmatprep.subr.bf16.mxu0 0
    %2422 = vmatpush1.bf16.xpose.msra.mxu0 0
    %2423 = vmatprep.subr.bf16.mxu0 0
    %2424 = vmatpush1.bf16.xpose.msra.mxu0 0
    %2425 = vmatprep.subr.bf16.mxu0 0
    %2426 = vmatpush1.bf16.xpose.msra.mxu0 0
    %2427 = vmatprep.subr.bf16.mxu0 0
    %2428 = vmatpush1.bf16.xpose.msra.mxu0 0
    %2429 = vmatprep.subr.bf16.mxu0 0
    %2430 = vmatpush1.bf16.xpose.msra.mxu0 %v2413
    %2431 = vmatprep.subr.bf16.mxu0 0
    %2432 = vmatpush2.bf16.xpose.msra.mxu0 0
    %2433 = vmatprep.subr.bf16.mxu0 0
    %2434 = vmatpush2.bf16.xpose.msra.mxu0 0
    %2435 = vmatprep.subr.bf16.mxu0 0
    %2436 = vmatpush2.bf16.xpose.msra.mxu0 0
    %2437 = vmatprep.subr.bf16.mxu0 0
    %2438 = vmatpush2.bf16.xpose.msra.mxu0 0
    %2439 = vmatprep.subr.bf16.mxu0 0
    %2440 = vmatpush2.bf16.xpose.msra.mxu0 0
    %2441 = vmatprep.subr.bf16.mxu0 0
    %2442 = vmatpush2.bf16.xpose.msra.mxu0 0
    %2443 = vmatprep.subr.bf16.mxu0 0
    %2444 = vmatpush2.bf16.xpose.msra.mxu0 0
    %2445 = vmatprep.subr.bf16.mxu0 0
    %2446 = vmatpush2.bf16.xpose.msra.mxu0 0
    %2447 = vmatprep.mubr.bf16.mxu0 0
    %2448 = vmatmul.mubr.bf16.gmra.mxu0 %v2410
    %v2449 = vpop.f32.mrf.mxu0
    %v2450 = vadd.f32 0.0, %v2449
    %v2451 = vpop.f32.mrf.mxu0
    %v2452 = vpop.f32.mrf.mxu0
    %v2453 = vpop.f32.mrf.mxu0
    %2454 = vdwg.mxu0
    %v2455 = vsel %vm361, %v2400, -inf
    %2456 = vmax.xlane.f32.xlu0 %v2455
    %v2457 = vpop.xlane.xlu0 %2456
    %v2458 = vsel %vm361, %v2450, -inf
    %2459 = vmax.xlane.f32.xlu0 %v2458
    %v2460 = vpop.xlane.xlu0 %2459
    %v2461 = vsub.f32 %v2400, %v2457
    %v2462 = vsub.f32 %v2450, %v2460
    %v2463 = vmul.f32 %v2461, 1.442695
    %v2464 = vpow.pop %v2463
    %v2465 = vmul.f32 %v2462, 1.442695
    %v2466 = vpow.pop %v2465
    %v2467 = vsel %vm361, %v2464, 0.0
    %2468 = vadd.xlane.f32.xlu0 %v2467
    %v2469 = vpop.xlane.xlu0 %2468
    %v2470 = vsel %vm361, %v2466, 0.0
    %2471 = vadd.xlane.f32.xlu0 %v2470
    %v2472 = vpop.xlane.xlu0 %2471
    %v2473 = vrcp.pop %v2469
    %v2474 = vrcp.pop %v2472
    %v2475 = vmul.f32 %v2464, %v2473
    %v2476 = vmul.f32 %v2466, %v2474
    %v2477 = vpack.c.bf16 %v2475, %v2475
    %v2478 = vpack.c.bf16 %v2476, %v2476
    %2479 = vrot.lane.b32.xlu0 %v1699, 32
    %v2480 = vpop.permute.xlu0 %2479
    %v2482 = vsel %vm361, %v2477, 0
    %v2485 = vsel %vm389, %v2480, 0
    %2487 = vmatprep.subr.bf16.mxu0 0
    %2488 = vmatpush1.bf16.msra.mxu0 0
    %2489 = vmatprep.subr.bf16.mxu0 0
    %2490 = vmatpush1.bf16.msra.mxu0 0
    %2491 = vmatprep.subr.bf16.mxu0 0
    %2492 = vmatpush1.bf16.msra.mxu0 0
    %2493 = vmatprep.subr.bf16.mxu0 0
    %2494 = vmatpush1.bf16.msra.mxu0 0
    %2495 = vmatprep.subr.bf16.mxu0 0
    %2496 = vmatpush1.bf16.msra.mxu0 0
    %2497 = vmatprep.subr.bf16.mxu0 0
    %2498 = vmatpush1.bf16.msra.mxu0 0
    %2499 = vmatprep.subr.bf16.mxu0 0
    %2500 = vmatpush1.bf16.msra.mxu0 0
    %2501 = vmatprep.subr.bf16.mxu0 0
    %2502 = vmatpush1.bf16.msra.mxu0 %v2485
    %2503 = vmatprep.subr.bf16.mxu0 0
    %2504 = vmatpush2.bf16.msra.mxu0 0
    %2505 = vmatprep.subr.bf16.mxu0 0
    %2506 = vmatpush2.bf16.msra.mxu0 0
    %2507 = vmatprep.subr.bf16.mxu0 0
    %2508 = vmatpush2.bf16.msra.mxu0 0
    %2509 = vmatprep.subr.bf16.mxu0 0
    %2510 = vmatpush2.bf16.msra.mxu0 0
    %2511 = vmatprep.subr.bf16.mxu0 0
    %2512 = vmatpush2.bf16.msra.mxu0 0
    %2513 = vmatprep.subr.bf16.mxu0 0
    %2514 = vmatpush2.bf16.msra.mxu0 0
    %2515 = vmatprep.subr.bf16.mxu0 0
    %2516 = vmatpush2.bf16.msra.mxu0 0
    %2517 = vmatprep.subr.bf16.mxu0 0
    %2518 = vmatpush2.bf16.msra.mxu0 0
    %2519 = vmatprep.mubr.bf16.mxu0 0
    %2520 = vmatmul.mubr.bf16.gmra.mxu0 %v2482
    %v2521 = vpop.f32.mrf.mxu0
    %v2522 = vadd.f32 0.0, %v2521
    %v2523 = vpop.f32.mrf.mxu0
    %v2524 = vpop.f32.mrf.mxu0
    %v2525 = vpop.f32.mrf.mxu0
    %2526 = vdwg.mxu0
    %2527 = vrot.lane.b32.xlu0 %v1700, 32
    %v2528 = vpop.permute.xlu0 %2527
    %v2530 = vsel %vm361, %v2478, 0
    %v2533 = vsel %vm389, %v2528, 0
    %2535 = vmatprep.subr.bf16.mxu0 0
    %2536 = vmatpush1.bf16.msra.mxu0 0
    %2537 = vmatprep.subr.bf16.mxu0 0
    %2538 = vmatpush1.bf16.msra.mxu0 0
    %2539 = vmatprep.subr.bf16.mxu0 0
    %2540 = vmatpush1.bf16.msra.mxu0 0
    %2541 = vmatprep.subr.bf16.mxu0 0
    %2542 = vmatpush1.bf16.msra.mxu0 0
    %2543 = vmatprep.subr.bf16.mxu0 0
    %2544 = vmatpush1.bf16.msra.mxu0 0
    %2545 = vmatprep.subr.bf16.mxu0 0
    %2546 = vmatpush1.bf16.msra.mxu0 0
    %2547 = vmatprep.subr.bf16.mxu0 0
    %2548 = vmatpush1.bf16.msra.mxu0 0
    %2549 = vmatprep.subr.bf16.mxu0 0
    %2550 = vmatpush1.bf16.msra.mxu0 %v2533
    %2551 = vmatprep.subr.bf16.mxu0 0
    %2552 = vmatpush2.bf16.msra.mxu0 0
    %2553 = vmatprep.subr.bf16.mxu0 0
    %2554 = vmatpush2.bf16.msra.mxu0 0
    %2555 = vmatprep.subr.bf16.mxu0 0
    %2556 = vmatpush2.bf16.msra.mxu0 0
    %2557 = vmatprep.subr.bf16.mxu0 0
    %2558 = vmatpush2.bf16.msra.mxu0 0
    %2559 = vmatprep.subr.bf16.mxu0 0
    %2560 = vmatpush2.bf16.msra.mxu0 0
    %2561 = vmatprep.subr.bf16.mxu0 0
    %2562 = vmatpush2.bf16.msra.mxu0 0
    %2563 = vmatprep.subr.bf16.mxu0 0
    %2564 = vmatpush2.bf16.msra.mxu0 0
    %2565 = vmatprep.subr.bf16.mxu0 0
    %2566 = vmatpush2.bf16.msra.mxu0 0
    %2567 = vmatprep.mubr.bf16.mxu0 0
    %2568 = vmatmul.mubr.bf16.gmra.mxu0 %v2530
    %v2569 = vpop.f32.mrf.mxu0
    %v2570 = vadd.f32 0.0, %v2569
    %v2571 = vpop.f32.mrf.mxu0
    %v2572 = vpop.f32.mrf.mxu0
    %v2573 = vpop.f32.mrf.mxu0
    %2574 = vdwg.mxu0
    %2577 = vrot.lane.b32.xlu0 %v2081, 32
    %v2578 = vpop.permute.xlu0 %2577
    %2579 = vrot.lane.b32.xlu0 %v2130, 32
    %v2580 = vpop.permute.xlu0 %2579
    %2585 = vrot.lane.b32.xlu0 %v2302, 64
    %v2586 = vpop.permute.xlu0 %2585
    %2587 = vrot.lane.b32.xlu0 %v2350, 64
    %v2588 = vpop.permute.xlu0 %2587
    %2593 = vrot.lane.b32.xlu0 %v2522, 96
    %v2594 = vpop.permute.xlu0 %2593
    %2595 = vrot.lane.b32.xlu0 %v2570, 96
    %v2596 = vpop.permute.xlu0 %2595
    %v2599 = vsel %vm175, %v1858, %v2578
    %v2600 = vsel %vm175, %v1904, %v2580
    %v2601 = vsel %vm1171, %v2599, %v2586
    %v2602 = vsel %vm1171, %v2600, %v2588
    %v2603 = vsel %vm1174, %v2601, %v2594
    %v2604 = vsel %vm1174, %v2602, %v2596
    %v2605 = vpack.c.bf16 %v2604, %v2603
    %s2606 = scalar_lea.vmem [#allocation2], 64
    %v2607 = vld [vmem:[%s2606] sm:$0xf]
    %v2608 = vld [vmem:[%s2606 + $0x4] sm:$0xf]
    %v2609 = vld [vmem:[%s2606 + $0x8] sm:$0xf]
    %v2610 = vld [vmem:[%s2606 + $0xc] sm:$0xf]
    %v2611 = vld [vmem:[%s2606 + $0x10] sm:$0xf]
    %v2612 = vld [vmem:[%s2606 + $0x14] sm:$0xf]
    %v2613 = vld [vmem:[%s2606 + $0x18] sm:$0xf]
    %v2614 = vld [vmem:[%s2606 + $0x1c] sm:$0xf]
    %v2615 = vld [vmem:[%s2606 + $0x20] sm:$0xf]
    %v2616 = vld [vmem:[%s2606 + $0x24] sm:$0xf]
    %v2617 = vld [vmem:[%s2606 + $0x28] sm:$0xf]
    %v2618 = vld [vmem:[%s2606 + $0x2c] sm:$0xf]
    %v2619 = vld [vmem:[%s2606 + $0x30] sm:$0xf]
    %v2620 = vld [vmem:[%s2606 + $0x34] sm:$0xf]
    %v2621 = vld [vmem:[%s2606 + $0x38] sm:$0xf]
    %v2622 = vld [vmem:[%s2606 + $0x3c] sm:$0xf]
    %s2623 = scalar_lea.vmem [#allocation5], 1
    %v2624 = vld [vmem:[%s2623] sm:$0x1]
    %v2626 = vlaneseq
    %v2627 = vshrl.u32 %v2626, 7
    %v2628 = vsub.s32 0, %v2627
    %v2629 = vrot.slane %v2624, %v2628
    %v2647 = vunpack.c.l.b16 %v2607
    %v2648 = vunpack.c.l.b16 %v2608
    %v2649 = vunpack.c.l.b16 %v2609
    %v2650 = vunpack.c.l.b16 %v2610
    %v2651 = vunpack.c.l.b16 %v2611
    %v2652 = vunpack.c.l.b16 %v2612
    %v2653 = vunpack.c.l.b16 %v2613
    %v2654 = vunpack.c.l.b16 %v2614
    %v2655 = vunpack.c.l.b16 %v2615
    %v2656 = vunpack.c.l.b16 %v2616
    %v2657 = vunpack.c.l.b16 %v2617
    %v2658 = vunpack.c.l.b16 %v2618
    %v2659 = vunpack.c.l.b16 %v2619
    %v2660 = vunpack.c.l.b16 %v2620
    %v2661 = vunpack.c.l.b16 %v2621
    %v2662 = vunpack.c.l.b16 %v2622
    %v2663 = vpack.c.b16 %v2648, %v2647
    %v2664 = vpack.c.b16 %v2650, %v2649
    %v2665 = vpack.c.b16 %v2652, %v2651
    %v2666 = vpack.c.b16 %v2654, %v2653
    %v2667 = vpack.c.b16 %v2656, %v2655
    %v2668 = vpack.c.b16 %v2658, %v2657
    %v2669 = vpack.c.b16 %v2660, %v2659
    %v2670 = vpack.c.b16 %v2662, %v2661
    %2679 = vmatprep.subr.bf16.mxu0 0
    %2680 = vmatpush1.bf16.msra.mxu0 %v2670
    %2681 = vmatprep.subr.bf16.mxu0 0
    %2682 = vmatpush1.bf16.msra.mxu0 %v2669
    %2683 = vmatprep.subr.bf16.mxu0 0
    %2684 = vmatpush1.bf16.msra.mxu0 %v2668
    %2685 = vmatprep.subr.bf16.mxu0 0
    %2686 = vmatpush1.bf16.msra.mxu0 %v2667
    %2687 = vmatprep.subr.bf16.mxu0 0
    %2688 = vmatpush1.bf16.msra.mxu0 %v2666
    %2689 = vmatprep.subr.bf16.mxu0 0
    %2690 = vmatpush1.bf16.msra.mxu0 %v2665
    %2691 = vmatprep.subr.bf16.mxu0 0
    %2692 = vmatpush1.bf16.msra.mxu0 %v2664
    %2693 = vmatprep.subr.bf16.mxu0 0
    %2694 = vmatpush1.bf16.msra.mxu0 %v2663
    %2695 = vmatprep.subr.bf16.mxu0 0
    %2696 = vmatpush2.bf16.msra.mxu0 0
    %2697 = vmatprep.subr.bf16.mxu0 0
    %2698 = vmatpush2.bf16.msra.mxu0 0
    %2699 = vmatprep.subr.bf16.mxu0 0
    %2700 = vmatpush2.bf16.msra.mxu0 0
    %2701 = vmatprep.subr.bf16.mxu0 0
    %2702 = vmatpush2.bf16.msra.mxu0 0
    %2703 = vmatprep.subr.bf16.mxu0 0
    %2704 = vmatpush2.bf16.msra.mxu0 0
    %2705 = vmatprep.subr.bf16.mxu0 0
    %2706 = vmatpush2.bf16.msra.mxu0 0
    %2707 = vmatprep.subr.bf16.mxu0 0
    %2708 = vmatpush2.bf16.msra.mxu0 0
    %2709 = vmatprep.subr.bf16.mxu0 0
    %2710 = vmatpush2.bf16.msra.mxu0 0
    %2711 = vmatprep.mubr.bf16.mxu0 0
    %2712 = vmatmul.mubr.bf16.gmra.mxu0 %v2605
    %v2713 = vpop.f32.mrf.mxu0
    %v2714 = vadd.f32 %v2629, %v2713
    %v2715 = vpop.f32.mrf.mxu0
    %v2716 = vpop.f32.mrf.mxu0
    %v2717 = vadd.f32 %v2629, %v2716
    %v2718 = vpop.f32.mrf.mxu0
    %2719 = vdwg.mxu0
    %v2720 = vadd.f32 %v2714, %v1564
    %v2721 = vadd.f32 %v2717, %v1565
    %s2722 = scalar_lea.vmem %s5, 1
    %v2723 = vld [vmem:[%s2722] sm:$0x1]
    %s2724 = scalar_lea.vmem %s6, 1
    %v2725 = vld [vmem:[%s2724] sm:$0x1]
    %v2726 = vsel %vm175, %v2720, 0.0
    %2727 = vadd.xlane.f32.xlu0 %v2726
    %v2728 = vpop.xlane.xlu0 %2727
    %v2729 = vsel %vm175, %v2721, 0.0
    %2730 = vadd.xlane.f32.xlu0 %v2729
    %v2731 = vpop.xlane.xlu0 %2730
    %v2732 = vmul.f32 %v2728, %v1300
    %v2733 = vmul.f32 %v2731, %v1300
    %v2734 = vsub.f32 %v2720, %v2732
    %v2735 = vsub.f32 %v2721, %v2733
    %v2736 = vmul.f32 %v2734, %v2734
    %v2737 = vmul.f32 %v2735, %v2735
    %v2738 = vsel %vm175, %v2736, 0.0
    %2739 = vadd.xlane.f32.xlu0 %v2738
    %v2740 = vpop.xlane.xlu0 %2739
    %v2741 = vsel %vm175, %v2737, 0.0
    %2742 = vadd.xlane.f32.xlu0 %v2741
    %v2743 = vpop.xlane.xlu0 %2742
    %v2744 = vmul.f32 %v2740, %v1300
    %v2745 = vmul.f32 %v2743, %v1300
    %v2746 = vadd.f32 %v2744, 1e-05
    %v2747 = vadd.f32 %v2745, 1e-05
    %v2748 = vrsqrt.pop %v2746
    %v2749 = vrsqrt.pop %v2747
    %v2750 = vmul.f32 %v2734, %v2748
    %v2751 = vmul.f32 %v2735, %v2749
    %v2753 = vlaneseq
    %v2754 = vshrl.u32 %v2753, 7
    %v2755 = vsub.s32 0, %v2754
    %v2756 = vrot.slane %v2723, %v2755
    %v2758 = vmul.f32 %v2750, %v2756
    %v2759 = vmul.f32 %v2751, %v2756
    %v2761 = vlaneseq
    %v2762 = vshrl.u32 %v2761, 7
    %v2763 = vsub.s32 0, %v2762
    %v2764 = vrot.slane %v2725, %v2763
    %v2766 = vadd.f32 %v2758, %v2764
    %v2767 = vadd.f32 %v2759, %v2764
    %v2768 = vpack.c.bf16 %v2767, %v2766
    %s2769 = scalar_lea.vmem [#allocation7], 16
    %v2770 = vld [vmem:[%s2769] sm:$0xf]
    %v2771 = vld [vmem:[%s2769 + $0x4] sm:$0xf]
    %v2772 = vld [vmem:[%s2769 + $0x8] sm:$0xf]
    %v2773 = vld [vmem:[%s2769 + $0xc] sm:$0xf]
    %s2774 = scalar_lea.vmem [#allocation8], 1
    %v2775 = vld [vmem:[%s2774] sm:$0x1]
    %v2777 = vlaneseq
    %v2778 = vshrl.u32 %v2777, 7
    %v2779 = vsub.s32 0, %v2778
    %v2780 = vrot.slane %v2775, %v2779
    %v2786 = vunpack.c.l.b16 %v2770
    %v2787 = vunpack.c.l.b16 %v2771
    %v2788 = vunpack.c.l.b16 %v2772
    %v2789 = vunpack.c.l.b16 %v2773
    %v2790 = vpack.c.b16 %v2787, %v2786
    %v2791 = vpack.c.b16 %v2789, %v2788
    %v2795 = vsel %vm175, %v2768, 0
    %2797 = vmatprep.subr.bf16.mxu0 0
    %2798 = vmatpush1.bf16.msra.mxu0 0
    %2799 = vmatprep.subr.bf16.mxu0 0
    %2800 = vmatpush1.bf16.msra.mxu0 0
    %2801 = vmatprep.subr.bf16.mxu0 0
    %2802 = vmatpush1.bf16.msra.mxu0 0
    %2803 = vmatprep.subr.bf16.mxu0 0
    %2804 = vmatpush1.bf16.msra.mxu0 0
    %2805 = vmatprep.subr.bf16.mxu0 0
    %2806 = vmatpush1.bf16.msra.mxu0 0
    %2807 = vmatprep.subr.bf16.mxu0 0
    %2808 = vmatpush1.bf16.msra.mxu0 0
    %2809 = vmatprep.subr.bf16.mxu0 0
    %2810 = vmatpush1.bf16.msra.mxu0 %v2791
    %2811 = vmatprep.subr.bf16.mxu0 0
    %2812 = vmatpush1.bf16.msra.mxu0 %v2790
    %2813 = vmatprep.subr.bf16.mxu0 0
    %2814 = vmatpush2.bf16.msra.mxu0 0
    %2815 = vmatprep.subr.bf16.mxu0 0
    %2816 = vmatpush2.bf16.msra.mxu0 0
    %2817 = vmatprep.subr.bf16.mxu0 0
    %2818 = vmatpush2.bf16.msra.mxu0 0
    %2819 = vmatprep.subr.bf16.mxu0 0
    %2820 = vmatpush2.bf16.msra.mxu0 0
    %2821 = vmatprep.subr.bf16.mxu0 0
    %2822 = vmatpush2.bf16.msra.mxu0 0
    %2823 = vmatprep.subr.bf16.mxu0 0
    %2824 = vmatpush2.bf16.msra.mxu0 0
    %2825 = vmatprep.subr.bf16.mxu0 0
    %2826 = vmatpush2.bf16.msra.mxu0 0
    %2827 = vmatprep.subr.bf16.mxu0 0
    %2828 = vmatpush2.bf16.msra.mxu0 0
    %2829 = vmatprep.mubr.bf16.mxu0 0
    %2830 = vmatmul.mubr.bf16.gmra.mxu0 %v2795
    %v2831 = vpop.f32.mrf.mxu0
    %v2832 = vadd.f32 %v2780, %v2831
    %v2833 = vpop.f32.mrf.mxu0
    %v2834 = vpop.f32.mrf.mxu0
    %v2835 = vadd.f32 %v2780, %v2834
    %v2836 = vpop.f32.mrf.mxu0
    %2837 = vdwg.mxu0
    %v2838 = vmax.f32 %v2832, 0.0
    %v2839 = vmax.f32 %v2835, 0.0
    %v2840 = vpack.c.bf16 %v2839, %v2838
    %s2841 = scalar_lea.vmem %s9, 64
    %v2842 = vld [vmem:[%s2841] sm:$0xf]
    %v2843 = vld [vmem:[%s2841 + $0x4] sm:$0xf]
    %v2844 = vld [vmem:[%s2841 + $0x8] sm:$0xf]
    %v2845 = vld [vmem:[%s2841 + $0xc] sm:$0xf]
    %v2846 = vld [vmem:[%s2841 + $0x10] sm:$0xf]
    %v2847 = vld [vmem:[%s2841 + $0x14] sm:$0xf]
    %v2848 = vld [vmem:[%s2841 + $0x18] sm:$0xf]
    %v2849 = vld [vmem:[%s2841 + $0x1c] sm:$0xf]
    %v2850 = vld [vmem:[%s2841 + $0x20] sm:$0xf]
    %v2851 = vld [vmem:[%s2841 + $0x24] sm:$0xf]
    %v2852 = vld [vmem:[%s2841 + $0x28] sm:$0xf]
    %v2853 = vld [vmem:[%s2841 + $0x2c] sm:$0xf]
    %v2854 = vld [vmem:[%s2841 + $0x30] sm:$0xf]
    %v2855 = vld [vmem:[%s2841 + $0x34] sm:$0xf]
    %v2856 = vld [vmem:[%s2841 + $0x38] sm:$0xf]
    %v2857 = vld [vmem:[%s2841 + $0x3c] sm:$0xf]
    %s2858 = scalar_lea.vmem [#allocation10], 1
    %v2859 = vld [vmem:[%s2858] sm:$0x1]
    %v2861 = vlaneseq
    %v2862 = vshrl.u32 %v2861, 7
    %v2863 = vsub.s32 0, %v2862
    %v2864 = vrot.slane %v2859, %v2863
    %v2882 = vunpack.c.l.b16 %v2842
    %v2883 = vunpack.c.l.b16 %v2843
    %v2884 = vunpack.c.l.b16 %v2844
    %v2885 = vunpack.c.l.b16 %v2845
    %v2886 = vunpack.c.l.b16 %v2846
    %v2887 = vunpack.c.l.b16 %v2847
    %v2888 = vunpack.c.l.b16 %v2848
    %v2889 = vunpack.c.l.b16 %v2849
    %v2890 = vunpack.c.l.b16 %v2850
    %v2891 = vunpack.c.l.b16 %v2851
    %v2892 = vunpack.c.l.b16 %v2852
    %v2893 = vunpack.c.l.b16 %v2853
    %v2894 = vunpack.c.l.b16 %v2854
    %v2895 = vunpack.c.l.b16 %v2855
    %v2896 = vunpack.c.l.b16 %v2856
    %v2897 = vunpack.c.l.b16 %v2857
    %v2898 = vpack.c.b16 %v2883, %v2882
    %v2899 = vpack.c.b16 %v2885, %v2884
    %v2900 = vpack.c.b16 %v2887, %v2886
    %v2901 = vpack.c.b16 %v2889, %v2888
    %v2902 = vpack.c.b16 %v2891, %v2890
    %v2903 = vpack.c.b16 %v2893, %v2892
    %v2904 = vpack.c.b16 %v2895, %v2894
    %v2905 = vpack.c.b16 %v2897, %v2896
    %2914 = vmatprep.subr.bf16.mxu0 0
    %2915 = vmatpush1.bf16.msra.mxu0 %v2905
    %2916 = vmatprep.subr.bf16.mxu0 0
    %2917 = vmatpush1.bf16.msra.mxu0 %v2904
    %2918 = vmatprep.subr.bf16.mxu0 0
    %2919 = vmatpush1.bf16.msra.mxu0 %v2903
    %2920 = vmatprep.subr.bf16.mxu0 0
    %2921 = vmatpush1.bf16.msra.mxu0 %v2902
    %2922 = vmatprep.subr.bf16.mxu0 0
    %2923 = vmatpush1.bf16.msra.mxu0 %v2901
    %2924 = vmatprep.subr.bf16.mxu0 0
    %2925 = vmatpush1.bf16.msra.mxu0 %v2900
    %2926 = vmatprep.subr.bf16.mxu0 0
    %2927 = vmatpush1.bf16.msra.mxu0 %v2899
    %2928 = vmatprep.subr.bf16.mxu0 0
    %2929 = vmatpush1.bf16.msra.mxu0 %v2898
    %2930 = vmatprep.subr.bf16.mxu0 0
    %2931 = vmatpush2.bf16.msra.mxu0 0
    %2932 = vmatprep.subr.bf16.mxu0 0
    %2933 = vmatpush2.bf16.msra.mxu0 0
    %2934 = vmatprep.subr.bf16.mxu0 0
    %2935 = vmatpush2.bf16.msra.mxu0 0
    %2936 = vmatprep.subr.bf16.mxu0 0
    %2937 = vmatpush2.bf16.msra.mxu0 0
    %2938 = vmatprep.subr.bf16.mxu0 0
    %2939 = vmatpush2.bf16.msra.mxu0 0
    %2940 = vmatprep.subr.bf16.mxu0 0
    %2941 = vmatpush2.bf16.msra.mxu0 0
    %2942 = vmatprep.subr.bf16.mxu0 0
    %2943 = vmatpush2.bf16.msra.mxu0 0
    %2944 = vmatprep.subr.bf16.mxu0 0
    %2945 = vmatpush2.bf16.msra.mxu0 0
    %2946 = vmatprep.mubr.bf16.mxu0 0
    %2947 = vmatmul.mubr.bf16.gmra.mxu0 %v2840
    %v2948 = vpop.f32.mrf.mxu0
    %v2949 = vadd.f32 %v2864, %v2948
    %v2950 = vpop.f32.mrf.mxu0
    %v2951 = vpop.f32.mrf.mxu0
    %v2952 = vadd.f32 %v2864, %v2951
    %v2953 = vpop.f32.mrf.mxu0
    %2954 = vdwg.mxu0
    %v2955 = vadd.f32 %v2949, %v2766
    %v2956 = vadd.f32 %v2952, %v2767
    %s2957 = scalar_lea.vmem %s11, 1
    %v2958 = vld [vmem:[%s2957] sm:$0x1]
    %s2959 = scalar_lea.vmem %s12, 1
    %v2960 = vld [vmem:[%s2959] sm:$0x1]
    %v2961 = vsel %vm175, %v2955, 0.0
    %2962 = vadd.xlane.f32.xlu0 %v2961
    %v2963 = vpop.xlane.xlu0 %2962
    %v2964 = vsel %vm175, %v2956, 0.0
    %2965 = vadd.xlane.f32.xlu0 %v2964
    %v2966 = vpop.xlane.xlu0 %2965
    %v2967 = vmul.f32 %v2963, %v1300
    %v2968 = vmul.f32 %v2966, %v1300
    %v2969 = vsub.f32 %v2955, %v2967
    %v2970 = vsub.f32 %v2956, %v2968
    %v2971 = vmul.f32 %v2969, %v2969
    %v2972 = vmul.f32 %v2970, %v2970
    %v2973 = vsel %vm175, %v2971, 0.0
    %2974 = vadd.xlane.f32.xlu0 %v2973
    %v2975 = vpop.xlane.xlu0 %2974
    %v2976 = vsel %vm175, %v2972, 0.0
    %2977 = vadd.xlane.f32.xlu0 %v2976
    %v2978 = vpop.xlane.xlu0 %2977
    %v2979 = vmul.f32 %v2975, %v1300
    %v2980 = vmul.f32 %v2978, %v1300
    %v2981 = vadd.f32 %v2979, 1e-05
    %v2982 = vadd.f32 %v2980, 1e-05
    %v2983 = vrsqrt.pop %v2981
    %v2984 = vrsqrt.pop %v2982
    %v2985 = vmul.f32 %v2969, %v2983
    %v2986 = vmul.f32 %v2970, %v2984
    %v2988 = vlaneseq
    %v2989 = vshrl.u32 %v2988, 7
    %v2990 = vsub.s32 0, %v2989
    %v2991 = vrot.slane %v2958, %v2990
    %v2993 = vmul.f32 %v2985, %v2991
    %v2994 = vmul.f32 %v2986, %v2991
    %v2996 = vlaneseq
    %v2997 = vshrl.u32 %v2996, 7
    %v2998 = vsub.s32 0, %v2997
    %v2999 = vrot.slane %v2960, %v2998
    %v3001 = vadd.f32 %v2993, %v2999
    %v3002 = vadd.f32 %v2994, %v2999
    %v3003 = vld [vmem:[%s1] sm:$0x3]
    %vm3004 = vcmask 130048
    %v3006 = vsel %vm3004, %v3003, 0
    %3008 = vmatprep.subr.mxu0 0.0
    %3009 = vmatpush1.msra.mxu0 0.0
    %3010 = vmatprep.subr.mxu0 0.0
    %3011 = vmatpush1.msra.mxu0 0.0
    %3012 = vmatprep.subr.mxu0 0.0
    %3013 = vmatpush1.msra.mxu0 0.0
    %3014 = vmatprep.subr.mxu0 0.0
    %3015 = vmatpush1.msra.mxu0 0.0
    %3016 = vmatprep.subr.mxu0 0.0
    %3017 = vmatpush1.msra.mxu0 0.0
    %3018 = vmatprep.subr.mxu0 0.0
    %3019 = vmatpush1.msra.mxu0 0.0
    %3020 = vmatprep.subr.mxu0 0.0
    %3021 = vmatpush1.msra.mxu0 0.0
    %3022 = vmatprep.subr.mxu0 0.0
    %3023 = vmatpush1.msra.mxu0 0.0
    %3024 = vmatprep.subr.mxu0 0.0
    %3025 = vmatpush1.msra.mxu0 0.0
    %3026 = vmatprep.subr.mxu0 0.0
    %3027 = vmatpush1.msra.mxu0 0.0
    %3028 = vmatprep.subr.mxu0 0.0
    %3029 = vmatpush1.msra.mxu0 0.0
    %3030 = vmatprep.subr.mxu0 0.0
    %3031 = vmatpush1.msra.mxu0 0.0
    %3032 = vmatprep.subr.mxu0 0.0
    %3033 = vmatpush1.msra.mxu0 0.0
    %3034 = vmatprep.subr.mxu0 0.0
    %3035 = vmatpush1.msra.mxu0 0.0
    %3036 = vmatprep.subr.mxu0 0.0
    %3037 = vmatpush1.msra.mxu0 %v3002
    %3038 = vmatprep.subr.mxu0 0.0
    %3039 = vmatpush1.msra.mxu0 %v3001
    %3040 = vmatprep.subr.mxu0 0.0
    %3041 = vmatpush2.msra.mxu0 0.0
    %3042 = vmatprep.subr.mxu0 0.0
    %3043 = vmatpush2.msra.mxu0 0.0
    %3044 = vmatprep.subr.mxu0 0.0
    %3045 = vmatpush2.msra.mxu0 0.0
    %3046 = vmatprep.subr.mxu0 0.0
    %3047 = vmatpush2.msra.mxu0 0.0
    %3048 = vmatprep.subr.mxu0 0.0
    %3049 = vmatpush2.msra.mxu0 0.0
    %3050 = vmatprep.subr.mxu0 0.0
    %3051 = vmatpush2.msra.mxu0 0.0
    %3052 = vmatprep.subr.mxu0 0.0
    %3053 = vmatpush2.msra.mxu0 0.0
    %3054 = vmatprep.subr.mxu0 0.0
    %3055 = vmatpush2.msra.mxu0 0.0
    %3056 = vmatprep.subr.mxu0 0.0
    %3057 = vmatpush2.msra.mxu0 0.0
    %3058 = vmatprep.subr.mxu0 0.0
    %3059 = vmatpush2.msra.mxu0 0.0
    %3060 = vmatprep.subr.mxu0 0.0
    %3061 = vmatpush2.msra.mxu0 0.0
    %3062 = vmatprep.subr.mxu0 0.0
    %3063 = vmatpush2.msra.mxu0 0.0
    %3064 = vmatprep.subr.mxu0 0.0
    %3065 = vmatpush2.msra.mxu0 0.0
    %3066 = vmatprep.subr.mxu0 0.0
    %3067 = vmatpush2.msra.mxu0 0.0
    %3068 = vmatprep.subr.mxu0 0.0
    %3069 = vmatpush2.msra.mxu0 0.0
    %3070 = vmatprep.subr.mxu0 0.0
    %3071 = vmatpush2.msra.mxu0 0.0
    %3072 = vmatprep.mubr.f32.mxu0 0.0
    %3073 = vmatmul.mubr.f32.gmra.mxu0 %v3006
    %v3074 = vpop.f32.mrf.mxu0
    %v3075 = vadd.f32 0.0, %v3074
    %v3076 = vpop.f32.mrf.mxu0
    %3077 = vdwg.mxu0
    %v3078 = vpack.c.bf16 %v3075, %v3075
    %v3079 = vld [vmem:[%s13] sm:$0xf]
    %v3080 = vld [vmem:[%s13 + $0x4] sm:$0xf]
    %v3081 = vld [vmem:[%s13 + $0x8] sm:$0xf]
    %v3082 = vld [vmem:[%s13 + $0xc] sm:$0xf]
    %v3083 = vld [vmem:[#allocation11] sm:$0x1]
    %v3085 = vlaneseq
    %v3086 = vshrl.u32 %v3085, 7
    %v3087 = vsub.s32 0, %v3086
    %v3088 = vrot.slane %v3083, %v3087
    %v3094 = vunpack.c.l.b16 %v3079
    %v3095 = vunpack.c.l.b16 %v3080
    %v3096 = vunpack.c.l.b16 %v3081
    %v3097 = vunpack.c.l.b16 %v3082
    %v3098 = vpack.c.b16 %v3095, %v3094
    %v3099 = vpack.c.b16 %v3097, %v3096
    %v3103 = vsel %vm175, %v3078, 0
    %3105 = vmatprep.subr.bf16.mxu0 0
    %3106 = vmatpush1.bf16.msra.mxu0 0
    %3107 = vmatprep.subr.bf16.mxu0 0
    %3108 = vmatpush1.bf16.msra.mxu0 0
    %3109 = vmatprep.subr.bf16.mxu0 0
    %3110 = vmatpush1.bf16.msra.mxu0 0
    %3111 = vmatprep.subr.bf16.mxu0 0
    %3112 = vmatpush1.bf16.msra.mxu0 0
    %3113 = vmatprep.subr.bf16.mxu0 0
    %3114 = vmatpush1.bf16.msra.mxu0 0
    %3115 = vmatprep.subr.bf16.mxu0 0
    %3116 = vmatpush1.bf16.msra.mxu0 0
    %3117 = vmatprep.subr.bf16.mxu0 0
    %3118 = vmatpush1.bf16.msra.mxu0 %v3099
    %3119 = vmatprep.subr.bf16.mxu0 0
    %3120 = vmatpush1.bf16.msra.mxu0 %v3098
    %3121 = vmatprep.subr.bf16.mxu0 0
    %3122 = vmatpush2.bf16.msra.mxu0 0
    %3123 = vmatprep.subr.bf16.mxu0 0
    %3124 = vmatpush2.bf16.msra.mxu0 0
    %3125 = vmatprep.subr.bf16.mxu0 0
    %3126 = vmatpush2.bf16.msra.mxu0 0
    %3127 = vmatprep.subr.bf16.mxu0 0
    %3128 = vmatpush2.bf16.msra.mxu0 0
    %3129 = vmatprep.subr.bf16.mxu0 0
    %3130 = vmatpush2.bf16.msra.mxu0 0
    %3131 = vmatprep.subr.bf16.mxu0 0
    %3132 = vmatpush2.bf16.msra.mxu0 0
    %3133 = vmatprep.subr.bf16.mxu0 0
    %3134 = vmatpush2.bf16.msra.mxu0 0
    %3135 = vmatprep.subr.bf16.mxu0 0
    %3136 = vmatpush2.bf16.msra.mxu0 0
    %3137 = vmatprep.mubr.bf16.mxu0 0
    %3138 = vmatmul.mubr.bf16.gmra.mxu0 %v3103
    %v3139 = vpop.f32.mrf.mxu0
    %v3140 = vadd.f32 %v3088, %v3139
    %v3141 = vpop.f32.mrf.mxu0
    %v3142 = vpop.f32.mrf.mxu0
    %v3143 = vpop.f32.mrf.mxu0
    %3144 = vdwg.mxu0
    %vm3145 = vcmask 25600
    %v3146 = vsel %vm3145, %v3140, -inf
    %3147 = vmax.xlane.f32.xlu0 %v3146
    %v3148 = vpop.xlane.xlu0 %3147
    %v3149 = vsub.f32 %v3140, %v3148
    %v3150 = vmul.f32 %v3149, 1.442695
    %v3151 = vpow.pop %v3150
    %v3152 = vsel %vm3145, %v3151, 0.0
    %3153 = vadd.xlane.f32.xlu0 %v3152
    %v3154 = vpop.xlane.xlu0 %3153
    %v3155 = vlog2.pop %v3154
    %v3156 = vmul.f32 %v3155, 0.6931472
    %v3157 = vadd.f32 %v3148, %v3156
    %v3158 = vsub.f32 %v3140, %v3157
    %3159 = vst.msk [vmem:[#allocation13] sm:$0x3] %vm3145, %v3158
    // Predicated region
    $region86: #{_lambda_.1} parent=1 // pred_check
      _
    $region87: #{_lambda_.1} parent=1 // pred_check_branch
      %3161 = sbr.rel (0) target = $region89
    $region88: #{_lambda_.1} parent=1 // pred_region
      %s3163 = ssub.s32 32, 32
      %3164 = vsyncadd [#allocation4], %s3163
      %s3166 = sshll.u32 [#allocation13], 4
      %s3167 = int_to_ptr.vmem [resolvable:$true] %s3166
      %3169 = dma.vmem_to_hbm [thread:$0]  %s3167, 32, %s15, [#allocation4]
    $region89: #{_lambda_.1} parent=1 // pred_fallthru
      _
    // Predicated region
    $region90: #{_lambda_.1} parent=1 // pred_check
      _
    $region91: #{_lambda_.1} parent=1 // pred_check_branch
      %3171 = sbr.rel (0) target = $region93
    $region92: #{_lambda_.1} parent=1 // pred_region
      %3172 = dma.done [#allocation4], 32
    $region93: #{_lambda_.1} parent=1 // pred_fallthru
      _
    %3173 = vsyncpa [#allocation3], 1
    %3174 = vsyncpa [#allocation6], 1
    %3175 = vsyncpa [#allocation9], 1
    %3176 = vsyncpa [#allocation12], 1
    %3177 = vsyncpa [#allocation4], 1

</llo_original>
